<compile_context>
chip_gen: v6e
topology: v6e:2x2x1
jax: 0.10.0
libtpu: 0.0.40
codegen_flags: <defaults>
</compile_context>

<pallas_src>
import jax
import jax.numpy as jnp
from jax.experimental import pallas as pl
from jax.experimental.pallas import tpu as pltpu


# ----------------------------------------------------------------------------
# Fused kernel: per-point MLP + running max over point tiles + FC head.
# Grid: (B_pad // TB, N_pad // TN); axis 0 parallel (batch tiles), axis 1
# arbitrary (point tiles, running-max accumulator in VMEM scratch).
# ----------------------------------------------------------------------------
def _make_pointnet_kernel(TB, TN):
    M = TB * TN

    def kernel(
        pts_ref,               # (TB, TN, 8) f32 (channels 3..7 are 0)
        w1_ref, t1_ref,        # (3, 64)    f32 (BN scale folded), (1, 64)   f32
        w2_ref, t2_ref,        # (64, 128)  bf16 (scale folded),   (1, 128)  f32
        w3_ref, t3_ref,        # (128, 256) bf16,                  (1, 256)  f32
        w4_ref, t4_ref,        # (256,1024) bf16,                  (1, 1024) f32
        w5_ref, t5_ref,        # (1024,1024) bf16,                 (1, 1024) f32
        w6_ref, t6_ref,        # (1024,128) bf16,                  (1, 128)  f32
        out_ref,               # (TB, 128) f32
        acc_ref,               # (TB, 1024) f32 scratch (running max)
    ):
        ni = pl.program_id(1)

        @pl.when(ni == 0)
        def _init():
            # All accumulated values are post-ReLU (>= 0), so zero-init is
            # equivalent to -inf init for the max.
            acc_ref[...] = jnp.zeros_like(acc_ref)

        x = pts_ref[...].reshape(M, 8)                       # (M, 8) f32

        # Layer 1 (Cin=3): VPU outer-product; BN scale is pre-folded into w1,
        # so only a shift + ReLU remains.
        h = (x[:, 0:1] * w1_ref[0:1, :]
             + x[:, 1:2] * w1_ref[1:2, :]
             + x[:, 2:3] * w1_ref[2:3, :])                   # (M, 64)
        h = jnp.maximum(h + t1_ref[...], 0.0)

        # Layers 2..4: bf16 MXU matmuls (scale-folded weights), f32 accum,
        # fused shift + ReLU (no per-channel multiply on the VALU path).
        for w_ref, t_ref in ((w2_ref, t2_ref),
                             (w3_ref, t3_ref),
                             (w4_ref, t4_ref)):
            h = jnp.dot(h.astype(jnp.bfloat16), w_ref[...],
                        preferred_element_type=jnp.float32)
            h = jnp.maximum(h + t_ref[...], 0.0)
        # h: (M, 1024) f32

        # Running per-point-cloud max over this point tile: single XLU reduce
        # instead of TB slice-reduces + concatenate.
        tile_max = jnp.max(h.reshape(TB, TN, 1024), axis=1)  # (TB, 1024)
        acc_ref[...] = jnp.maximum(acc_ref[...], tile_max)

        # FC head (1024 -> 1024 -> 128), fused; once per point-cloud tile.
        @pl.when(ni == pl.num_programs(1) - 1)
        def _head():
            f = acc_ref[...]                                 # (TB, 1024) f32
            g = jnp.dot(f.astype(jnp.bfloat16), w5_ref[...],
                        preferred_element_type=jnp.float32)
            g = jnp.maximum(g + t5_ref[...], 0.0)
            g = jnp.dot(g.astype(jnp.bfloat16), w6_ref[...],
                        preferred_element_type=jnp.float32)
            out_ref[...] = jnp.maximum(g + t6_ref[...], 0.0)

    return kernel


# ----------------------------------------------------------------------------
# Parameter setup (deterministic, synthetic) + host-side BN folding.
# The BN scale is folded into the weights IN F32 before any bf16 cast; only a
# per-channel shift is passed to the kernel.
# ----------------------------------------------------------------------------
_BN_EPS = 1e-5


def _bn_fold(w, bias, gamma, beta, mean, var):
    """Fold eval-mode BN + conv/linear bias: scale -> weights, shift -> vector."""
    scale = gamma / jnp.sqrt(var + _BN_EPS)                    # (Cout,)
    w_folded = (w * scale[None, :]).astype(jnp.float32)        # (Cin, Cout)
    shift = ((bias - mean) * scale + beta).astype(jnp.float32) # (Cout,)
    return w_folded, shift[None, :]


def make_params(key):
    dims = [(3, 64), (64, 128), (128, 256), (256, 1024),   # conv1..4 (k=1)
            (1024, 1024), (1024, 128)]                      # fc1, fc2
    params = []
    for li, (cin, cout) in enumerate(dims):
        key, kw, kb, kg, kbe, km, kv = jax.random.split(key, 7)
        w = jax.random.normal(kw, (cin, cout), jnp.float32) * 0.05  # (Cin, Cout)
        b = jax.random.normal(kb, (cout,), jnp.float32) * 0.05
        gamma = 1.0 + 0.1 * jax.random.normal(kg, (cout,), jnp.float32)
        beta = 0.1 * jax.random.normal(kbe, (cout,), jnp.float32)
        mean = 0.1 * jax.random.normal(km, (cout,), jnp.float32)
        var = jnp.abs(jax.random.normal(kv, (cout,), jnp.float32)) + 0.5
        w_folded, shift = _bn_fold(w, b, gamma, beta, mean, var)
        if li > 0:
            w_folded = w_folded.astype(jnp.bfloat16)  # MXU layers: bf16 weights
        params.append((w_folded, shift))
    return params


# ----------------------------------------------------------------------------
# Wrapper: one fused pallas_call reproducing PointNet.forward (eval-mode BN).
#   input  pcs: (B, N, 3) float32
#   output    : (B, 128) float32
# ----------------------------------------------------------------------------
def _round_up(x, m):
    return ((x + m - 1) // m) * m


def pointnet_forward(pcs, params, *, tb=8, tn=256):
    B, N, cin = pcs.shape
    assert cin == 3
    tn = max(8, _round_up(tn, 8))

    # --- Batch tiling: TB must be a multiple of 8 or equal the (padded) B. --
    if B > 8:
        TB = max(8, (min(tb, B) // 8) * 8)
        B_pad = _round_up(B, TB)          # >= 2 batch grid steps (v7x 2 cores)
    else:
        # Small batch: single batch-grid step (on v7x the 2nd TensorCore
        # idles; padding with dummy clouds would only add equal dummy work).
        TB = B
        B_pad = B

    # --- Point tiling: pad N by DUPLICATING real points (max-invariant) so
    #     TN never collapses to a tiny divisor for awkward/prime N. ----------
    if N >= tn:
        TN = tn
        N_pad = _round_up(N, TN)
    else:
        TN = _round_up(N, 8)
        N_pad = TN

    x = pcs
    if N_pad != N:
        reps = -(-N_pad // N)
        x = jnp.tile(x, (1, reps, 1))[:, :N_pad, :]           # duplicate points

    # Pad channels 3 -> 8 so point loads are not 3-of-128-lane masked.
    x = jnp.pad(x, ((0, 0), (0, 0), (0, 8 - cin)))

    if B_pad != B:
        x = jnp.pad(x, ((0, B_pad - B), (0, 0), (0, 0)))      # dummy clouds

    flat = [a for pair in params for a in pair]               # 12 arrays

    def const_spec(a):
        # Constant block index => weights/shifts DMA'd once, VMEM-resident.
        return pl.BlockSpec(a.shape, lambda bi, ni: (0, 0))

    out = pl.pallas_call(
        _make_pointnet_kernel(TB, TN),
        out_shape=jax.ShapeDtypeStruct((B_pad, 128), jnp.float32),
        grid=(B_pad // TB, N_pad // TN),
        in_specs=[pl.BlockSpec((TB, TN, 8), lambda bi, ni: (bi, ni, 0))]
        + [const_spec(a) for a in flat],
        out_specs=pl.BlockSpec((TB, 128), lambda bi, ni: (bi, 0)),
        scratch_shapes=[pltpu.VMEM((TB, 1024), jnp.float32)],
        compiler_params=pltpu.CompilerParams(
            dimension_semantics=("parallel", "arbitrary"),
            # Explicit limit: > v5e's 16 MiB default, < v7x's 64 MiB physical.
            vmem_limit_bytes=48 * 1024 * 1024),
    )(x, *flat)
    return out[:B]


# Pure-JAX reference (same scale-folded bf16-weight / f32-accumulate math).
def pointnet_reference(pcs, params):
    w1, t1 = params[0]
    h = (pcs[..., 0:1] * w1[0:1, :]
         + pcs[..., 1:2] * w1[1:2, :]
         + pcs[..., 2:3] * w1[2:3, :])
    h = jnp.maximum(h + t1, 0.0)
    for w, t in params[1:4]:
        h = jnp.einsum("bnc,cd->bnd", h.astype(jnp.bfloat16), w,
                       preferred_element_type=jnp.float32)
        h = jnp.maximum(h + t, 0.0)
    f = jnp.max(h, axis=1)                                    # (B, 1024)
    for w, t in params[4:]:
        f = jnp.dot(f.astype(jnp.bfloat16), w, preferred_element_type=jnp.float32)
        f = jnp.maximum(f + t, 0.0)
    return f


if __name__ == "__main__":
    key = jax.random.PRNGKey(0)
    kp, kx = jax.random.split(key)
    params = make_params(kp)

    B, N = 2, 64
    pcs = jax.random.normal(kx, (B, N, 3), jnp.float32)

    out = jax.block_until_ready(pointnet_forward(pcs, params))
    ref = pointnet_reference(pcs, params)

    assert out.shape == (B, 128)
    max_err = float(jnp.max(jnp.abs(out - ref)))
    assert jnp.allclose(out, ref, atol=5e-3, rtol=5e-3), f"mismatch: {max_err}"

    print("KERNEL_OK")
</pallas_src>

<mosaic_0001>
module attributes {stable_mosaic.version = 11 : i64} {
  func.func @kernel(%arg0: i32, %arg1: i32, %arg2: memref<2x64x8xf32, #tpu.memory_space<vmem>>, %arg3: memref<3x64xf32, #tpu.memory_space<vmem>>, %arg4: memref<1x64xf32, #tpu.memory_space<vmem>>, %arg5: memref<64x128xbf16, #tpu.memory_space<vmem>>, %arg6: memref<1x128xf32, #tpu.memory_space<vmem>>, %arg7: memref<128x256xbf16, #tpu.memory_space<vmem>>, %arg8: memref<1x256xf32, #tpu.memory_space<vmem>>, %arg9: memref<256x1024xbf16, #tpu.memory_space<vmem>>, %arg10: memref<1x1024xf32, #tpu.memory_space<vmem>>, %arg11: memref<1024x1024xbf16, #tpu.memory_space<vmem>>, %arg12: memref<1x1024xf32, #tpu.memory_space<vmem>>, %arg13: memref<1024x128xbf16, #tpu.memory_space<vmem>>, %arg14: memref<1x128xf32, #tpu.memory_space<vmem>>, %arg15: memref<2x128xf32, #tpu.memory_space<vmem>>, %arg16: memref<2x1024xf32, #tpu.memory_space<vmem>>) attributes {dimension_semantics = [#tpu.dimension_semantics<parallel>, #tpu.dimension_semantics<arbitrary>], iteration_bounds = array<i64: 1, 1>, scalar_prefetch = 0 : i64, scratch_operands = 1 : i64, tpu.core_type = #tpu.core_type<tc>, window_params = [{transform_indices = @transform_0, window_bounds = array<i64: 2, 64, 8>}, {pipeline_mode = #tpu.pipeline_mode<synchronous>, transform_indices = @transform_1, window_bounds = array<i64: 3, 64>}, {pipeline_mode = #tpu.pipeline_mode<synchronous>, transform_indices = @transform_2, window_bounds = array<i64: 1, 64>}, {pipeline_mode = #tpu.pipeline_mode<synchronous>, transform_indices = @transform_3, window_bounds = array<i64: 64, 128>}, {pipeline_mode = #tpu.pipeline_mode<synchronous>, transform_indices = @transform_4, window_bounds = array<i64: 1, 128>}, {pipeline_mode = #tpu.pipeline_mode<synchronous>, transform_indices = @transform_5, window_bounds = array<i64: 128, 256>}, {pipeline_mode = #tpu.pipeline_mode<synchronous>, transform_indices = @transform_6, window_bounds = array<i64: 1, 256>}, {pipeline_mode = #tpu.pipeline_mode<synchronous>, transform_indices = @transform_7, window_bounds = array<i64: 256, 1024>}, {pipeline_mode = #tpu.pipeline_mode<synchronous>, transform_indices = @transform_8, window_bounds = array<i64: 1, 1024>}, {pipeline_mode = #tpu.pipeline_mode<synchronous>, transform_indices = @transform_9, window_bounds = array<i64: 1024, 1024>}, {pipeline_mode = #tpu.pipeline_mode<synchronous>, transform_indices = @transform_10, window_bounds = array<i64: 1, 1024>}, {pipeline_mode = #tpu.pipeline_mode<synchronous>, transform_indices = @transform_11, window_bounds = array<i64: 1024, 128>}, {pipeline_mode = #tpu.pipeline_mode<synchronous>, transform_indices = @transform_12, window_bounds = array<i64: 1, 128>}, {transform_indices = @transform_13, window_bounds = array<i64: 2, 128>}]} {
    %c0_i32 = arith.constant 0 : i32
    %0 = arith.cmpi eq, %arg1, %c0_i32 : i32
    %1 = arith.extui %0 : i1 to i32
    %c0_i32_0 = arith.constant 0 : i32
    %2 = arith.cmpi ne, %1, %c0_i32_0 : i32
    scf.if %2 {
      %cst_34 = arith.constant 0.000000e+00 : f32
      %59 = vector.broadcast %cst_34 : f32 to vector<2x1024xf32>
      %c0_35 = arith.constant 0 : index
      %c0_36 = arith.constant 0 : index
      %60 = vector.load %arg16[%c0_35, %c0_36] : memref<2x1024xf32, #tpu.memory_space<vmem>>, vector<2x1024xf32>
      tpu.vector_store %arg16[%c0_35, %c0_36], %59 {strides = array<i32>} : memref<2x1024xf32, #tpu.memory_space<vmem>>, vector<2x1024xf32>,
    } else {
    }
    %c0 = arith.constant 0 : index
    %c0_1 = arith.constant 0 : index
    %c0_2 = arith.constant 0 : index
    %3 = vector.load %arg2[%c0, %c0_1, %c0_2] : memref<2x64x8xf32, #tpu.memory_space<vmem>>, vector<2x64x8xf32>
    %4 = vector.shape_cast %3 : vector<2x64x8xf32> to vector<128x8xf32>
    %5 = vector.extract_strided_slice %4 {offsets = [0, 0], sizes = [128, 1], strides = [1, 1]} : vector<128x8xf32> to vector<128x1xf32>
    %c0_3 = arith.constant 0 : index
    %c0_4 = arith.constant 0 : index
    %6 = vector.load %arg3[%c0_3, %c0_4] : memref<3x64xf32, #tpu.memory_space<vmem>>, vector<1x64xf32>
    %7 = vector.broadcast %5 : vector<128x1xf32> to vector<128x64xf32>
    %8 = vector.broadcast %6 : vector<1x64xf32> to vector<128x64xf32>
    %9 = arith.mulf %7, %8 : vector<128x64xf32>
    %10 = vector.extract_strided_slice %4 {offsets = [0, 1], sizes = [128, 1], strides = [1, 1]} : vector<128x8xf32> to vector<128x1xf32>
    %c1 = arith.constant 1 : index
    %c0_5 = arith.constant 0 : index
    %11 = vector.load %arg3[%c1, %c0_5] : memref<3x64xf32, #tpu.memory_space<vmem>>, vector<1x64xf32>
    %12 = vector.broadcast %10 : vector<128x1xf32> to vector<128x64xf32>
    %13 = vector.broadcast %11 : vector<1x64xf32> to vector<128x64xf32>
    %14 = arith.mulf %12, %13 : vector<128x64xf32>
    %15 = arith.addf %9, %14 : vector<128x64xf32>
    %16 = vector.extract_strided_slice %4 {offsets = [0, 2], sizes = [128, 1], strides = [1, 1]} : vector<128x8xf32> to vector<128x1xf32>
    %c2 = arith.constant 2 : index
    %c0_6 = arith.constant 0 : index
    %17 = vector.load %arg3[%c2, %c0_6] : memref<3x64xf32, #tpu.memory_space<vmem>>, vector<1x64xf32>
    %18 = vector.broadcast %16 : vector<128x1xf32> to vector<128x64xf32>
    %19 = vector.broadcast %17 : vector<1x64xf32> to vector<128x64xf32>
    %20 = arith.mulf %18, %19 : vector<128x64xf32>
    %21 = arith.addf %15, %20 : vector<128x64xf32>
    %c0_7 = arith.constant 0 : index
    %c0_8 = arith.constant 0 : index
    %22 = vector.load %arg4[%c0_7, %c0_8] : memref<1x64xf32, #tpu.memory_space<vmem>>, vector<1x64xf32>
    %23 = vector.broadcast %22 : vector<1x64xf32> to vector<128x64xf32>
    %24 = arith.addf %21, %23 : vector<128x64xf32>
    %cst = arith.constant 0.000000e+00 : f32
    %25 = vector.broadcast %cst : f32 to vector<128x64xf32>
    %26 = arith.maximumf %24, %25 : vector<128x64xf32>
    %27 = arith.truncf %26 : vector<128x64xf32> to vector<128x64xbf16>
    %c0_9 = arith.constant 0 : index
    %c0_10 = arith.constant 0 : index
    %28 = vector.load %arg5[%c0_9, %c0_10] : memref<64x128xbf16, #tpu.memory_space<vmem>>, vector<64x128xbf16>
    %cst_11 = arith.constant dense<0.000000e+00> : vector<128x128xf32>
    %29 = tpu.matmul %27, %28, %cst_11 {dimension_numbers = #tpu.dot_dimension_numbers<[1], [0], [0], [1], [0, 0, 1, 1], [], []>} : vector<128x64xbf16>, vector<64x128xbf16>, vector<128x128xf32> -> vector<128x128xf32>
    %c0_12 = arith.constant 0 : index
    %c0_13 = arith.constant 0 : index
    %30 = vector.load %arg6[%c0_12, %c0_13] : memref<1x128xf32, #tpu.memory_space<vmem>>, vector<1x128xf32>
    %31 = vector.broadcast %30 : vector<1x128xf32> to vector<128x128xf32>
    %32 = arith.addf %29, %31 : vector<128x128xf32>
    %cst_14 = arith.constant 0.000000e+00 : f32
    %33 = vector.broadcast %cst_14 : f32 to vector<128x128xf32>
    %34 = arith.maximumf %32, %33 : vector<128x128xf32>
    %35 = arith.truncf %34 : vector<128x128xf32> to vector<128x128xbf16>
    %c0_15 = arith.constant 0 : index
    %c0_16 = arith.constant 0 : index
    %36 = vector.load %arg7[%c0_15, %c0_16] : memref<128x256xbf16, #tpu.memory_space<vmem>>, vector<128x256xbf16>
    %cst_17 = arith.constant dense<0.000000e+00> : vector<128x256xf32>
    %37 = tpu.matmul %35, %36, %cst_17 {dimension_numbers = #tpu.dot_dimension_numbers<[1], [0], [0], [1], [0, 0, 1, 1], [], []>} : vector<128x128xbf16>, vector<128x256xbf16>, vector<128x256xf32> -> vector<128x256xf32>
    %c0_18 = arith.constant 0 : index
    %c0_19 = arith.constant 0 : index
    %38 = vector.load %arg8[%c0_18, %c0_19] : memref<1x256xf32, #tpu.memory_space<vmem>>, vector<1x256xf32>
    %39 = vector.broadcast %38 : vector<1x256xf32> to vector<128x256xf32>
    %40 = arith.addf %37, %39 : vector<128x256xf32>
    %cst_20 = arith.constant 0.000000e+00 : f32
    %41 = vector.broadcast %cst_20 : f32 to vector<128x256xf32>
    %42 = arith.maximumf %40, %41 : vector<128x256xf32>
    %43 = arith.truncf %42 : vector<128x256xf32> to vector<128x256xbf16>
    %c0_21 = arith.constant 0 : index
    %c0_22 = arith.constant 0 : index
    %44 = vector.load %arg9[%c0_21, %c0_22] : memref<256x1024xbf16, #tpu.memory_space<vmem>>, vector<256x1024xbf16>
    %cst_23 = arith.constant dense<0.000000e+00> : vector<128x1024xf32>
    %45 = tpu.matmul %43, %44, %cst_23 {dimension_numbers = #tpu.dot_dimension_numbers<[1], [0], [0], [1], [0, 0, 1, 1], [], []>} : vector<128x256xbf16>, vector<256x1024xbf16>, vector<128x1024xf32> -> vector<128x1024xf32>
    %c0_24 = arith.constant 0 : index
    %c0_25 = arith.constant 0 : index
    %46 = vector.load %arg10[%c0_24, %c0_25] : memref<1x1024xf32, #tpu.memory_space<vmem>>, vector<1x1024xf32>
    %47 = vector.broadcast %46 : vector<1x1024xf32> to vector<128x1024xf32>
    %48 = arith.addf %45, %47 : vector<128x1024xf32>
    %cst_26 = arith.constant 0.000000e+00 : f32
    %49 = vector.broadcast %cst_26 : f32 to vector<128x1024xf32>
    %50 = arith.maximumf %48, %49 : vector<128x1024xf32>
    %51 = vector.shape_cast %50 : vector<128x1024xf32> to vector<2x64x1024xf32>
    %cst_27 = arith.constant dense<0xFF800000> : vector<2x1024xf32>
    %52 = vector.multi_reduction <maximumf>, %51, %cst_27 [1] : vector<2x64x1024xf32> to vector<2x1024xf32>
    %c0_28 = arith.constant 0 : index
    %c0_29 = arith.constant 0 : index
    %53 = vector.load %arg16[%c0_28, %c0_29] : memref<2x1024xf32, #tpu.memory_space<vmem>>, vector<2x1024xf32>
    %54 = arith.maximumf %53, %52 : vector<2x1024xf32>
    %c0_30 = arith.constant 0 : index
    %c0_31 = arith.constant 0 : index
    %55 = vector.load %arg16[%c0_30, %c0_31] : memref<2x1024xf32, #tpu.memory_space<vmem>>, vector<2x1024xf32>
    tpu.vector_store %arg16[%c0_30, %c0_31], %54 {strides = array<i32>} : memref<2x1024xf32, #tpu.memory_space<vmem>>, vector<2x1024xf32>,
    %c0_i32_32 = arith.constant 0 : i32
    %56 = arith.cmpi eq, %arg1, %c0_i32_32 : i32
    %57 = arith.extui %56 : i1 to i32
    %c0_i32_33 = arith.constant 0 : i32
    %58 = arith.cmpi ne, %57, %c0_i32_33 : i32
    scf.if %58 {
      %c0_34 = arith.constant 0 : index
      %c0_35 = arith.constant 0 : index
      %59 = vector.load %arg16[%c0_34, %c0_35] : memref<2x1024xf32, #tpu.memory_space<vmem>>, vector<2x1024xf32>
      %60 = arith.truncf %59 : vector<2x1024xf32> to vector<2x1024xbf16>
      %c0_36 = arith.constant 0 : index
      %c0_37 = arith.constant 0 : index
      %61 = vector.load %arg11[%c0_36, %c0_37] : memref<1024x1024xbf16, #tpu.memory_space<vmem>>, vector<1024x1024xbf16>
      %cst_38 = arith.constant dense<0.000000e+00> : vector<2x1024xf32>
      %62 = tpu.matmul %60, %61, %cst_38 {dimension_numbers = #tpu.dot_dimension_numbers<[1], [0], [0], [1], [0, 0, 1, 1], [], []>} : vector<2x1024xbf16>, vector<1024x1024xbf16>, vector<2x1024xf32> -> vector<2x1024xf32>
      %c0_39 = arith.constant 0 : index
      %c0_40 = arith.constant 0 : index
      %63 = vector.load %arg12[%c0_39, %c0_40] : memref<1x1024xf32, #tpu.memory_space<vmem>>, vector<1x1024xf32>
      %64 = vector.broadcast %63 : vector<1x1024xf32> to vector<2x1024xf32>
      %65 = arith.addf %62, %64 : vector<2x1024xf32>
      %cst_41 = arith.constant 0.000000e+00 : f32
      %66 = vector.broadcast %cst_41 : f32 to vector<2x1024xf32>
      %67 = arith.maximumf %65, %66 : vector<2x1024xf32>
      %68 = arith.truncf %67 : vector<2x1024xf32> to vector<2x1024xbf16>
      %c0_42 = arith.constant 0 : index
      %c0_43 = arith.constant 0 : index
      %69 = vector.load %arg13[%c0_42, %c0_43] : memref<1024x128xbf16, #tpu.memory_space<vmem>>, vector<1024x128xbf16>
      %cst_44 = arith.constant dense<0.000000e+00> : vector<2x128xf32>
      %70 = tpu.matmul %68, %69, %cst_44 {dimension_numbers = #tpu.dot_dimension_numbers<[1], [0], [0], [1], [0, 0, 1, 1], [], []>} : vector<2x1024xbf16>, vector<1024x128xbf16>, vector<2x128xf32> -> vector<2x128xf32>
      %c0_45 = arith.constant 0 : index
      %c0_46 = arith.constant 0 : index
      %71 = vector.load %arg14[%c0_45, %c0_46] : memref<1x128xf32, #tpu.memory_space<vmem>>, vector<1x128xf32>
      %72 = vector.broadcast %71 : vector<1x128xf32> to vector<2x128xf32>
      %73 = arith.addf %70, %72 : vector<2x128xf32>
      %cst_47 = arith.constant 0.000000e+00 : f32
      %74 = vector.broadcast %cst_47 : f32 to vector<2x128xf32>
      %75 = arith.maximumf %73, %74 : vector<2x128xf32>
      %c0_48 = arith.constant 0 : index
      %c0_49 = arith.constant 0 : index
      %76 = vector.load %arg15[%c0_48, %c0_49] : memref<2x128xf32, #tpu.memory_space<vmem>>, vector<2x128xf32>
      tpu.vector_store %arg15[%c0_48, %c0_49], %75 {strides = array<i32>} : memref<2x128xf32, #tpu.memory_space<vmem>>, vector<2x128xf32>,
    } else {
    }
    return
  }
  func.func @transform_0(%arg0: i32, %arg1: i32) -> (i32, i32, i32) {
    %c0_i32 = arith.constant 0 : i32
    %c0_i32_0 = arith.constant 0 : i32
    return %arg0, %arg1, %c0_i32 : i32, i32, i32
  }
  func.func @transform_1(%arg0: i32, %arg1: i32) -> (i32, i32) {
    %c0_i32 = arith.constant 0 : i32
    %c0_i32_0 = arith.constant 0 : i32
    %c0_i32_1 = arith.constant 0 : i32
    return %c0_i32, %c0_i32_0 : i32, i32
  }
  func.func @transform_2(%arg0: i32, %arg1: i32) -> (i32, i32) {
    %c0_i32 = arith.constant 0 : i32
    %c0_i32_0 = arith.constant 0 : i32
    %c0_i32_1 = arith.constant 0 : i32
    return %c0_i32, %c0_i32_0 : i32, i32
  }
  func.func @transform_3(%arg0: i32, %arg1: i32) -> (i32, i32) {
    %c0_i32 = arith.constant 0 : i32
    %c0_i32_0 = arith.constant 0 : i32
    %c0_i32_1 = arith.constant 0 : i32
    return %c0_i32, %c0_i32_0 : i32, i32
  }
  func.func @transform_4(%arg0: i32, %arg1: i32) -> (i32, i32) {
    %c0_i32 = arith.constant 0 : i32
    %c0_i32_0 = arith.constant 0 : i32
    %c0_i32_1 = arith.constant 0 : i32
    return %c0_i32, %c0_i32_0 : i32, i32
  }
  func.func @transform_5(%arg0: i32, %arg1: i32) -> (i32, i32) {
    %c0_i32 = arith.constant 0 : i32
    %c0_i32_0 = arith.constant 0 : i32
    %c0_i32_1 = arith.constant 0 : i32
    return %c0_i32, %c0_i32_0 : i32, i32
  }
  func.func @transform_6(%arg0: i32, %arg1: i32) -> (i32, i32) {
    %c0_i32 = arith.constant 0 : i32
    %c0_i32_0 = arith.constant 0 : i32
    %c0_i32_1 = arith.constant 0 : i32
    return %c0_i32, %c0_i32_0 : i32, i32
  }
  func.func @transform_7(%arg0: i32, %arg1: i32) -> (i32, i32) {
    %c0_i32 = arith.constant 0 : i32
    %c0_i32_0 = arith.constant 0 : i32
    %c0_i32_1 = arith.constant 0 : i32
    return %c0_i32, %c0_i32_0 : i32, i32
  }
  func.func @transform_8(%arg0: i32, %arg1: i32) -> (i32, i32) {
    %c0_i32 = arith.constant 0 : i32
    %c0_i32_0 = arith.constant 0 : i32
    %c0_i32_1 = arith.constant 0 : i32
    return %c0_i32, %c0_i32_0 : i32, i32
  }
  func.func @transform_9(%arg0: i32, %arg1: i32) -> (i32, i32) {
    %c0_i32 = arith.constant 0 : i32
    %c0_i32_0 = arith.constant 0 : i32
    %c0_i32_1 = arith.constant 0 : i32
    return %c0_i32, %c0_i32_0 : i32, i32
  }
  func.func @transform_10(%arg0: i32, %arg1: i32) -> (i32, i32) {
    %c0_i32 = arith.constant 0 : i32
    %c0_i32_0 = arith.constant 0 : i32
    %c0_i32_1 = arith.constant 0 : i32
    return %c0_i32, %c0_i32_0 : i32, i32
  }
  func.func @transform_11(%arg0: i32, %arg1: i32) -> (i32, i32) {
    %c0_i32 = arith.constant 0 : i32
    %c0_i32_0 = arith.constant 0 : i32
    %c0_i32_1 = arith.constant 0 : i32
    return %c0_i32, %c0_i32_0 : i32, i32
  }
  func.func @transform_12(%arg0: i32, %arg1: i32) -> (i32, i32) {
    %c0_i32 = arith.constant 0 : i32
    %c0_i32_0 = arith.constant 0 : i32
    %c0_i32_1 = arith.constant 0 : i32
    return %c0_i32, %c0_i32_0 : i32, i32
  }
  func.func @transform_13(%arg0: i32, %arg1: i32) -> (i32, i32) {
    %c0_i32 = arith.constant 0 : i32
    %c0_i32_0 = arith.constant 0 : i32
    return %arg0, %c0_i32 : i32, i32
  }
}

</mosaic_0001>

<llo_original>
// kernel: tpu_custom_call.1
$region0: #{tpu_custom_call.1}
  #allocation0 [shape = 'u32[]', space=smem, size = 0x4, offset = 0x4, fixed_abs, tag = 'smem constant byte address 0x4 - core index']
  #allocation1 [shape = 'u32[144,128]{1,0:T(1,128)}', space=vmem, size = 0x12000, scoped, tag = 'internal scratch']
  #allocation2 [shape = 'f32[2,1024]{1,0:T(2,128)}', space=vmem, size = 0x2000, scoped, tag = 'scratch operand']
  %s0 = inlined_call_operand.vmem [shape: f32[2,64,8], index: 0, kind: input, shape index: {}]
  %s1 = inlined_call_operand.hbm [shape: f32[3,64], index: 1, kind: input, shape index: {}]
  %s2 = inlined_call_operand.hbm [shape: f32[1,64], index: 2, kind: input, shape index: {}]
  %s3 = inlined_call_operand.hbm [shape: bf16[64,128], index: 3, kind: input, shape index: {}]
  %s4 = inlined_call_operand.hbm [shape: f32[1,128], index: 4, kind: input, shape index: {}]
  %s5 = inlined_call_operand.hbm [shape: bf16[128,256], index: 5, kind: input, shape index: {}]
  %s6 = inlined_call_operand.hbm [shape: f32[1,256], index: 6, kind: input, shape index: {}]
  %s7 = inlined_call_operand.hbm [shape: bf16[256,1024], index: 7, kind: input, shape index: {}]
  %s8 = inlined_call_operand.hbm [shape: f32[1,1024], index: 8, kind: input, shape index: {}]
  %s9 = inlined_call_operand.hbm [shape: bf16[1024,1024], index: 9, kind: input, shape index: {}]
  %s10 = inlined_call_operand.hbm [shape: f32[1,1024], index: 10, kind: input, shape index: {}]
  %s11 = inlined_call_operand.hbm [shape: bf16[1024,128], index: 11, kind: input, shape index: {}]
  %s12 = inlined_call_operand.hbm [shape: f32[1,128], index: 12, kind: input, shape index: {}]
  %s13 = inlined_call_operand.hbm [shape: f32[2,128], index: 13, kind: output, shape index: {}]
  %s14 = sld [smem:[#allocation0]]
  $region118: #{tpu_custom_call.1} parent=0
    _
  %s16 = ssub.s32 1, %s14
  %s17 = scalar_select 0, %s16, %s14
  $region1: #{tpu_custom_call.1} parent=0
    #allocation3 [shape = 'u8[2048]{0}', space=vmem, size = 0x800, scoped, tag = 'input window, operand 1, single buffered']
    #allocation4 [shape = 's32[1]{0}', space=sflag, size = 0x4, scoped, tag = 'scoped memory for tpu_custom_call.1']
    #allocation5 [shape = 's32[1]{0}', space=sflag, size = 0x4, scoped, tag = 'scoped memory for tpu_custom_call.1']
    #allocation6 [shape = 'u8[512]{0}', space=vmem, size = 0x400, scoped, tag = 'input window, operand 2, single buffered']
    #allocation7 [shape = 's32[1]{0}', space=sflag, size = 0x4, scoped, tag = 'scoped memory for tpu_custom_call.1']
    #allocation8 [shape = 'u8[16384]{0}', space=vmem, size = 0x4000, scoped, tag = 'input window, operand 3, single buffered']
    #allocation9 [shape = 'u8[512]{0}', space=vmem, size = 0x400, scoped, tag = 'input window, operand 4, single buffered']
    #allocation10 [shape = 's32[1]{0}', space=sflag, size = 0x4, scoped, tag = 'scoped memory for tpu_custom_call.1']
    #allocation11 [shape = 'u8[65536]{0}', space=vmem, size = 0x10000, scoped, tag = 'input window, operand 5, single buffered']
    #allocation12 [shape = 'u8[1024]{0}', space=vmem, size = 0x400, scoped, tag = 'input window, operand 6, single buffered']
    #allocation13 [shape = 's32[1]{0}', space=sflag, size = 0x4, scoped, tag = 'scoped memory for tpu_custom_call.1']
    #allocation14 [shape = 'u8[524288]{0}', space=vmem, size = 0x80000, scoped, tag = 'input window, operand 7, single buffered']
    #allocation15 [shape = 'u8[4096]{0}', space=vmem, size = 0x1000, scoped, tag = 'input window, operand 8, single buffered']
    #allocation16 [shape = 's32[1]{0}', space=sflag, size = 0x4, scoped, tag = 'scoped memory for tpu_custom_call.1']
    #allocation17 [shape = 'u8[2097152]{0}', space=vmem, size = 0x200000, scoped, tag = 'input window, operand 9, single buffered']
    #allocation18 [shape = 'u8[4096]{0}', space=vmem, size = 0x1000, scoped, tag = 'input window, operand 10, single buffered']
    #allocation19 [shape = 's32[1]{0}', space=sflag, size = 0x4, scoped, tag = 'scoped memory for tpu_custom_call.1']
    #allocation20 [shape = 'u8[262144]{0}', space=vmem, size = 0x40000, scoped, tag = 'input window, operand 11, single buffered']
    #allocation21 [shape = 'u8[512]{0}', space=vmem, size = 0x400, scoped, tag = 'input window, operand 12, single buffered']
    #allocation22 [shape = 's32[1]{0}', space=sflag, size = 0x4, scoped, tag = 'scoped memory for tpu_custom_call.1']
    #allocation23 [shape = 'u8[1024]{0}', space=vmem, size = 0x400, scoped, tag = 'output window, operand 0, single buffered']
    %18 = vsyncpa [#allocation4], 0
    %19 = vsyncpa [#allocation7], 0
    %20 = vsyncpa [#allocation10], 0
    %21 = vsyncpa [#allocation13], 0
    %22 = vsyncpa [#allocation16], 0
    %23 = vsyncpa [#allocation19], 0
    %24 = vsyncpa [#allocation22], 0
    %25 = vsyncpa [#allocation5], 0
    // Predicated region
    $region2: #{tpu_custom_call.1} parent=1 // pred_check
      _
    $region3: #{tpu_custom_call.1} parent=1 // pred_check_branch
      %27 = sbr.rel (0) target = $region5
    $region4: #{tpu_custom_call.1} parent=1 // pred_region
      _
    $region5: #{tpu_custom_call.1} parent=1 // pred_fallthru
      _
    // Predicated region
    $region6: #{tpu_custom_call.1} parent=1 // pred_check
      _
    $region7: #{tpu_custom_call.1} parent=1 // pred_check_branch
      %29 = sbr.rel (0) target = $region9
    $region8: #{tpu_custom_call.1} parent=1 // pred_region
      %s31 = ssub.s32 64, 64
      %32 = vsyncadd [#allocation4], %s31
      %s34 = sshll.u32 [#allocation3], 4
      %s35 = int_to_ptr.vmem [resolvable:$true] %s34
      %37 = dma.hbm_to_vmem [thread:$0]  %s1, 64, %s35, [#allocation4]
    $region9: #{tpu_custom_call.1} parent=1 // pred_fallthru
      _
    // Predicated region
    $region10: #{tpu_custom_call.1} parent=1 // pred_check
      _
    $region11: #{tpu_custom_call.1} parent=1 // pred_check_branch
      %39 = sbr.rel (0) target = $region13
    $region12: #{tpu_custom_call.1} parent=1 // pred_region
      %s41 = ssub.s32 16, 16
      %42 = vsyncadd [#allocation7], %s41
      %s44 = sshll.u32 [#allocation6], 4
      %s45 = int_to_ptr.vmem [resolvable:$true] %s44
      %47 = dma.hbm_to_vmem [thread:$0]  %s2, 16, %s45, [#allocation7]
    $region13: #{tpu_custom_call.1} parent=1 // pred_fallthru
      _
    // Predicated region
    $region14: #{tpu_custom_call.1} parent=1 // pred_check
      _
    $region15: #{tpu_custom_call.1} parent=1 // pred_check_branch
      %49 = sbr.rel (0) target = $region17
    $region16: #{tpu_custom_call.1} parent=1 // pred_region
      %s51 = ssub.s32 512, 512
      %52 = vsyncadd [#allocation7], %s51
      %s53 = sshll.u32 [#allocation8], 4
      %s54 = int_to_ptr.vmem [resolvable:$true] %s53
      %59 = dma.hbm_to_vmem [thread:$0]  %s3, 512, %s54, [#allocation7], 64, 64, 4
    $region17: #{tpu_custom_call.1} parent=1 // pred_fallthru
      _
    // Predicated region
    $region18: #{tpu_custom_call.1} parent=1 // pred_check
      _
    $region19: #{tpu_custom_call.1} parent=1 // pred_check_branch
      %61 = sbr.rel (0) target = $region21
    $region20: #{tpu_custom_call.1} parent=1 // pred_region
      %s63 = ssub.s32 16, 16
      %64 = vsyncadd [#allocation10], %s63
      %s66 = sshll.u32 [#allocation9], 4
      %s67 = int_to_ptr.vmem [resolvable:$true] %s66
      %69 = dma.hbm_to_vmem [thread:$0]  %s4, 16, %s67, [#allocation10]
    $region21: #{tpu_custom_call.1} parent=1 // pred_fallthru
      _
    // Predicated region
    $region22: #{tpu_custom_call.1} parent=1 // pred_check
      _
    $region23: #{tpu_custom_call.1} parent=1 // pred_check_branch
      %71 = sbr.rel (0) target = $region25
    $region24: #{tpu_custom_call.1} parent=1 // pred_region
      %s73 = ssub.s32 2048, 2048
      %74 = vsyncadd [#allocation10], %s73
      %s75 = sshll.u32 [#allocation11], 4
      %s76 = int_to_ptr.vmem [resolvable:$true] %s75
      %81 = dma.hbm_to_vmem [thread:$0]  %s5, 2048, %s76, [#allocation10], 128, 128, 8
    $region25: #{tpu_custom_call.1} parent=1 // pred_fallthru
      _
    // Predicated region
    $region26: #{tpu_custom_call.1} parent=1 // pred_check
      _
    $region27: #{tpu_custom_call.1} parent=1 // pred_check_branch
      %83 = sbr.rel (0) target = $region29
    $region28: #{tpu_custom_call.1} parent=1 // pred_region
      %s85 = ssub.s32 32, 32
      %86 = vsyncadd [#allocation13], %s85
      %s88 = sshll.u32 [#allocation12], 4
      %s89 = int_to_ptr.vmem [resolvable:$true] %s88
      %91 = dma.hbm_to_vmem [thread:$0]  %s6, 32, %s89, [#allocation13]
    $region29: #{tpu_custom_call.1} parent=1 // pred_fallthru
      _
    // Predicated region
    $region30: #{tpu_custom_call.1} parent=1 // pred_check
      _
    $region31: #{tpu_custom_call.1} parent=1 // pred_check_branch
      %93 = sbr.rel (0) target = $region33
    $region32: #{tpu_custom_call.1} parent=1 // pred_region
      %s95 = ssub.s32 16384, 16384
      %96 = vsyncadd [#allocation13], %s95
      %s97 = sshll.u32 [#allocation14], 4
      %s98 = int_to_ptr.vmem [resolvable:$true] %s97
      %103 = dma.hbm_to_vmem [thread:$0]  %s7, 16384, %s98, [#allocation13], 512, 512, 32
    $region33: #{tpu_custom_call.1} parent=1 // pred_fallthru
      _
    // Predicated region
    $region34: #{tpu_custom_call.1} parent=1 // pred_check
      _
    $region35: #{tpu_custom_call.1} parent=1 // pred_check_branch
      %105 = sbr.rel (0) target = $region37
    $region36: #{tpu_custom_call.1} parent=1 // pred_region
      %s107 = ssub.s32 128, 128
      %108 = vsyncadd [#allocation16], %s107
      %s110 = sshll.u32 [#allocation15], 4
      %s111 = int_to_ptr.vmem [resolvable:$true] %s110
      %113 = dma.hbm_to_vmem [thread:$0]  %s8, 128, %s111, [#allocation16]
    $region37: #{tpu_custom_call.1} parent=1 // pred_fallthru
      _
    // Predicated region
    $region38: #{tpu_custom_call.1} parent=1 // pred_check
      _
    $region39: #{tpu_custom_call.1} parent=1 // pred_check_branch
      %115 = sbr.rel (0) target = $region41
    $region40: #{tpu_custom_call.1} parent=1 // pred_region
      %s117 = ssub.s32 65536, 65536
      %118 = vsyncadd [#allocation16], %s117
      %s119 = sshll.u32 [#allocation17], 4
      %s120 = int_to_ptr.vmem [resolvable:$true] %s119
      %125 = dma.hbm_to_vmem [thread:$0]  %s9, 65536, %s120, [#allocation16], 512, 512, 32
    $region41: #{tpu_custom_call.1} parent=1 // pred_fallthru
      _
    // Predicated region
    $region42: #{tpu_custom_call.1} parent=1 // pred_check
      _
    $region43: #{tpu_custom_call.1} parent=1 // pred_check_branch
      %127 = sbr.rel (0) target = $region45
    $region44: #{tpu_custom_call.1} parent=1 // pred_region
      %s129 = ssub.s32 128, 128
      %130 = vsyncadd [#allocation19], %s129
      %s132 = sshll.u32 [#allocation18], 4
      %s133 = int_to_ptr.vmem [resolvable:$true] %s132
      %135 = dma.hbm_to_vmem [thread:$0]  %s10, 128, %s133, [#allocation19]
    $region45: #{tpu_custom_call.1} parent=1 // pred_fallthru
      _
    // Predicated region
    $region46: #{tpu_custom_call.1} parent=1 // pred_check
      _
    $region47: #{tpu_custom_call.1} parent=1 // pred_check_branch
      %137 = sbr.rel (0) target = $region49
    $region48: #{tpu_custom_call.1} parent=1 // pred_region
      %s139 = ssub.s32 8192, 8192
      %140 = vsyncadd [#allocation19], %s139
      %s141 = sshll.u32 [#allocation20], 4
      %s142 = int_to_ptr.vmem [resolvable:$true] %s141
      %147 = dma.hbm_to_vmem [thread:$0]  %s11, 8192, %s142, [#allocation19], 64, 64, 4
    $region49: #{tpu_custom_call.1} parent=1 // pred_fallthru
      _
    // Predicated region
    $region50: #{tpu_custom_call.1} parent=1 // pred_check
      _
    $region51: #{tpu_custom_call.1} parent=1 // pred_check_branch
      %149 = sbr.rel (0) target = $region53
    $region52: #{tpu_custom_call.1} parent=1 // pred_region
      %s151 = ssub.s32 16, 16
      %152 = vsyncadd [#allocation22], %s151
      %s154 = sshll.u32 [#allocation21], 4
      %s155 = int_to_ptr.vmem [resolvable:$true] %s154
      %157 = dma.hbm_to_vmem [thread:$0]  %s12, 16, %s155, [#allocation22]
    $region53: #{tpu_custom_call.1} parent=1 // pred_fallthru
      _
    // Predicated region
    $region54: #{tpu_custom_call.1} parent=1 // pred_check
      _
    $region55: #{tpu_custom_call.1} parent=1 // pred_check_branch
      %159 = sbr.rel (0) target = $region57
    $region56: #{tpu_custom_call.1} parent=1 // pred_region
      %160 = dma.done [#allocation4], 64
    $region57: #{tpu_custom_call.1} parent=1 // pred_fallthru
      _
    // Predicated region
    $region58: #{tpu_custom_call.1} parent=1 // pred_check
      _
    $region59: #{tpu_custom_call.1} parent=1 // pred_check_branch
      %162 = sbr.rel (0) target = $region61
    $region60: #{tpu_custom_call.1} parent=1 // pred_region
      %163 = dma.done [#allocation7], 16
    $region61: #{tpu_custom_call.1} parent=1 // pred_fallthru
      _
    // Predicated region
    $region62: #{tpu_custom_call.1} parent=1 // pred_check
      _
    $region63: #{tpu_custom_call.1} parent=1 // pred_check_branch
      %165 = sbr.rel (0) target = $region65
    $region64: #{tpu_custom_call.1} parent=1 // pred_region
      %166 = dma.done [#allocation7], 512
    $region65: #{tpu_custom_call.1} parent=1 // pred_fallthru
      _
    // Predicated region
    $region66: #{tpu_custom_call.1} parent=1 // pred_check
      _
    $region67: #{tpu_custom_call.1} parent=1 // pred_check_branch
      %168 = sbr.rel (0) target = $region69
    $region68: #{tpu_custom_call.1} parent=1 // pred_region
      %169 = dma.done [#allocation10], 16
    $region69: #{tpu_custom_call.1} parent=1 // pred_fallthru
      _
    // Predicated region
    $region70: #{tpu_custom_call.1} parent=1 // pred_check
      _
    $region71: #{tpu_custom_call.1} parent=1 // pred_check_branch
      %171 = sbr.rel (0) target = $region73
    $region72: #{tpu_custom_call.1} parent=1 // pred_region
      %172 = dma.done [#allocation10], 2048
    $region73: #{tpu_custom_call.1} parent=1 // pred_fallthru
      _
    // Predicated region
    $region74: #{tpu_custom_call.1} parent=1 // pred_check
      _
    $region75: #{tpu_custom_call.1} parent=1 // pred_check_branch
      %174 = sbr.rel (0) target = $region77
    $region76: #{tpu_custom_call.1} parent=1 // pred_region
      %175 = dma.done [#allocation13], 32
    $region77: #{tpu_custom_call.1} parent=1 // pred_fallthru
      _
    // Predicated region
    $region78: #{tpu_custom_call.1} parent=1 // pred_check
      _
    $region79: #{tpu_custom_call.1} parent=1 // pred_check_branch
      %177 = sbr.rel (0) target = $region81
    $region80: #{tpu_custom_call.1} parent=1 // pred_region
      %178 = dma.done [#allocation13], 16384
    $region81: #{tpu_custom_call.1} parent=1 // pred_fallthru
      _
    // Predicated region
    $region82: #{tpu_custom_call.1} parent=1 // pred_check
      _
    $region83: #{tpu_custom_call.1} parent=1 // pred_check_branch
      %180 = sbr.rel (0) target = $region85
    $region84: #{tpu_custom_call.1} parent=1 // pred_region
      %181 = dma.done [#allocation16], 128
    $region85: #{tpu_custom_call.1} parent=1 // pred_fallthru
      _
    // Predicated region
    $region86: #{tpu_custom_call.1} parent=1 // pred_check
      _
    $region87: #{tpu_custom_call.1} parent=1 // pred_check_branch
      %183 = sbr.rel (0) target = $region89
    $region88: #{tpu_custom_call.1} parent=1 // pred_region
      %184 = dma.done [#allocation16], 65536
    $region89: #{tpu_custom_call.1} parent=1 // pred_fallthru
      _
    // Predicated region
    $region90: #{tpu_custom_call.1} parent=1 // pred_check
      _
    $region91: #{tpu_custom_call.1} parent=1 // pred_check_branch
      %186 = sbr.rel (0) target = $region93
    $region92: #{tpu_custom_call.1} parent=1 // pred_region
      %187 = dma.done [#allocation19], 128
    $region93: #{tpu_custom_call.1} parent=1 // pred_fallthru
      _
    // Predicated region
    $region94: #{tpu_custom_call.1} parent=1 // pred_check
      _
    $region95: #{tpu_custom_call.1} parent=1 // pred_check_branch
      %189 = sbr.rel (0) target = $region97
    $region96: #{tpu_custom_call.1} parent=1 // pred_region
      %190 = dma.done [#allocation19], 8192
    $region97: #{tpu_custom_call.1} parent=1 // pred_fallthru
      _
    // Predicated region
    $region98: #{tpu_custom_call.1} parent=1 // pred_check
      _
    $region99: #{tpu_custom_call.1} parent=1 // pred_check_branch
      %192 = sbr.rel (0) target = $region101
    $region100: #{tpu_custom_call.1} parent=1 // pred_region
      %193 = dma.done [#allocation22], 16
    $region101: #{tpu_custom_call.1} parent=1 // pred_fallthru
      _
    %p195 = scmp.eq.s32.totalorder 0, 0
    // Predicated region
    $region102: #{tpu_custom_call.1} parent=1 // pred_check
      %p196 = pneg %p195
    $region103: #{tpu_custom_call.1} parent=1 // pred_check_branch
      %198 = sbr.rel (%p196) target = $region105
    $region104: #{tpu_custom_call.1} parent=1 // pred_region
      %199 = vst [vmem:[#allocation2] sm:$0xff] 0.0
      %200 = vst [vmem:[#allocation2 + $0x8] sm:$0xff] 0.0
    $region105: #{tpu_custom_call.1} parent=1 // pred_fallthru
      _
    %v201 = vld [vmem:[%s0] sm:$0xff]
    %v202 = vld [vmem:[%s0 + $0x8] sm:$0xff]
    %v203 = vld [vmem:[%s0 + $0x10] sm:$0xff]
    %v204 = vld [vmem:[%s0 + $0x18] sm:$0xff]
    %v205 = vld [vmem:[%s0 + $0x20] sm:$0xff]
    %v206 = vld [vmem:[%s0 + $0x28] sm:$0xff]
    %v207 = vld [vmem:[%s0 + $0x30] sm:$0xff]
    %v208 = vld [vmem:[%s0 + $0x38] sm:$0xff]
    %v209 = vld [vmem:[%s0 + $0x40] sm:$0xff]
    %v210 = vld [vmem:[%s0 + $0x48] sm:$0xff]
    %v211 = vld [vmem:[%s0 + $0x50] sm:$0xff]
    %v212 = vld [vmem:[%s0 + $0x58] sm:$0xff]
    %v213 = vld [vmem:[%s0 + $0x60] sm:$0xff]
    %v214 = vld [vmem:[%s0 + $0x68] sm:$0xff]
    %v215 = vld [vmem:[%s0 + $0x70] sm:$0xff]
    %v216 = vld [vmem:[%s0 + $0x78] sm:$0xff]
    %v217 = vld [vmem:[#allocation3] sm:$0x1]
    %219 = vset.pattern.permute.xlu0 0
    %220 = vperm.xlu0 %219, %v201
    %v221 = vpop.permute.xlu0 %220
    %224 = vset.pattern.permute.xlu0 0
    %225 = vperm.xlu0 %224, %v202
    %v226 = vpop.permute.xlu0 %225
    %229 = vset.pattern.permute.xlu0 0
    %230 = vperm.xlu0 %229, %v203
    %v231 = vpop.permute.xlu0 %230
    %234 = vset.pattern.permute.xlu0 0
    %235 = vperm.xlu0 %234, %v204
    %v236 = vpop.permute.xlu0 %235
    %239 = vset.pattern.permute.xlu0 0
    %240 = vperm.xlu0 %239, %v205
    %v241 = vpop.permute.xlu0 %240
    %244 = vset.pattern.permute.xlu0 0
    %245 = vperm.xlu0 %244, %v206
    %v246 = vpop.permute.xlu0 %245
    %249 = vset.pattern.permute.xlu0 0
    %250 = vperm.xlu0 %249, %v207
    %v251 = vpop.permute.xlu0 %250
    %254 = vset.pattern.permute.xlu0 0
    %255 = vperm.xlu0 %254, %v208
    %v256 = vpop.permute.xlu0 %255
    %259 = vset.pattern.permute.xlu0 0
    %260 = vperm.xlu0 %259, %v209
    %v261 = vpop.permute.xlu0 %260
    %264 = vset.pattern.permute.xlu0 0
    %265 = vperm.xlu0 %264, %v210
    %v266 = vpop.permute.xlu0 %265
    %269 = vset.pattern.permute.xlu0 0
    %270 = vperm.xlu0 %269, %v211
    %v271 = vpop.permute.xlu0 %270
    %274 = vset.pattern.permute.xlu0 0
    %275 = vperm.xlu0 %274, %v212
    %v276 = vpop.permute.xlu0 %275
    %279 = vset.pattern.permute.xlu0 0
    %280 = vperm.xlu0 %279, %v213
    %v281 = vpop.permute.xlu0 %280
    %284 = vset.pattern.permute.xlu0 0
    %285 = vperm.xlu0 %284, %v214
    %v286 = vpop.permute.xlu0 %285
    %289 = vset.pattern.permute.xlu0 0
    %290 = vperm.xlu0 %289, %v215
    %v291 = vpop.permute.xlu0 %290
    %294 = vset.pattern.permute.xlu0 0
    %295 = vperm.xlu0 %294, %v216
    %v296 = vpop.permute.xlu0 %295
    %v298 = vlaneseq
    %v299 = vshrl.u32 %v298, 7
    %v300 = vsub.s32 0, %v299
    %v301 = vrot.slane %v217, %v300
    %v302 = vmul.f32 %v221, %v301
    %v303 = vmul.f32 %v226, %v301
    %v304 = vmul.f32 %v231, %v301
    %v305 = vmul.f32 %v236, %v301
    %v306 = vmul.f32 %v241, %v301
    %v307 = vmul.f32 %v246, %v301
    %v308 = vmul.f32 %v251, %v301
    %v309 = vmul.f32 %v256, %v301
    %v310 = vmul.f32 %v261, %v301
    %v311 = vmul.f32 %v266, %v301
    %v312 = vmul.f32 %v271, %v301
    %v313 = vmul.f32 %v276, %v301
    %v314 = vmul.f32 %v281, %v301
    %v315 = vmul.f32 %v286, %v301
    %v316 = vmul.f32 %v291, %v301
    %v317 = vmul.f32 %v296, %v301
    %v318 = vld [vmem:[#allocation3 + $0x1] sm:$0x1]
    %319 = vset.pattern.permute.xlu0 1
    %320 = vperm.xlu0 %319, %v201
    %v321 = vpop.permute.xlu0 %320
    %323 = vset.pattern.permute.xlu0 1
    %324 = vperm.xlu0 %323, %v202
    %v325 = vpop.permute.xlu0 %324
    %327 = vset.pattern.permute.xlu0 1
    %328 = vperm.xlu0 %327, %v203
    %v329 = vpop.permute.xlu0 %328
    %331 = vset.pattern.permute.xlu0 1
    %332 = vperm.xlu0 %331, %v204
    %v333 = vpop.permute.xlu0 %332
    %335 = vset.pattern.permute.xlu0 1
    %336 = vperm.xlu0 %335, %v205
    %v337 = vpop.permute.xlu0 %336
    %339 = vset.pattern.permute.xlu0 1
    %340 = vperm.xlu0 %339, %v206
    %v341 = vpop.permute.xlu0 %340
    %343 = vset.pattern.permute.xlu0 1
    %344 = vperm.xlu0 %343, %v207
    %v345 = vpop.permute.xlu0 %344
    %347 = vset.pattern.permute.xlu0 1
    %348 = vperm.xlu0 %347, %v208
    %v349 = vpop.permute.xlu0 %348
    %351 = vset.pattern.permute.xlu0 1
    %352 = vperm.xlu0 %351, %v209
    %v353 = vpop.permute.xlu0 %352
    %355 = vset.pattern.permute.xlu0 1
    %356 = vperm.xlu0 %355, %v210
    %v357 = vpop.permute.xlu0 %356
    %359 = vset.pattern.permute.xlu0 1
    %360 = vperm.xlu0 %359, %v211
    %v361 = vpop.permute.xlu0 %360
    %363 = vset.pattern.permute.xlu0 1
    %364 = vperm.xlu0 %363, %v212
    %v365 = vpop.permute.xlu0 %364
    %367 = vset.pattern.permute.xlu0 1
    %368 = vperm.xlu0 %367, %v213
    %v369 = vpop.permute.xlu0 %368
    %371 = vset.pattern.permute.xlu0 1
    %372 = vperm.xlu0 %371, %v214
    %v373 = vpop.permute.xlu0 %372
    %375 = vset.pattern.permute.xlu0 1
    %376 = vperm.xlu0 %375, %v215
    %v377 = vpop.permute.xlu0 %376
    %379 = vset.pattern.permute.xlu0 1
    %380 = vperm.xlu0 %379, %v216
    %v381 = vpop.permute.xlu0 %380
    %v383 = vlaneseq
    %v384 = vshrl.u32 %v383, 7
    %v385 = vsub.s32 0, %v384
    %v386 = vrot.slane %v318, %v385
    %v387 = vmul.f32 %v321, %v386
    %v388 = vmul.f32 %v325, %v386
    %v389 = vmul.f32 %v329, %v386
    %v390 = vmul.f32 %v333, %v386
    %v391 = vmul.f32 %v337, %v386
    %v392 = vmul.f32 %v341, %v386
    %v393 = vmul.f32 %v345, %v386
    %v394 = vmul.f32 %v349, %v386
    %v395 = vmul.f32 %v353, %v386
    %v396 = vmul.f32 %v357, %v386
    %v397 = vmul.f32 %v361, %v386
    %v398 = vmul.f32 %v365, %v386
    %v399 = vmul.f32 %v369, %v386
    %v400 = vmul.f32 %v373, %v386
    %v401 = vmul.f32 %v377, %v386
    %v402 = vmul.f32 %v381, %v386
    %v403 = vadd.f32 %v302, %v387
    %v404 = vadd.f32 %v303, %v388
    %v405 = vadd.f32 %v304, %v389
    %v406 = vadd.f32 %v305, %v390
    %v407 = vadd.f32 %v306, %v391
    %v408 = vadd.f32 %v307, %v392
    %v409 = vadd.f32 %v308, %v393
    %v410 = vadd.f32 %v309, %v394
    %v411 = vadd.f32 %v310, %v395
    %v412 = vadd.f32 %v311, %v396
    %v413 = vadd.f32 %v312, %v397
    %v414 = vadd.f32 %v313, %v398
    %v415 = vadd.f32 %v314, %v399
    %v416 = vadd.f32 %v315, %v400
    %v417 = vadd.f32 %v316, %v401
    %v418 = vadd.f32 %v317, %v402
    %v419 = vld [vmem:[#allocation3 + $0x2] sm:$0x1]
    %420 = vset.pattern.permute.xlu0 2
    %421 = vperm.xlu0 %420, %v201
    %v422 = vpop.permute.xlu0 %421
    %424 = vset.pattern.permute.xlu0 2
    %425 = vperm.xlu0 %424, %v202
    %v426 = vpop.permute.xlu0 %425
    %428 = vset.pattern.permute.xlu0 2
    %429 = vperm.xlu0 %428, %v203
    %v430 = vpop.permute.xlu0 %429
    %432 = vset.pattern.permute.xlu0 2
    %433 = vperm.xlu0 %432, %v204
    %v434 = vpop.permute.xlu0 %433
    %436 = vset.pattern.permute.xlu0 2
    %437 = vperm.xlu0 %436, %v205
    %v438 = vpop.permute.xlu0 %437
    %440 = vset.pattern.permute.xlu0 2
    %441 = vperm.xlu0 %440, %v206
    %v442 = vpop.permute.xlu0 %441
    %444 = vset.pattern.permute.xlu0 2
    %445 = vperm.xlu0 %444, %v207
    %v446 = vpop.permute.xlu0 %445
    %448 = vset.pattern.permute.xlu0 2
    %449 = vperm.xlu0 %448, %v208
    %v450 = vpop.permute.xlu0 %449
    %452 = vset.pattern.permute.xlu0 2
    %453 = vperm.xlu0 %452, %v209
    %v454 = vpop.permute.xlu0 %453
    %456 = vset.pattern.permute.xlu0 2
    %457 = vperm.xlu0 %456, %v210
    %v458 = vpop.permute.xlu0 %457
    %460 = vset.pattern.permute.xlu0 2
    %461 = vperm.xlu0 %460, %v211
    %v462 = vpop.permute.xlu0 %461
    %464 = vset.pattern.permute.xlu0 2
    %465 = vperm.xlu0 %464, %v212
    %v466 = vpop.permute.xlu0 %465
    %468 = vset.pattern.permute.xlu0 2
    %469 = vperm.xlu0 %468, %v213
    %v470 = vpop.permute.xlu0 %469
    %472 = vset.pattern.permute.xlu0 2
    %473 = vperm.xlu0 %472, %v214
    %v474 = vpop.permute.xlu0 %473
    %476 = vset.pattern.permute.xlu0 2
    %477 = vperm.xlu0 %476, %v215
    %v478 = vpop.permute.xlu0 %477
    %480 = vset.pattern.permute.xlu0 2
    %481 = vperm.xlu0 %480, %v216
    %v482 = vpop.permute.xlu0 %481
    %v484 = vlaneseq
    %v485 = vshrl.u32 %v484, 7
    %v486 = vsub.s32 0, %v485
    %v487 = vrot.slane %v419, %v486
    %v488 = vmul.f32 %v422, %v487
    %v489 = vmul.f32 %v426, %v487
    %v490 = vmul.f32 %v430, %v487
    %v491 = vmul.f32 %v434, %v487
    %v492 = vmul.f32 %v438, %v487
    %v493 = vmul.f32 %v442, %v487
    %v494 = vmul.f32 %v446, %v487
    %v495 = vmul.f32 %v450, %v487
    %v496 = vmul.f32 %v454, %v487
    %v497 = vmul.f32 %v458, %v487
    %v498 = vmul.f32 %v462, %v487
    %v499 = vmul.f32 %v466, %v487
    %v500 = vmul.f32 %v470, %v487
    %v501 = vmul.f32 %v474, %v487
    %v502 = vmul.f32 %v478, %v487
    %v503 = vmul.f32 %v482, %v487
    %v504 = vadd.f32 %v403, %v488
    %v505 = vadd.f32 %v404, %v489
    %v506 = vadd.f32 %v405, %v490
    %v507 = vadd.f32 %v406, %v491
    %v508 = vadd.f32 %v407, %v492
    %v509 = vadd.f32 %v408, %v493
    %v510 = vadd.f32 %v409, %v494
    %v511 = vadd.f32 %v410, %v495
    %v512 = vadd.f32 %v411, %v496
    %v513 = vadd.f32 %v412, %v497
    %v514 = vadd.f32 %v413, %v498
    %v515 = vadd.f32 %v414, %v499
    %v516 = vadd.f32 %v415, %v500
    %v517 = vadd.f32 %v416, %v501
    %v518 = vadd.f32 %v417, %v502
    %v519 = vadd.f32 %v418, %v503
    %v520 = vld [vmem:[#allocation6] sm:$0x1]
    %v522 = vlaneseq
    %v523 = vshrl.u32 %v522, 7
    %v524 = vsub.s32 0, %v523
    %v525 = vrot.slane %v520, %v524
    %v527 = vadd.f32 %v504, %v525
    %v528 = vadd.f32 %v505, %v525
    %v529 = vadd.f32 %v506, %v525
    %v530 = vadd.f32 %v507, %v525
    %v531 = vadd.f32 %v508, %v525
    %v532 = vadd.f32 %v509, %v525
    %v533 = vadd.f32 %v510, %v525
    %v534 = vadd.f32 %v511, %v525
    %v535 = vadd.f32 %v512, %v525
    %v536 = vadd.f32 %v513, %v525
    %v537 = vadd.f32 %v514, %v525
    %v538 = vadd.f32 %v515, %v525
    %v539 = vadd.f32 %v516, %v525
    %v540 = vadd.f32 %v517, %v525
    %v541 = vadd.f32 %v518, %v525
    %v542 = vadd.f32 %v519, %v525
    %v543 = vmax.f32 %v527, 0.0
    %v544 = vmax.f32 %v528, 0.0
    %v545 = vmax.f32 %v529, 0.0
    %v546 = vmax.f32 %v530, 0.0
    %v547 = vmax.f32 %v531, 0.0
    %v548 = vmax.f32 %v532, 0.0
    %v549 = vmax.f32 %v533, 0.0
    %v550 = vmax.f32 %v534, 0.0
    %v551 = vmax.f32 %v535, 0.0
    %v552 = vmax.f32 %v536, 0.0
    %v553 = vmax.f32 %v537, 0.0
    %v554 = vmax.f32 %v538, 0.0
    %v555 = vmax.f32 %v539, 0.0
    %v556 = vmax.f32 %v540, 0.0
    %v557 = vmax.f32 %v541, 0.0
    %v558 = vmax.f32 %v542, 0.0
    %v559 = vpack.c.bf16 %v544, %v543
    %v560 = vpack.c.bf16 %v546, %v545
    %v561 = vpack.c.bf16 %v548, %v547
    %v562 = vpack.c.bf16 %v550, %v549
    %v563 = vpack.c.bf16 %v552, %v551
    %v564 = vpack.c.bf16 %v554, %v553
    %v565 = vpack.c.bf16 %v556, %v555
    %v566 = vpack.c.bf16 %v558, %v557
    %v567 = vld [vmem:[#allocation8] sm:$0xf]
    %v568 = vld [vmem:[#allocation8 + $0x4] sm:$0xf]
    %v569 = vld [vmem:[#allocation8 + $0x8] sm:$0xf]
    %v570 = vld [vmem:[#allocation8 + $0xc] sm:$0xf]
    %v571 = vld [vmem:[#allocation8 + $0x10] sm:$0xf]
    %v572 = vld [vmem:[#allocation8 + $0x14] sm:$0xf]
    %v573 = vld [vmem:[#allocation8 + $0x18] sm:$0xf]
    %v574 = vld [vmem:[#allocation8 + $0x1c] sm:$0xf]
    %v575 = vld [vmem:[#allocation9] sm:$0x1]
    %v577 = vlaneseq
    %v578 = vshrl.u32 %v577, 7
    %v579 = vsub.s32 0, %v578
    %v580 = vrot.slane %v575, %v579
    %v590 = vunpack.c.l.b16 %v567
    %v591 = vunpack.c.l.b16 %v568
    %v592 = vunpack.c.l.b16 %v569
    %v593 = vunpack.c.l.b16 %v570
    %v594 = vunpack.c.l.b16 %v571
    %v595 = vunpack.c.l.b16 %v572
    %v596 = vunpack.c.l.b16 %v573
    %v597 = vunpack.c.l.b16 %v574
    %v598 = vpack.c.b16 %v591, %v590
    %v599 = vpack.c.b16 %v593, %v592
    %v600 = vpack.c.b16 %v595, %v594
    %v601 = vpack.c.b16 %v597, %v596
    %vm606 = vcmask 523264
    %v608 = vsel %vm606, %v559, 0
    %v611 = vsel %vm606, %v560, 0
    %v614 = vsel %vm606, %v561, 0
    %v617 = vsel %vm606, %v562, 0
    %v620 = vsel %vm606, %v563, 0
    %v623 = vsel %vm606, %v564, 0
    %v626 = vsel %vm606, %v565, 0
    %v629 = vsel %vm606, %v566, 0
    %631 = vmatprep.subr.bf16.mxu0 0
    %632 = vmatpush1.bf16.msra.mxu0 0
    %633 = vmatprep.subr.bf16.mxu0 0
    %634 = vmatpush1.bf16.msra.mxu0 0
    %635 = vmatprep.subr.bf16.mxu0 0
    %636 = vmatpush1.bf16.msra.mxu0 0
    %637 = vmatprep.subr.bf16.mxu0 0
    %638 = vmatpush1.bf16.msra.mxu0 0
    %639 = vmatprep.subr.bf16.mxu0 0
    %640 = vmatpush1.bf16.msra.mxu0 %v601
    %641 = vmatprep.subr.bf16.mxu0 0
    %642 = vmatpush1.bf16.msra.mxu0 %v600
    %643 = vmatprep.subr.bf16.mxu0 0
    %644 = vmatpush1.bf16.msra.mxu0 %v599
    %645 = vmatprep.subr.bf16.mxu0 0
    %646 = vmatpush1.bf16.msra.mxu0 %v598
    %647 = vmatprep.subr.bf16.mxu0 0
    %648 = vmatpush2.bf16.msra.mxu0 0
    %649 = vmatprep.subr.bf16.mxu0 0
    %650 = vmatpush2.bf16.msra.mxu0 0
    %651 = vmatprep.subr.bf16.mxu0 0
    %652 = vmatpush2.bf16.msra.mxu0 0
    %653 = vmatprep.subr.bf16.mxu0 0
    %654 = vmatpush2.bf16.msra.mxu0 0
    %655 = vmatprep.subr.bf16.mxu0 0
    %656 = vmatpush2.bf16.msra.mxu0 0
    %657 = vmatprep.subr.bf16.mxu0 0
    %658 = vmatpush2.bf16.msra.mxu0 0
    %659 = vmatprep.subr.bf16.mxu0 0
    %660 = vmatpush2.bf16.msra.mxu0 0
    %661 = vmatprep.subr.bf16.mxu0 0
    %662 = vmatpush2.bf16.msra.mxu0 0
    %663 = vmatprep.mubr.bf16.mxu0 0
    %664 = vmatmul.mubr.bf16.gmra.mxu0 %v608
    %v665 = vpop.f32.mrf.mxu0
    %v666 = vadd.f32 %v580, %v665
    %v667 = vpop.f32.mrf.mxu0
    %v668 = vpop.f32.mrf.mxu0
    %v669 = vadd.f32 %v580, %v668
    %v670 = vpop.f32.mrf.mxu0
    %671 = vmatprep.mubr.bf16.mxu0 0
    %672 = vmatmul.mubr.bf16.gmra.mxu0 %v611
    %v673 = vpop.f32.mrf.mxu0
    %v674 = vadd.f32 %v580, %v673
    %v675 = vpop.f32.mrf.mxu0
    %v676 = vpop.f32.mrf.mxu0
    %v677 = vadd.f32 %v580, %v676
    %v678 = vpop.f32.mrf.mxu0
    %679 = vmatprep.mubr.bf16.mxu0 0
    %680 = vmatmul.mubr.bf16.gmra.mxu0 %v614
    %v681 = vpop.f32.mrf.mxu0
    %v682 = vadd.f32 %v580, %v681
    %v683 = vpop.f32.mrf.mxu0
    %v684 = vpop.f32.mrf.mxu0
    %v685 = vadd.f32 %v580, %v684
    %v686 = vpop.f32.mrf.mxu0
    %687 = vmatprep.mubr.bf16.mxu0 0
    %688 = vmatmul.mubr.bf16.gmra.mxu0 %v617
    %v689 = vpop.f32.mrf.mxu0
    %v690 = vadd.f32 %v580, %v689
    %v691 = vpop.f32.mrf.mxu0
    %v692 = vpop.f32.mrf.mxu0
    %v693 = vadd.f32 %v580, %v692
    %v694 = vpop.f32.mrf.mxu0
    %695 = vmatprep.mubr.bf16.mxu0 0
    %696 = vmatmul.mubr.bf16.gmra.mxu0 %v620
    %v697 = vpop.f32.mrf.mxu0
    %v698 = vadd.f32 %v580, %v697
    %v699 = vpop.f32.mrf.mxu0
    %v700 = vpop.f32.mrf.mxu0
    %v701 = vadd.f32 %v580, %v700
    %v702 = vpop.f32.mrf.mxu0
    %703 = vmatprep.mubr.bf16.mxu0 0
    %704 = vmatmul.mubr.bf16.gmra.mxu0 %v623
    %v705 = vpop.f32.mrf.mxu0
    %v706 = vadd.f32 %v580, %v705
    %v707 = vpop.f32.mrf.mxu0
    %v708 = vpop.f32.mrf.mxu0
    %v709 = vadd.f32 %v580, %v708
    %v710 = vpop.f32.mrf.mxu0
    %711 = vmatprep.mubr.bf16.mxu0 0
    %712 = vmatmul.mubr.bf16.gmra.mxu0 %v626
    %v713 = vpop.f32.mrf.mxu0
    %v714 = vadd.f32 %v580, %v713
    %v715 = vpop.f32.mrf.mxu0
    %v716 = vpop.f32.mrf.mxu0
    %v717 = vadd.f32 %v580, %v716
    %v718 = vpop.f32.mrf.mxu0
    %719 = vmatprep.mubr.bf16.mxu0 0
    %720 = vmatmul.mubr.bf16.gmra.mxu0 %v629
    %v721 = vpop.f32.mrf.mxu0
    %v722 = vadd.f32 %v580, %v721
    %v723 = vpop.f32.mrf.mxu0
    %v724 = vpop.f32.mrf.mxu0
    %v725 = vadd.f32 %v580, %v724
    %v726 = vpop.f32.mrf.mxu0
    %727 = vdwg.mxu0
    %v728 = vmax.f32 %v666, 0.0
    %v729 = vmax.f32 %v669, 0.0
    %v730 = vmax.f32 %v674, 0.0
    %v731 = vmax.f32 %v677, 0.0
    %v732 = vmax.f32 %v682, 0.0
    %v733 = vmax.f32 %v685, 0.0
    %v734 = vmax.f32 %v690, 0.0
    %v735 = vmax.f32 %v693, 0.0
    %v736 = vmax.f32 %v698, 0.0
    %v737 = vmax.f32 %v701, 0.0
    %v738 = vmax.f32 %v706, 0.0
    %v739 = vmax.f32 %v709, 0.0
    %v740 = vmax.f32 %v714, 0.0
    %v741 = vmax.f32 %v717, 0.0
    %v742 = vmax.f32 %v722, 0.0
    %v743 = vmax.f32 %v725, 0.0
    %v744 = vpack.c.bf16 %v729, %v728
    %v745 = vpack.c.bf16 %v731, %v730
    %v746 = vpack.c.bf16 %v733, %v732
    %v747 = vpack.c.bf16 %v735, %v734
    %v748 = vpack.c.bf16 %v737, %v736
    %v749 = vpack.c.bf16 %v739, %v738
    %v750 = vpack.c.bf16 %v741, %v740
    %v751 = vpack.c.bf16 %v743, %v742
    %v752 = vld [vmem:[#allocation11] sm:$0xff]
    %v753 = vld [vmem:[#allocation11 + $0x8] sm:$0xff]
    %v754 = vld [vmem:[#allocation11 + $0x10] sm:$0xff]
    %v755 = vld [vmem:[#allocation11 + $0x18] sm:$0xff]
    %v756 = vld [vmem:[#allocation11 + $0x20] sm:$0xff]
    %v757 = vld [vmem:[#allocation11 + $0x28] sm:$0xff]
    %v758 = vld [vmem:[#allocation11 + $0x30] sm:$0xff]
    %v759 = vld [vmem:[#allocation11 + $0x38] sm:$0xff]
    %v760 = vld [vmem:[#allocation11 + $0x40] sm:$0xff]
    %v761 = vld [vmem:[#allocation11 + $0x48] sm:$0xff]
    %v762 = vld [vmem:[#allocation11 + $0x50] sm:$0xff]
    %v763 = vld [vmem:[#allocation11 + $0x58] sm:$0xff]
    %v764 = vld [vmem:[#allocation11 + $0x60] sm:$0xff]
    %v765 = vld [vmem:[#allocation11 + $0x68] sm:$0xff]
    %v766 = vld [vmem:[#allocation11 + $0x70] sm:$0xff]
    %v767 = vld [vmem:[#allocation11 + $0x78] sm:$0xff]
    %v768 = vld [vmem:[#allocation12] sm:$0x3]
    %v770 = vlaneseq
    %v771 = vshrl.u32 %v770, 7
    %v772 = vsub.s32 0, %v771
    %v773 = vrot.slane %v768, %v772
    %v774 = vlaneseq
    %v775 = vshrl.u32 %v774, 7
    %v776 = vsub.s32 1, %v775
    %v777 = vrot.slane %v768, %v776
    %v796 = vunpack.c.l.b16 %v752
    %v797 = vunpack.c.h.b16 %v752
    %v798 = vunpack.c.l.b16 %v753
    %v799 = vunpack.c.h.b16 %v753
    %v800 = vunpack.c.l.b16 %v754
    %v801 = vunpack.c.h.b16 %v754
    %v802 = vunpack.c.l.b16 %v755
    %v803 = vunpack.c.h.b16 %v755
    %v804 = vunpack.c.l.b16 %v756
    %v805 = vunpack.c.h.b16 %v756
    %v806 = vunpack.c.l.b16 %v757
    %v807 = vunpack.c.h.b16 %v757
    %v808 = vunpack.c.l.b16 %v758
    %v809 = vunpack.c.h.b16 %v758
    %v810 = vunpack.c.l.b16 %v759
    %v811 = vunpack.c.h.b16 %v759
    %v812 = vunpack.c.l.b16 %v760
    %v813 = vunpack.c.h.b16 %v760
    %v814 = vunpack.c.l.b16 %v761
    %v815 = vunpack.c.h.b16 %v761
    %v816 = vunpack.c.l.b16 %v762
    %v817 = vunpack.c.h.b16 %v762
    %v818 = vunpack.c.l.b16 %v763
    %v819 = vunpack.c.h.b16 %v763
    %v820 = vunpack.c.l.b16 %v764
    %v821 = vunpack.c.h.b16 %v764
    %v822 = vunpack.c.l.b16 %v765
    %v823 = vunpack.c.h.b16 %v765
    %v824 = vunpack.c.l.b16 %v766
    %v825 = vunpack.c.h.b16 %v766
    %v826 = vunpack.c.l.b16 %v767
    %v827 = vunpack.c.h.b16 %v767
    %v828 = vpack.c.b16 %v798, %v796
    %v829 = vpack.c.b16 %v799, %v797
    %v830 = vpack.c.b16 %v802, %v800
    %v831 = vpack.c.b16 %v803, %v801
    %v832 = vpack.c.b16 %v806, %v804
    %v833 = vpack.c.b16 %v807, %v805
    %v834 = vpack.c.b16 %v810, %v808
    %v835 = vpack.c.b16 %v811, %v809
    %v836 = vpack.c.b16 %v814, %v812
    %v837 = vpack.c.b16 %v815, %v813
    %v838 = vpack.c.b16 %v818, %v816
    %v839 = vpack.c.b16 %v819, %v817
    %v840 = vpack.c.b16 %v822, %v820
    %v841 = vpack.c.b16 %v823, %v821
    %v842 = vpack.c.b16 %v826, %v824
    %v843 = vpack.c.b16 %v827, %v825
    %860 = vmatprep.subr.bf16.mxu0 %v843
    %861 = vmatpush1.bf16.msra.mxu0 %v842
    %862 = vmatprep.subr.bf16.mxu0 %v841
    %863 = vmatpush1.bf16.msra.mxu0 %v840
    %864 = vmatprep.subr.bf16.mxu0 %v839
    %865 = vmatpush1.bf16.msra.mxu0 %v838
    %866 = vmatprep.subr.bf16.mxu0 %v837
    %867 = vmatpush1.bf16.msra.mxu0 %v836
    %868 = vmatprep.subr.bf16.mxu0 %v835
    %869 = vmatpush1.bf16.msra.mxu0 %v834
    %870 = vmatprep.subr.bf16.mxu0 %v833
    %871 = vmatpush1.bf16.msra.mxu0 %v832
    %872 = vmatprep.subr.bf16.mxu0 %v831
    %873 = vmatpush1.bf16.msra.mxu0 %v830
    %874 = vmatprep.subr.bf16.mxu0 %v829
    %875 = vmatpush1.bf16.msra.mxu0 %v828
    %876 = vmatprep.subr.bf16.mxu0 0
    %877 = vmatpush2.bf16.msra.mxu0 0
    %878 = vmatprep.subr.bf16.mxu0 0
    %879 = vmatpush2.bf16.msra.mxu0 0
    %880 = vmatprep.subr.bf16.mxu0 0
    %881 = vmatpush2.bf16.msra.mxu0 0
    %882 = vmatprep.subr.bf16.mxu0 0
    %883 = vmatpush2.bf16.msra.mxu0 0
    %884 = vmatprep.subr.bf16.mxu0 0
    %885 = vmatpush2.bf16.msra.mxu0 0
    %886 = vmatprep.subr.bf16.mxu0 0
    %887 = vmatpush2.bf16.msra.mxu0 0
    %888 = vmatprep.subr.bf16.mxu0 0
    %889 = vmatpush2.bf16.msra.mxu0 0
    %890 = vmatprep.subr.bf16.mxu0 0
    %891 = vmatpush2.bf16.msra.mxu0 0
    %892 = vmatprep.mubr.bf16.mxu0 0
    %893 = vmatmul.mubr.bf16.gmra.mxu0 %v744
    %v894 = vpop.f32.mrf.mxu0
    %v895 = vadd.f32 %v773, %v894
    %v896 = vpop.f32.mrf.mxu0
    %v897 = vadd.f32 %v777, %v896
    %v898 = vpop.f32.mrf.mxu0
    %v899 = vadd.f32 %v773, %v898
    %v900 = vpop.f32.mrf.mxu0
    %v901 = vadd.f32 %v777, %v900
    %902 = vmatprep.mubr.bf16.mxu0 0
    %903 = vmatmul.mubr.bf16.gmra.mxu0 %v745
    %v904 = vpop.f32.mrf.mxu0
    %v905 = vadd.f32 %v773, %v904
    %v906 = vpop.f32.mrf.mxu0
    %v907 = vadd.f32 %v777, %v906
    %v908 = vpop.f32.mrf.mxu0
    %v909 = vadd.f32 %v773, %v908
    %v910 = vpop.f32.mrf.mxu0
    %v911 = vadd.f32 %v777, %v910
    %912 = vmatprep.mubr.bf16.mxu0 0
    %913 = vmatmul.mubr.bf16.gmra.mxu0 %v746
    %v914 = vpop.f32.mrf.mxu0
    %v915 = vadd.f32 %v773, %v914
    %v916 = vpop.f32.mrf.mxu0
    %v917 = vadd.f32 %v777, %v916
    %v918 = vpop.f32.mrf.mxu0
    %v919 = vadd.f32 %v773, %v918
    %v920 = vpop.f32.mrf.mxu0
    %v921 = vadd.f32 %v777, %v920
    %922 = vmatprep.mubr.bf16.mxu0 0
    %923 = vmatmul.mubr.bf16.gmra.mxu0 %v747
    %v924 = vpop.f32.mrf.mxu0
    %v925 = vadd.f32 %v773, %v924
    %v926 = vpop.f32.mrf.mxu0
    %v927 = vadd.f32 %v777, %v926
    %v928 = vpop.f32.mrf.mxu0
    %v929 = vadd.f32 %v773, %v928
    %v930 = vpop.f32.mrf.mxu0
    %v931 = vadd.f32 %v777, %v930
    %932 = vmatprep.mubr.bf16.mxu0 0
    %933 = vmatmul.mubr.bf16.gmra.mxu0 %v748
    %v934 = vpop.f32.mrf.mxu0
    %v935 = vadd.f32 %v773, %v934
    %v936 = vpop.f32.mrf.mxu0
    %v937 = vadd.f32 %v777, %v936
    %v938 = vpop.f32.mrf.mxu0
    %v939 = vadd.f32 %v773, %v938
    %v940 = vpop.f32.mrf.mxu0
    %v941 = vadd.f32 %v777, %v940
    %942 = vmatprep.mubr.bf16.mxu0 0
    %943 = vmatmul.mubr.bf16.gmra.mxu0 %v749
    %v944 = vpop.f32.mrf.mxu0
    %v945 = vadd.f32 %v773, %v944
    %v946 = vpop.f32.mrf.mxu0
    %v947 = vadd.f32 %v777, %v946
    %v948 = vpop.f32.mrf.mxu0
    %v949 = vadd.f32 %v773, %v948
    %v950 = vpop.f32.mrf.mxu0
    %v951 = vadd.f32 %v777, %v950
    %952 = vmatprep.mubr.bf16.mxu0 0
    %953 = vmatmul.mubr.bf16.gmra.mxu0 %v750
    %v954 = vpop.f32.mrf.mxu0
    %v955 = vadd.f32 %v773, %v954
    %v956 = vpop.f32.mrf.mxu0
    %v957 = vadd.f32 %v777, %v956
    %v958 = vpop.f32.mrf.mxu0
    %v959 = vadd.f32 %v773, %v958
    %v960 = vpop.f32.mrf.mxu0
    %v961 = vadd.f32 %v777, %v960
    %962 = vmatprep.mubr.bf16.mxu0 0
    %963 = vmatmul.mubr.bf16.gmra.mxu0 %v751
    %v964 = vpop.f32.mrf.mxu0
    %v965 = vadd.f32 %v773, %v964
    %v966 = vpop.f32.mrf.mxu0
    %v967 = vadd.f32 %v777, %v966
    %v968 = vpop.f32.mrf.mxu0
    %v969 = vadd.f32 %v773, %v968
    %v970 = vpop.f32.mrf.mxu0
    %v971 = vadd.f32 %v777, %v970
    %972 = vdwg.mxu0
    %v973 = vmax.f32 %v895, 0.0
    %v974 = vmax.f32 %v897, 0.0
    %v975 = vmax.f32 %v899, 0.0
    %v976 = vmax.f32 %v901, 0.0
    %v977 = vmax.f32 %v905, 0.0
    %v978 = vmax.f32 %v907, 0.0
    %v979 = vmax.f32 %v909, 0.0
    %v980 = vmax.f32 %v911, 0.0
    %v981 = vmax.f32 %v915, 0.0
    %v982 = vmax.f32 %v917, 0.0
    %v983 = vmax.f32 %v919, 0.0
    %v984 = vmax.f32 %v921, 0.0
    %v985 = vmax.f32 %v925, 0.0
    %v986 = vmax.f32 %v927, 0.0
    %v987 = vmax.f32 %v929, 0.0
    %v988 = vmax.f32 %v931, 0.0
    %v989 = vmax.f32 %v935, 0.0
    %v990 = vmax.f32 %v937, 0.0
    %v991 = vmax.f32 %v939, 0.0
    %v992 = vmax.f32 %v941, 0.0
    %v993 = vmax.f32 %v945, 0.0
    %v994 = vmax.f32 %v947, 0.0
    %v995 = vmax.f32 %v949, 0.0
    %v996 = vmax.f32 %v951, 0.0
    %v997 = vmax.f32 %v955, 0.0
    %v998 = vmax.f32 %v957, 0.0
    %v999 = vmax.f32 %v959, 0.0
    %v1000 = vmax.f32 %v961, 0.0
    %v1001 = vmax.f32 %v965, 0.0
    %v1002 = vmax.f32 %v967, 0.0
    %v1003 = vmax.f32 %v969, 0.0
    %v1004 = vmax.f32 %v971, 0.0
    %v1005 = vpack.c.bf16 %v975, %v973
    %v1006 = vpack.c.bf16 %v976, %v974
    %v1007 = vpack.c.bf16 %v979, %v977
    %v1008 = vpack.c.bf16 %v980, %v978
    %v1009 = vpack.c.bf16 %v983, %v981
    %v1010 = vpack.c.bf16 %v984, %v982
    %v1011 = vpack.c.bf16 %v987, %v985
    %v1012 = vpack.c.bf16 %v988, %v986
    %v1013 = vpack.c.bf16 %v991, %v989
    %v1014 = vpack.c.bf16 %v992, %v990
    %v1015 = vpack.c.bf16 %v995, %v993
    %v1016 = vpack.c.bf16 %v996, %v994
    %v1017 = vpack.c.bf16 %v999, %v997
    %v1018 = vpack.c.bf16 %v1000, %v998
    %v1019 = vpack.c.bf16 %v1003, %v1001
    %v1020 = vpack.c.bf16 %v1004, %v1002
    %v1021 = vld [vmem:[#allocation14] sm:$0xff]
    %v1022 = vld [vmem:[#allocation14 + $0x8] sm:$0xff]
    %v1023 = vld [vmem:[#allocation14 + $0x10] sm:$0xff]
    %v1024 = vld [vmem:[#allocation14 + $0x18] sm:$0xff]
    %v1025 = vld [vmem:[#allocation14 + $0x20] sm:$0xff]
    %v1026 = vld [vmem:[#allocation14 + $0x28] sm:$0xff]
    %v1027 = vld [vmem:[#allocation14 + $0x30] sm:$0xff]
    %v1028 = vld [vmem:[#allocation14 + $0x38] sm:$0xff]
    %v1029 = vld [vmem:[#allocation14 + $0x40] sm:$0xff]
    %v1030 = vld [vmem:[#allocation14 + $0x48] sm:$0xff]
    %v1031 = vld [vmem:[#allocation14 + $0x50] sm:$0xff]
    %v1032 = vld [vmem:[#allocation14 + $0x58] sm:$0xff]
    %v1033 = vld [vmem:[#allocation14 + $0x60] sm:$0xff]
    %v1034 = vld [vmem:[#allocation14 + $0x68] sm:$0xff]
    %v1035 = vld [vmem:[#allocation14 + $0x70] sm:$0xff]
    %v1036 = vld [vmem:[#allocation14 + $0x78] sm:$0xff]
    %v1037 = vld [vmem:[#allocation14 + $0x80] sm:$0xff]
    %v1038 = vld [vmem:[#allocation14 + $0x88] sm:$0xff]
    %v1039 = vld [vmem:[#allocation14 + $0x90] sm:$0xff]
    %v1040 = vld [vmem:[#allocation14 + $0x98] sm:$0xff]
    %v1041 = vld [vmem:[#allocation14 + $0xa0] sm:$0xff]
    %v1042 = vld [vmem:[#allocation14 + $0xa8] sm:$0xff]
    %v1043 = vld [vmem:[#allocation14 + $0xb0] sm:$0xff]
    %v1044 = vld [vmem:[#allocation14 + $0xb8] sm:$0xff]
    %v1045 = vld [vmem:[#allocation14 + $0xc0] sm:$0xff]
    %v1046 = vld [vmem:[#allocation14 + $0xc8] sm:$0xff]
    %v1047 = vld [vmem:[#allocation14 + $0xd0] sm:$0xff]
    %v1048 = vld [vmem:[#allocation14 + $0xd8] sm:$0xff]
    %v1049 = vld [vmem:[#allocation14 + $0xe0] sm:$0xff]
    %v1050 = vld [vmem:[#allocation14 + $0xe8] sm:$0xff]
    %v1051 = vld [vmem:[#allocation14 + $0xf0] sm:$0xff]
    %v1052 = vld [vmem:[#allocation14 + $0xf8] sm:$0xff]
    %v1053 = vld [vmem:[#allocation14 + $0x100] sm:$0xff]
    %v1054 = vld [vmem:[#allocation14 + $0x108] sm:$0xff]
    %v1055 = vld [vmem:[#allocation14 + $0x110] sm:$0xff]
    %v1056 = vld [vmem:[#allocation14 + $0x118] sm:$0xff]
    %v1057 = vld [vmem:[#allocation14 + $0x120] sm:$0xff]
    %v1058 = vld [vmem:[#allocation14 + $0x128] sm:$0xff]
    %v1059 = vld [vmem:[#allocation14 + $0x130] sm:$0xff]
    %v1060 = vld [vmem:[#allocation14 + $0x138] sm:$0xff]
    %v1061 = vld [vmem:[#allocation14 + $0x140] sm:$0xff]
    %v1062 = vld [vmem:[#allocation14 + $0x148] sm:$0xff]
    %v1063 = vld [vmem:[#allocation14 + $0x150] sm:$0xff]
    %v1064 = vld [vmem:[#allocation14 + $0x158] sm:$0xff]
    %v1065 = vld [vmem:[#allocation14 + $0x160] sm:$0xff]
    %v1066 = vld [vmem:[#allocation14 + $0x168] sm:$0xff]
    %v1067 = vld [vmem:[#allocation14 + $0x170] sm:$0xff]
    %v1068 = vld [vmem:[#allocation14 + $0x178] sm:$0xff]
    %v1069 = vld [vmem:[#allocation14 + $0x180] sm:$0xff]
    %v1070 = vld [vmem:[#allocation14 + $0x188] sm:$0xff]
    %v1071 = vld [vmem:[#allocation14 + $0x190] sm:$0xff]
    %v1072 = vld [vmem:[#allocation14 + $0x198] sm:$0xff]
    %v1073 = vld [vmem:[#allocation14 + $0x1a0] sm:$0xff]
    %v1074 = vld [vmem:[#allocation14 + $0x1a8] sm:$0xff]
    %v1075 = vld [vmem:[#allocation14 + $0x1b0] sm:$0xff]
    %v1076 = vld [vmem:[#allocation14 + $0x1b8] sm:$0xff]
    %v1077 = vld [vmem:[#allocation14 + $0x1c0] sm:$0xff]
    %v1078 = vld [vmem:[#allocation14 + $0x1c8] sm:$0xff]
    %v1079 = vld [vmem:[#allocation14 + $0x1d0] sm:$0xff]
    %v1080 = vld [vmem:[#allocation14 + $0x1d8] sm:$0xff]
    %v1081 = vld [vmem:[#allocation14 + $0x1e0] sm:$0xff]
    %v1082 = vld [vmem:[#allocation14 + $0x1e8] sm:$0xff]
    %v1083 = vld [vmem:[#allocation14 + $0x1f0] sm:$0xff]
    %v1084 = vld [vmem:[#allocation14 + $0x1f8] sm:$0xff]
    %v1085 = vld [vmem:[#allocation14 + $0x200] sm:$0xff]
    %v1086 = vld [vmem:[#allocation14 + $0x208] sm:$0xff]
    %v1087 = vld [vmem:[#allocation14 + $0x210] sm:$0xff]
    %v1088 = vld [vmem:[#allocation14 + $0x218] sm:$0xff]
    %v1089 = vld [vmem:[#allocation14 + $0x220] sm:$0xff]
    %v1090 = vld [vmem:[#allocation14 + $0x228] sm:$0xff]
    %v1091 = vld [vmem:[#allocation14 + $0x230] sm:$0xff]
    %v1092 = vld [vmem:[#allocation14 + $0x238] sm:$0xff]
    %v1093 = vld [vmem:[#allocation14 + $0x240] sm:$0xff]
    %v1094 = vld [vmem:[#allocation14 + $0x248] sm:$0xff]
    %v1095 = vld [vmem:[#allocation14 + $0x250] sm:$0xff]
    %v1096 = vld [vmem:[#allocation14 + $0x258] sm:$0xff]
    %v1097 = vld [vmem:[#allocation14 + $0x260] sm:$0xff]
    %v1098 = vld [vmem:[#allocation14 + $0x268] sm:$0xff]
    %v1099 = vld [vmem:[#allocation14 + $0x270] sm:$0xff]
    %v1100 = vld [vmem:[#allocation14 + $0x278] sm:$0xff]
    %v1101 = vld [vmem:[#allocation14 + $0x280] sm:$0xff]
    %v1102 = vld [vmem:[#allocation14 + $0x288] sm:$0xff]
    %v1103 = vld [vmem:[#allocation14 + $0x290] sm:$0xff]
    %v1104 = vld [vmem:[#allocation14 + $0x298] sm:$0xff]
    %v1105 = vld [vmem:[#allocation14 + $0x2a0] sm:$0xff]
    %v1106 = vld [vmem:[#allocation14 + $0x2a8] sm:$0xff]
    %v1107 = vld [vmem:[#allocation14 + $0x2b0] sm:$0xff]
    %v1108 = vld [vmem:[#allocation14 + $0x2b8] sm:$0xff]
    %v1109 = vld [vmem:[#allocation14 + $0x2c0] sm:$0xff]
    %v1110 = vld [vmem:[#allocation14 + $0x2c8] sm:$0xff]
    %v1111 = vld [vmem:[#allocation14 + $0x2d0] sm:$0xff]
    %v1112 = vld [vmem:[#allocation14 + $0x2d8] sm:$0xff]
    %v1113 = vld [vmem:[#allocation14 + $0x2e0] sm:$0xff]
    %v1114 = vld [vmem:[#allocation14 + $0x2e8] sm:$0xff]
    %v1115 = vld [vmem:[#allocation14 + $0x2f0] sm:$0xff]
    %v1116 = vld [vmem:[#allocation14 + $0x2f8] sm:$0xff]
    %v1117 = vld [vmem:[#allocation14 + $0x300] sm:$0xff]
    %v1118 = vld [vmem:[#allocation14 + $0x308] sm:$0xff]
    %v1119 = vld [vmem:[#allocation14 + $0x310] sm:$0xff]
    %v1120 = vld [vmem:[#allocation14 + $0x318] sm:$0xff]
    %v1121 = vld [vmem:[#allocation14 + $0x320] sm:$0xff]
    %v1122 = vld [vmem:[#allocation14 + $0x328] sm:$0xff]
    %v1123 = vld [vmem:[#allocation14 + $0x330] sm:$0xff]
    %v1124 = vld [vmem:[#allocation14 + $0x338] sm:$0xff]
    %v1125 = vld [vmem:[#allocation14 + $0x340] sm:$0xff]
    %v1126 = vld [vmem:[#allocation14 + $0x348] sm:$0xff]
    %v1127 = vld [vmem:[#allocation14 + $0x350] sm:$0xff]
    %v1128 = vld [vmem:[#allocation14 + $0x358] sm:$0xff]
    %v1129 = vld [vmem:[#allocation14 + $0x360] sm:$0xff]
    %v1130 = vld [vmem:[#allocation14 + $0x368] sm:$0xff]
    %v1131 = vld [vmem:[#allocation14 + $0x370] sm:$0xff]
    %v1132 = vld [vmem:[#allocation14 + $0x378] sm:$0xff]
    %v1133 = vld [vmem:[#allocation14 + $0x380] sm:$0xff]
    %v1134 = vld [vmem:[#allocation14 + $0x388] sm:$0xff]
    %v1135 = vld [vmem:[#allocation14 + $0x390] sm:$0xff]
    %v1136 = vld [vmem:[#allocation14 + $0x398] sm:$0xff]
    %v1137 = vld [vmem:[#allocation14 + $0x3a0] sm:$0xff]
    %v1138 = vld [vmem:[#allocation14 + $0x3a8] sm:$0xff]
    %v1139 = vld [vmem:[#allocation14 + $0x3b0] sm:$0xff]
    %v1140 = vld [vmem:[#allocation14 + $0x3b8] sm:$0xff]
    %v1141 = vld [vmem:[#allocation14 + $0x3c0] sm:$0xff]
    %v1142 = vld [vmem:[#allocation14 + $0x3c8] sm:$0xff]
    %v1143 = vld [vmem:[#allocation14 + $0x3d0] sm:$0xff]
    %v1144 = vld [vmem:[#allocation14 + $0x3d8] sm:$0xff]
    %v1145 = vld [vmem:[#allocation14 + $0x3e0] sm:$0xff]
    %v1146 = vld [vmem:[#allocation14 + $0x3e8] sm:$0xff]
    %v1147 = vld [vmem:[#allocation14 + $0x3f0] sm:$0xff]
    %v1148 = vld [vmem:[#allocation14 + $0x3f8] sm:$0xff]
    %v1149 = vld [vmem:[#allocation15] sm:$0xff]
    %v1151 = vlaneseq
    %v1152 = vshrl.u32 %v1151, 7
    %v1153 = vsub.s32 0, %v1152
    %v1154 = vrot.slane %v1149, %v1153
    %v1155 = vlaneseq
    %v1156 = vshrl.u32 %v1155, 7
    %v1157 = vsub.s32 1, %v1156
    %v1158 = vrot.slane %v1149, %v1157
    %v1159 = vlaneseq
    %v1160 = vshrl.u32 %v1159, 7
    %v1161 = vsub.s32 2, %v1160
    %v1162 = vrot.slane %v1149, %v1161
    %v1163 = vlaneseq
    %v1164 = vshrl.u32 %v1163, 7
    %v1165 = vsub.s32 3, %v1164
    %v1166 = vrot.slane %v1149, %v1165
    %v1167 = vlaneseq
    %v1168 = vshrl.u32 %v1167, 7
    %v1169 = vsub.s32 4, %v1168
    %v1170 = vrot.slane %v1149, %v1169
    %v1171 = vlaneseq
    %v1172 = vshrl.u32 %v1171, 7
    %v1173 = vsub.s32 5, %v1172
    %v1174 = vrot.slane %v1149, %v1173
    %v1175 = vlaneseq
    %v1176 = vshrl.u32 %v1175, 7
    %v1177 = vsub.s32 6, %v1176
    %v1178 = vrot.slane %v1149, %v1177
    %v1179 = vlaneseq
    %v1180 = vshrl.u32 %v1179, 7
    %v1181 = vsub.s32 7, %v1180
    %v1182 = vrot.slane %v1149, %v1181
    %v1319 = vunpack.c.l.b16 %v1021
    %v1320 = vunpack.c.h.b16 %v1021
    %v1321 = vunpack.c.l.b16 %v1022
    %v1322 = vunpack.c.h.b16 %v1022
    %v1323 = vunpack.c.l.b16 %v1023
    %v1324 = vunpack.c.h.b16 %v1023
    %v1325 = vunpack.c.l.b16 %v1024
    %v1326 = vunpack.c.h.b16 %v1024
    %v1327 = vunpack.c.l.b16 %v1025
    %v1328 = vunpack.c.h.b16 %v1025
    %v1329 = vunpack.c.l.b16 %v1026
    %v1330 = vunpack.c.h.b16 %v1026
    %v1331 = vunpack.c.l.b16 %v1027
    %v1332 = vunpack.c.h.b16 %v1027
    %v1333 = vunpack.c.l.b16 %v1028
    %v1334 = vunpack.c.h.b16 %v1028
    %v1335 = vunpack.c.l.b16 %v1029
    %v1336 = vunpack.c.h.b16 %v1029
    %v1337 = vunpack.c.l.b16 %v1030
    %v1338 = vunpack.c.h.b16 %v1030
    %v1339 = vunpack.c.l.b16 %v1031
    %v1340 = vunpack.c.h.b16 %v1031
    %v1341 = vunpack.c.l.b16 %v1032
    %v1342 = vunpack.c.h.b16 %v1032
    %v1343 = vunpack.c.l.b16 %v1033
    %v1344 = vunpack.c.h.b16 %v1033
    %v1345 = vunpack.c.l.b16 %v1034
    %v1346 = vunpack.c.h.b16 %v1034
    %v1347 = vunpack.c.l.b16 %v1035
    %v1348 = vunpack.c.h.b16 %v1035
    %v1349 = vunpack.c.l.b16 %v1036
    %v1350 = vunpack.c.h.b16 %v1036
    %v1351 = vunpack.c.l.b16 %v1037
    %v1352 = vunpack.c.h.b16 %v1037
    %v1353 = vunpack.c.l.b16 %v1038
    %v1354 = vunpack.c.h.b16 %v1038
    %v1355 = vunpack.c.l.b16 %v1039
    %v1356 = vunpack.c.h.b16 %v1039
    %v1357 = vunpack.c.l.b16 %v1040
    %v1358 = vunpack.c.h.b16 %v1040
    %v1359 = vunpack.c.l.b16 %v1041
    %v1360 = vunpack.c.h.b16 %v1041
    %v1361 = vunpack.c.l.b16 %v1042
    %v1362 = vunpack.c.h.b16 %v1042
    %v1363 = vunpack.c.l.b16 %v1043
    %v1364 = vunpack.c.h.b16 %v1043
    %v1365 = vunpack.c.l.b16 %v1044
    %v1366 = vunpack.c.h.b16 %v1044
    %v1367 = vunpack.c.l.b16 %v1045
    %v1368 = vunpack.c.h.b16 %v1045
    %v1369 = vunpack.c.l.b16 %v1046
    %v1370 = vunpack.c.h.b16 %v1046
    %v1371 = vunpack.c.l.b16 %v1047
    %v1372 = vunpack.c.h.b16 %v1047
    %v1373 = vunpack.c.l.b16 %v1048
    %v1374 = vunpack.c.h.b16 %v1048
    %v1375 = vunpack.c.l.b16 %v1049
    %v1376 = vunpack.c.h.b16 %v1049
    %v1377 = vunpack.c.l.b16 %v1050
    %v1378 = vunpack.c.h.b16 %v1050
    %v1379 = vunpack.c.l.b16 %v1051
    %v1380 = vunpack.c.h.b16 %v1051
    %v1381 = vunpack.c.l.b16 %v1052
    %v1382 = vunpack.c.h.b16 %v1052
    %v1383 = vunpack.c.l.b16 %v1053
    %v1384 = vunpack.c.h.b16 %v1053
    %v1385 = vunpack.c.l.b16 %v1054
    %v1386 = vunpack.c.h.b16 %v1054
    %v1387 = vunpack.c.l.b16 %v1055
    %v1388 = vunpack.c.h.b16 %v1055
    %v1389 = vunpack.c.l.b16 %v1056
    %v1390 = vunpack.c.h.b16 %v1056
    %v1391 = vunpack.c.l.b16 %v1057
    %v1392 = vunpack.c.h.b16 %v1057
    %v1393 = vunpack.c.l.b16 %v1058
    %v1394 = vunpack.c.h.b16 %v1058
    %v1395 = vunpack.c.l.b16 %v1059
    %v1396 = vunpack.c.h.b16 %v1059
    %v1397 = vunpack.c.l.b16 %v1060
    %v1398 = vunpack.c.h.b16 %v1060
    %v1399 = vunpack.c.l.b16 %v1061
    %v1400 = vunpack.c.h.b16 %v1061
    %v1401 = vunpack.c.l.b16 %v1062
    %v1402 = vunpack.c.h.b16 %v1062
    %v1403 = vunpack.c.l.b16 %v1063
    %v1404 = vunpack.c.h.b16 %v1063
    %v1405 = vunpack.c.l.b16 %v1064
    %v1406 = vunpack.c.h.b16 %v1064
    %v1407 = vunpack.c.l.b16 %v1065
    %v1408 = vunpack.c.h.b16 %v1065
    %v1409 = vunpack.c.l.b16 %v1066
    %v1410 = vunpack.c.h.b16 %v1066
    %v1411 = vunpack.c.l.b16 %v1067
    %v1412 = vunpack.c.h.b16 %v1067
    %v1413 = vunpack.c.l.b16 %v1068
    %v1414 = vunpack.c.h.b16 %v1068
    %v1415 = vunpack.c.l.b16 %v1069
    %v1416 = vunpack.c.h.b16 %v1069
    %v1417 = vunpack.c.l.b16 %v1070
    %v1418 = vunpack.c.h.b16 %v1070
    %v1419 = vunpack.c.l.b16 %v1071
    %v1420 = vunpack.c.h.b16 %v1071
    %v1421 = vunpack.c.l.b16 %v1072
    %v1422 = vunpack.c.h.b16 %v1072
    %v1423 = vunpack.c.l.b16 %v1073
    %v1424 = vunpack.c.h.b16 %v1073
    %v1425 = vunpack.c.l.b16 %v1074
    %v1426 = vunpack.c.h.b16 %v1074
    %v1427 = vunpack.c.l.b16 %v1075
    %v1428 = vunpack.c.h.b16 %v1075
    %v1429 = vunpack.c.l.b16 %v1076
    %v1430 = vunpack.c.h.b16 %v1076
    %v1431 = vunpack.c.l.b16 %v1077
    %v1432 = vunpack.c.h.b16 %v1077
    %v1433 = vunpack.c.l.b16 %v1078
    %v1434 = vunpack.c.h.b16 %v1078
    %v1435 = vunpack.c.l.b16 %v1079
    %v1436 = vunpack.c.h.b16 %v1079
    %v1437 = vunpack.c.l.b16 %v1080
    %v1438 = vunpack.c.h.b16 %v1080
    %v1439 = vunpack.c.l.b16 %v1081
    %v1440 = vunpack.c.h.b16 %v1081
    %v1441 = vunpack.c.l.b16 %v1082
    %v1442 = vunpack.c.h.b16 %v1082
    %v1443 = vunpack.c.l.b16 %v1083
    %v1444 = vunpack.c.h.b16 %v1083
    %v1445 = vunpack.c.l.b16 %v1084
    %v1446 = vunpack.c.h.b16 %v1084
    %v1447 = vunpack.c.l.b16 %v1085
    %v1448 = vunpack.c.h.b16 %v1085
    %v1449 = vunpack.c.l.b16 %v1086
    %v1450 = vunpack.c.h.b16 %v1086
    %v1451 = vunpack.c.l.b16 %v1087
    %v1452 = vunpack.c.h.b16 %v1087
    %v1453 = vunpack.c.l.b16 %v1088
    %v1454 = vunpack.c.h.b16 %v1088
    %v1455 = vunpack.c.l.b16 %v1089
    %v1456 = vunpack.c.h.b16 %v1089
    %v1457 = vunpack.c.l.b16 %v1090
    %v1458 = vunpack.c.h.b16 %v1090
    %v1459 = vunpack.c.l.b16 %v1091
    %v1460 = vunpack.c.h.b16 %v1091
    %v1461 = vunpack.c.l.b16 %v1092
    %v1462 = vunpack.c.h.b16 %v1092
    %v1463 = vunpack.c.l.b16 %v1093
    %v1464 = vunpack.c.h.b16 %v1093
    %v1465 = vunpack.c.l.b16 %v1094
    %v1466 = vunpack.c.h.b16 %v1094
    %v1467 = vunpack.c.l.b16 %v1095
    %v1468 = vunpack.c.h.b16 %v1095
    %v1469 = vunpack.c.l.b16 %v1096
    %v1470 = vunpack.c.h.b16 %v1096
    %v1471 = vunpack.c.l.b16 %v1097
    %v1472 = vunpack.c.h.b16 %v1097
    %v1473 = vunpack.c.l.b16 %v1098
    %v1474 = vunpack.c.h.b16 %v1098
    %v1475 = vunpack.c.l.b16 %v1099
    %v1476 = vunpack.c.h.b16 %v1099
    %v1477 = vunpack.c.l.b16 %v1100
    %v1478 = vunpack.c.h.b16 %v1100
    %v1479 = vunpack.c.l.b16 %v1101
    %v1480 = vunpack.c.h.b16 %v1101
    %v1481 = vunpack.c.l.b16 %v1102
    %v1482 = vunpack.c.h.b16 %v1102
    %v1483 = vunpack.c.l.b16 %v1103
    %v1484 = vunpack.c.h.b16 %v1103
    %v1485 = vunpack.c.l.b16 %v1104
    %v1486 = vunpack.c.h.b16 %v1104
    %v1487 = vunpack.c.l.b16 %v1105
    %v1488 = vunpack.c.h.b16 %v1105
    %v1489 = vunpack.c.l.b16 %v1106
    %v1490 = vunpack.c.h.b16 %v1106
    %v1491 = vunpack.c.l.b16 %v1107
    %v1492 = vunpack.c.h.b16 %v1107
    %v1493 = vunpack.c.l.b16 %v1108
    %v1494 = vunpack.c.h.b16 %v1108
    %v1495 = vunpack.c.l.b16 %v1109
    %v1496 = vunpack.c.h.b16 %v1109
    %v1497 = vunpack.c.l.b16 %v1110
    %v1498 = vunpack.c.h.b16 %v1110
    %v1499 = vunpack.c.l.b16 %v1111
    %v1500 = vunpack.c.h.b16 %v1111
    %v1501 = vunpack.c.l.b16 %v1112
    %v1502 = vunpack.c.h.b16 %v1112
    %v1503 = vunpack.c.l.b16 %v1113
    %v1504 = vunpack.c.h.b16 %v1113
    %v1505 = vunpack.c.l.b16 %v1114
    %v1506 = vunpack.c.h.b16 %v1114
    %v1507 = vunpack.c.l.b16 %v1115
    %v1508 = vunpack.c.h.b16 %v1115
    %v1509 = vunpack.c.l.b16 %v1116
    %v1510 = vunpack.c.h.b16 %v1116
    %v1511 = vunpack.c.l.b16 %v1117
    %v1512 = vunpack.c.h.b16 %v1117
    %v1513 = vunpack.c.l.b16 %v1118
    %v1514 = vunpack.c.h.b16 %v1118
    %v1515 = vunpack.c.l.b16 %v1119
    %v1516 = vunpack.c.h.b16 %v1119
    %v1517 = vunpack.c.l.b16 %v1120
    %v1518 = vunpack.c.h.b16 %v1120
    %v1519 = vunpack.c.l.b16 %v1121
    %v1520 = vunpack.c.h.b16 %v1121
    %v1521 = vunpack.c.l.b16 %v1122
    %v1522 = vunpack.c.h.b16 %v1122
    %v1523 = vunpack.c.l.b16 %v1123
    %v1524 = vunpack.c.h.b16 %v1123
    %v1525 = vunpack.c.l.b16 %v1124
    %v1526 = vunpack.c.h.b16 %v1124
    %v1527 = vunpack.c.l.b16 %v1125
    %v1528 = vunpack.c.h.b16 %v1125
    %v1529 = vunpack.c.l.b16 %v1126
    %v1530 = vunpack.c.h.b16 %v1126
    %v1531 = vunpack.c.l.b16 %v1127
    %v1532 = vunpack.c.h.b16 %v1127
    %v1533 = vunpack.c.l.b16 %v1128
    %v1534 = vunpack.c.h.b16 %v1128
    %v1535 = vunpack.c.l.b16 %v1129
    %v1536 = vunpack.c.h.b16 %v1129
    %v1537 = vunpack.c.l.b16 %v1130
    %v1538 = vunpack.c.h.b16 %v1130
    %v1539 = vunpack.c.l.b16 %v1131
    %v1540 = vunpack.c.h.b16 %v1131
    %v1541 = vunpack.c.l.b16 %v1132
    %v1542 = vunpack.c.h.b16 %v1132
    %v1543 = vunpack.c.l.b16 %v1133
    %v1544 = vunpack.c.h.b16 %v1133
    %v1545 = vunpack.c.l.b16 %v1134
    %v1546 = vunpack.c.h.b16 %v1134
    %v1547 = vunpack.c.l.b16 %v1135
    %v1548 = vunpack.c.h.b16 %v1135
    %v1549 = vunpack.c.l.b16 %v1136
    %v1550 = vunpack.c.h.b16 %v1136
    %v1551 = vunpack.c.l.b16 %v1137
    %v1552 = vunpack.c.h.b16 %v1137
    %v1553 = vunpack.c.l.b16 %v1138
    %v1554 = vunpack.c.h.b16 %v1138
    %v1555 = vunpack.c.l.b16 %v1139
    %v1556 = vunpack.c.h.b16 %v1139
    %v1557 = vunpack.c.l.b16 %v1140
    %v1558 = vunpack.c.h.b16 %v1140
    %v1559 = vunpack.c.l.b16 %v1141
    %v1560 = vunpack.c.h.b16 %v1141
    %v1561 = vunpack.c.l.b16 %v1142
    %v1562 = vunpack.c.h.b16 %v1142
    %v1563 = vunpack.c.l.b16 %v1143
    %v1564 = vunpack.c.h.b16 %v1143
    %v1565 = vunpack.c.l.b16 %v1144
    %v1566 = vunpack.c.h.b16 %v1144
    %v1567 = vunpack.c.l.b16 %v1145
    %v1568 = vunpack.c.h.b16 %v1145
    %v1569 = vunpack.c.l.b16 %v1146
    %v1570 = vunpack.c.h.b16 %v1146
    %v1571 = vunpack.c.l.b16 %v1147
    %v1572 = vunpack.c.h.b16 %v1147
    %v1573 = vunpack.c.l.b16 %v1148
    %v1574 = vunpack.c.h.b16 %v1148
    %v1575 = vpack.c.b16 %v1327, %v1319
    %v1576 = vpack.c.b16 %v1328, %v1320
    %v1577 = vpack.c.b16 %v1329, %v1321
    %v1578 = vpack.c.b16 %v1330, %v1322
    %v1579 = vpack.c.b16 %v1331, %v1323
    %v1580 = vpack.c.b16 %v1332, %v1324
    %v1581 = vpack.c.b16 %v1333, %v1325
    %v1582 = vpack.c.b16 %v1334, %v1326
    %v1583 = vpack.c.b16 %v1343, %v1335
    %v1584 = vpack.c.b16 %v1344, %v1336
    %v1585 = vpack.c.b16 %v1345, %v1337
    %v1586 = vpack.c.b16 %v1346, %v1338
    %v1587 = vpack.c.b16 %v1347, %v1339
    %v1588 = vpack.c.b16 %v1348, %v1340
    %v1589 = vpack.c.b16 %v1349, %v1341
    %v1590 = vpack.c.b16 %v1350, %v1342
    %v1591 = vpack.c.b16 %v1359, %v1351
    %v1592 = vpack.c.b16 %v1360, %v1352
    %v1593 = vpack.c.b16 %v1361, %v1353
    %v1594 = vpack.c.b16 %v1362, %v1354
    %v1595 = vpack.c.b16 %v1363, %v1355
    %v1596 = vpack.c.b16 %v1364, %v1356
    %v1597 = vpack.c.b16 %v1365, %v1357
    %v1598 = vpack.c.b16 %v1366, %v1358
    %v1599 = vpack.c.b16 %v1375, %v1367
    %v1600 = vpack.c.b16 %v1376, %v1368
    %v1601 = vpack.c.b16 %v1377, %v1369
    %v1602 = vpack.c.b16 %v1378, %v1370
    %v1603 = vpack.c.b16 %v1379, %v1371
    %v1604 = vpack.c.b16 %v1380, %v1372
    %v1605 = vpack.c.b16 %v1381, %v1373
    %v1606 = vpack.c.b16 %v1382, %v1374
    %v1607 = vpack.c.b16 %v1391, %v1383
    %v1608 = vpack.c.b16 %v1392, %v1384
    %v1609 = vpack.c.b16 %v1393, %v1385
    %v1610 = vpack.c.b16 %v1394, %v1386
    %v1611 = vpack.c.b16 %v1395, %v1387
    %v1612 = vpack.c.b16 %v1396, %v1388
    %v1613 = vpack.c.b16 %v1397, %v1389
    %v1614 = vpack.c.b16 %v1398, %v1390
    %v1615 = vpack.c.b16 %v1407, %v1399
    %v1616 = vpack.c.b16 %v1408, %v1400
    %v1617 = vpack.c.b16 %v1409, %v1401
    %v1618 = vpack.c.b16 %v1410, %v1402
    %v1619 = vpack.c.b16 %v1411, %v1403
    %v1620 = vpack.c.b16 %v1412, %v1404
    %v1621 = vpack.c.b16 %v1413, %v1405
    %v1622 = vpack.c.b16 %v1414, %v1406
    %v1623 = vpack.c.b16 %v1423, %v1415
    %v1624 = vpack.c.b16 %v1424, %v1416
    %v1625 = vpack.c.b16 %v1425, %v1417
    %v1626 = vpack.c.b16 %v1426, %v1418
    %v1627 = vpack.c.b16 %v1427, %v1419
    %v1628 = vpack.c.b16 %v1428, %v1420
    %v1629 = vpack.c.b16 %v1429, %v1421
    %v1630 = vpack.c.b16 %v1430, %v1422
    %v1631 = vpack.c.b16 %v1439, %v1431
    %v1632 = vpack.c.b16 %v1440, %v1432
    %v1633 = vpack.c.b16 %v1441, %v1433
    %v1634 = vpack.c.b16 %v1442, %v1434
    %v1635 = vpack.c.b16 %v1443, %v1435
    %v1636 = vpack.c.b16 %v1444, %v1436
    %v1637 = vpack.c.b16 %v1445, %v1437
    %v1638 = vpack.c.b16 %v1446, %v1438
    %v1639 = vpack.c.b16 %v1455, %v1447
    %v1640 = vpack.c.b16 %v1456, %v1448
    %v1641 = vpack.c.b16 %v1457, %v1449
    %v1642 = vpack.c.b16 %v1458, %v1450
    %v1643 = vpack.c.b16 %v1459, %v1451
    %v1644 = vpack.c.b16 %v1460, %v1452
    %v1645 = vpack.c.b16 %v1461, %v1453
    %v1646 = vpack.c.b16 %v1462, %v1454
    %v1647 = vpack.c.b16 %v1471, %v1463
    %v1648 = vpack.c.b16 %v1472, %v1464
    %v1649 = vpack.c.b16 %v1473, %v1465
    %v1650 = vpack.c.b16 %v1474, %v1466
    %v1651 = vpack.c.b16 %v1475, %v1467
    %v1652 = vpack.c.b16 %v1476, %v1468
    %v1653 = vpack.c.b16 %v1477, %v1469
    %v1654 = vpack.c.b16 %v1478, %v1470
    %v1655 = vpack.c.b16 %v1487, %v1479
    %v1656 = vpack.c.b16 %v1488, %v1480
    %v1657 = vpack.c.b16 %v1489, %v1481
    %v1658 = vpack.c.b16 %v1490, %v1482
    %v1659 = vpack.c.b16 %v1491, %v1483
    %v1660 = vpack.c.b16 %v1492, %v1484
    %v1661 = vpack.c.b16 %v1493, %v1485
    %v1662 = vpack.c.b16 %v1494, %v1486
    %v1663 = vpack.c.b16 %v1503, %v1495
    %v1664 = vpack.c.b16 %v1504, %v1496
    %v1665 = vpack.c.b16 %v1505, %v1497
    %v1666 = vpack.c.b16 %v1506, %v1498
    %v1667 = vpack.c.b16 %v1507, %v1499
    %v1668 = vpack.c.b16 %v1508, %v1500
    %v1669 = vpack.c.b16 %v1509, %v1501
    %v1670 = vpack.c.b16 %v1510, %v1502
    %v1671 = vpack.c.b16 %v1519, %v1511
    %v1672 = vpack.c.b16 %v1520, %v1512
    %v1673 = vpack.c.b16 %v1521, %v1513
    %v1674 = vpack.c.b16 %v1522, %v1514
    %v1675 = vpack.c.b16 %v1523, %v1515
    %v1676 = vpack.c.b16 %v1524, %v1516
    %v1677 = vpack.c.b16 %v1525, %v1517
    %v1678 = vpack.c.b16 %v1526, %v1518
    %v1679 = vpack.c.b16 %v1535, %v1527
    %v1680 = vpack.c.b16 %v1536, %v1528
    %v1681 = vpack.c.b16 %v1537, %v1529
    %v1682 = vpack.c.b16 %v1538, %v1530
    %v1683 = vpack.c.b16 %v1539, %v1531
    %v1684 = vpack.c.b16 %v1540, %v1532
    %v1685 = vpack.c.b16 %v1541, %v1533
    %v1686 = vpack.c.b16 %v1542, %v1534
    %v1687 = vpack.c.b16 %v1551, %v1543
    %v1688 = vpack.c.b16 %v1552, %v1544
    %v1689 = vpack.c.b16 %v1553, %v1545
    %v1690 = vpack.c.b16 %v1554, %v1546
    %v1691 = vpack.c.b16 %v1555, %v1547
    %v1692 = vpack.c.b16 %v1556, %v1548
    %v1693 = vpack.c.b16 %v1557, %v1549
    %v1694 = vpack.c.b16 %v1558, %v1550
    %v1695 = vpack.c.b16 %v1567, %v1559
    %v1696 = vpack.c.b16 %v1568, %v1560
    %v1697 = vpack.c.b16 %v1569, %v1561
    %v1698 = vpack.c.b16 %v1570, %v1562
    %v1699 = vpack.c.b16 %v1571, %v1563
    %v1700 = vpack.c.b16 %v1572, %v1564
    %v1701 = vpack.c.b16 %v1573, %v1565
    %v1702 = vpack.c.b16 %v1574, %v1566
    %1831 = vmatprep.subr.bf16.mxu0 %v1632
    %1832 = vmatpush1.bf16.msra.mxu0 %v1631
    %1833 = vmatprep.subr.bf16.mxu0 %v1624
    %1834 = vmatpush1.bf16.msra.mxu0 %v1623
    %1835 = vmatprep.subr.bf16.mxu0 %v1616
    %1836 = vmatpush1.bf16.msra.mxu0 %v1615
    %1837 = vmatprep.subr.bf16.mxu0 %v1608
    %1838 = vmatpush1.bf16.msra.mxu0 %v1607
    %1839 = vmatprep.subr.bf16.mxu0 %v1600
    %1840 = vmatpush1.bf16.msra.mxu0 %v1599
    %1841 = vmatprep.subr.bf16.mxu0 %v1592
    %1842 = vmatpush1.bf16.msra.mxu0 %v1591
    %1843 = vmatprep.subr.bf16.mxu0 %v1584
    %1844 = vmatpush1.bf16.msra.mxu0 %v1583
    %1845 = vmatprep.subr.bf16.mxu0 %v1576
    %1846 = vmatpush1.bf16.msra.mxu0 %v1575
    %1847 = vmatprep.subr.bf16.mxu0 %v1696
    %1848 = vmatpush2.bf16.msra.mxu0 %v1695
    %1849 = vmatprep.subr.bf16.mxu0 %v1688
    %1850 = vmatpush2.bf16.msra.mxu0 %v1687
    %1851 = vmatprep.subr.bf16.mxu0 %v1680
    %1852 = vmatpush2.bf16.msra.mxu0 %v1679
    %1853 = vmatprep.subr.bf16.mxu0 %v1672
    %1854 = vmatpush2.bf16.msra.mxu0 %v1671
    %1855 = vmatprep.subr.bf16.mxu0 %v1664
    %1856 = vmatpush2.bf16.msra.mxu0 %v1663
    %1857 = vmatprep.subr.bf16.mxu0 %v1656
    %1858 = vmatpush2.bf16.msra.mxu0 %v1655
    %1859 = vmatprep.subr.bf16.mxu0 %v1648
    %1860 = vmatpush2.bf16.msra.mxu0 %v1647
    %1861 = vmatprep.subr.bf16.mxu0 %v1640
    %1862 = vmatpush2.bf16.msra.mxu0 %v1639
    %1863 = vmatprep.mubr.bf16.mxu0 %v1006
    %1864 = vmatmul.mubr.bf16.gmra.mxu0 %v1005
    %v1865 = vpop.f32.mrf.mxu0
    %v1866 = vadd.f32 %v1154, %v1865
    %v1867 = vpop.f32.mrf.mxu0
    %v1868 = vadd.f32 %v1158, %v1867
    %v1869 = vpop.f32.mrf.mxu0
    %v1870 = vadd.f32 %v1154, %v1869
    %v1871 = vpop.f32.mrf.mxu0
    %v1872 = vadd.f32 %v1158, %v1871
    %1873 = vmatprep.mubr.bf16.mxu0 %v1008
    %1874 = vmatmul.mubr.bf16.gmra.mxu0 %v1007
    %v1875 = vpop.f32.mrf.mxu0
    %v1876 = vadd.f32 %v1154, %v1875
    %v1877 = vpop.f32.mrf.mxu0
    %v1878 = vadd.f32 %v1158, %v1877
    %v1879 = vpop.f32.mrf.mxu0
    %v1880 = vadd.f32 %v1154, %v1879
    %v1881 = vpop.f32.mrf.mxu0
    %v1882 = vadd.f32 %v1158, %v1881
    %1883 = vmatprep.mubr.bf16.mxu0 %v1010
    %1884 = vmatmul.mubr.bf16.gmra.mxu0 %v1009
    %v1885 = vpop.f32.mrf.mxu0
    %v1886 = vadd.f32 %v1154, %v1885
    %v1887 = vpop.f32.mrf.mxu0
    %v1888 = vadd.f32 %v1158, %v1887
    %v1889 = vpop.f32.mrf.mxu0
    %v1890 = vadd.f32 %v1154, %v1889
    %v1891 = vpop.f32.mrf.mxu0
    %v1892 = vadd.f32 %v1158, %v1891
    %1893 = vmatprep.mubr.bf16.mxu0 %v1012
    %1894 = vmatmul.mubr.bf16.gmra.mxu0 %v1011
    %v1895 = vpop.f32.mrf.mxu0
    %v1896 = vadd.f32 %v1154, %v1895
    %v1897 = vpop.f32.mrf.mxu0
    %v1898 = vadd.f32 %v1158, %v1897
    %v1899 = vpop.f32.mrf.mxu0
    %v1900 = vadd.f32 %v1154, %v1899
    %v1901 = vpop.f32.mrf.mxu0
    %v1902 = vadd.f32 %v1158, %v1901
    %1903 = vmatprep.mubr.bf16.mxu0 %v1014
    %1904 = vmatmul.mubr.bf16.gmra.mxu0 %v1013
    %v1905 = vpop.f32.mrf.mxu0
    %v1906 = vadd.f32 %v1154, %v1905
    %v1907 = vpop.f32.mrf.mxu0
    %v1908 = vadd.f32 %v1158, %v1907
    %v1909 = vpop.f32.mrf.mxu0
    %v1910 = vadd.f32 %v1154, %v1909
    %v1911 = vpop.f32.mrf.mxu0
    %v1912 = vadd.f32 %v1158, %v1911
    %1913 = vmatprep.mubr.bf16.mxu0 %v1016
    %1914 = vmatmul.mubr.bf16.gmra.mxu0 %v1015
    %v1915 = vpop.f32.mrf.mxu0
    %v1916 = vadd.f32 %v1154, %v1915
    %v1917 = vpop.f32.mrf.mxu0
    %v1918 = vadd.f32 %v1158, %v1917
    %v1919 = vpop.f32.mrf.mxu0
    %v1920 = vadd.f32 %v1154, %v1919
    %v1921 = vpop.f32.mrf.mxu0
    %v1922 = vadd.f32 %v1158, %v1921
    %1923 = vmatprep.mubr.bf16.mxu0 %v1018
    %1924 = vmatmul.mubr.bf16.gmra.mxu0 %v1017
    %v1925 = vpop.f32.mrf.mxu0
    %v1926 = vadd.f32 %v1154, %v1925
    %v1927 = vpop.f32.mrf.mxu0
    %v1928 = vadd.f32 %v1158, %v1927
    %v1929 = vpop.f32.mrf.mxu0
    %v1930 = vadd.f32 %v1154, %v1929
    %v1931 = vpop.f32.mrf.mxu0
    %v1932 = vadd.f32 %v1158, %v1931
    %1933 = vmatprep.mubr.bf16.mxu0 %v1020
    %1934 = vmatmul.mubr.bf16.gmra.mxu0 %v1019
    %v1935 = vpop.f32.mrf.mxu0
    %v1936 = vadd.f32 %v1154, %v1935
    %v1937 = vpop.f32.mrf.mxu0
    %v1938 = vadd.f32 %v1158, %v1937
    %v1939 = vpop.f32.mrf.mxu0
    %v1940 = vadd.f32 %v1154, %v1939
    %v1941 = vpop.f32.mrf.mxu0
    %v1942 = vadd.f32 %v1158, %v1941
    %1943 = vdwg.mxu0
    %1944 = vmatprep.subr.bf16.mxu0 %v1634
    %1945 = vmatpush1.bf16.msra.mxu0 %v1633
    %1946 = vmatprep.subr.bf16.mxu0 %v1626
    %1947 = vmatpush1.bf16.msra.mxu0 %v1625
    %1948 = vmatprep.subr.bf16.mxu0 %v1618
    %1949 = vmatpush1.bf16.msra.mxu0 %v1617
    %1950 = vmatprep.subr.bf16.mxu0 %v1610
    %1951 = vmatpush1.bf16.msra.mxu0 %v1609
    %1952 = vmatprep.subr.bf16.mxu0 %v1602
    %1953 = vmatpush1.bf16.msra.mxu0 %v1601
    %1954 = vmatprep.subr.bf16.mxu0 %v1594
    %1955 = vmatpush1.bf16.msra.mxu0 %v1593
    %1956 = vmatprep.subr.bf16.mxu0 %v1586
    %1957 = vmatpush1.bf16.msra.mxu0 %v1585
    %1958 = vmatprep.subr.bf16.mxu0 %v1578
    %1959 = vmatpush1.bf16.msra.mxu0 %v1577
    %1960 = vmatprep.subr.bf16.mxu0 %v1698
    %1961 = vmatpush2.bf16.msra.mxu0 %v1697
    %1962 = vmatprep.subr.bf16.mxu0 %v1690
    %1963 = vmatpush2.bf16.msra.mxu0 %v1689
    %1964 = vmatprep.subr.bf16.mxu0 %v1682
    %1965 = vmatpush2.bf16.msra.mxu0 %v1681
    %1966 = vmatprep.subr.bf16.mxu0 %v1674
    %1967 = vmatpush2.bf16.msra.mxu0 %v1673
    %1968 = vmatprep.subr.bf16.mxu0 %v1666
    %1969 = vmatpush2.bf16.msra.mxu0 %v1665
    %1970 = vmatprep.subr.bf16.mxu0 %v1658
    %1971 = vmatpush2.bf16.msra.mxu0 %v1657
    %1972 = vmatprep.subr.bf16.mxu0 %v1650
    %1973 = vmatpush2.bf16.msra.mxu0 %v1649
    %1974 = vmatprep.subr.bf16.mxu0 %v1642
    %1975 = vmatpush2.bf16.msra.mxu0 %v1641
    %1976 = vmatprep.mubr.bf16.mxu0 %v1006
    %1977 = vmatmul.mubr.bf16.gmra.mxu0 %v1005
    %v1978 = vpop.f32.mrf.mxu0
    %v1979 = vadd.f32 %v1162, %v1978
    %v1980 = vpop.f32.mrf.mxu0
    %v1981 = vadd.f32 %v1166, %v1980
    %v1982 = vpop.f32.mrf.mxu0
    %v1983 = vadd.f32 %v1162, %v1982
    %v1984 = vpop.f32.mrf.mxu0
    %v1985 = vadd.f32 %v1166, %v1984
    %1986 = vmatprep.mubr.bf16.mxu0 %v1008
    %1987 = vmatmul.mubr.bf16.gmra.mxu0 %v1007
    %v1988 = vpop.f32.mrf.mxu0
    %v1989 = vadd.f32 %v1162, %v1988
    %v1990 = vpop.f32.mrf.mxu0
    %v1991 = vadd.f32 %v1166, %v1990
    %v1992 = vpop.f32.mrf.mxu0
    %v1993 = vadd.f32 %v1162, %v1992
    %v1994 = vpop.f32.mrf.mxu0
    %v1995 = vadd.f32 %v1166, %v1994
    %1996 = vmatprep.mubr.bf16.mxu0 %v1010
    %1997 = vmatmul.mubr.bf16.gmra.mxu0 %v1009
    %v1998 = vpop.f32.mrf.mxu0
    %v1999 = vadd.f32 %v1162, %v1998
    %v2000 = vpop.f32.mrf.mxu0
    %v2001 = vadd.f32 %v1166, %v2000
    %v2002 = vpop.f32.mrf.mxu0
    %v2003 = vadd.f32 %v1162, %v2002
    %v2004 = vpop.f32.mrf.mxu0
    %v2005 = vadd.f32 %v1166, %v2004
    %2006 = vmatprep.mubr.bf16.mxu0 %v1012
    %2007 = vmatmul.mubr.bf16.gmra.mxu0 %v1011
    %v2008 = vpop.f32.mrf.mxu0
    %v2009 = vadd.f32 %v1162, %v2008
    %v2010 = vpop.f32.mrf.mxu0
    %v2011 = vadd.f32 %v1166, %v2010
    %v2012 = vpop.f32.mrf.mxu0
    %v2013 = vadd.f32 %v1162, %v2012
    %v2014 = vpop.f32.mrf.mxu0
    %v2015 = vadd.f32 %v1166, %v2014
    %2016 = vmatprep.mubr.bf16.mxu0 %v1014
    %2017 = vmatmul.mubr.bf16.gmra.mxu0 %v1013
    %v2018 = vpop.f32.mrf.mxu0
    %v2019 = vadd.f32 %v1162, %v2018
    %v2020 = vpop.f32.mrf.mxu0
    %v2021 = vadd.f32 %v1166, %v2020
    %v2022 = vpop.f32.mrf.mxu0
    %v2023 = vadd.f32 %v1162, %v2022
    %v2024 = vpop.f32.mrf.mxu0
    %v2025 = vadd.f32 %v1166, %v2024
    %2026 = vmatprep.mubr.bf16.mxu0 %v1016
    %2027 = vmatmul.mubr.bf16.gmra.mxu0 %v1015
    %v2028 = vpop.f32.mrf.mxu0
    %v2029 = vadd.f32 %v1162, %v2028
    %v2030 = vpop.f32.mrf.mxu0
    %v2031 = vadd.f32 %v1166, %v2030
    %v2032 = vpop.f32.mrf.mxu0
    %v2033 = vadd.f32 %v1162, %v2032
    %v2034 = vpop.f32.mrf.mxu0
    %v2035 = vadd.f32 %v1166, %v2034
    %2036 = vmatprep.mubr.bf16.mxu0 %v1018
    %2037 = vmatmul.mubr.bf16.gmra.mxu0 %v1017
    %v2038 = vpop.f32.mrf.mxu0
    %v2039 = vadd.f32 %v1162, %v2038
    %v2040 = vpop.f32.mrf.mxu0
    %v2041 = vadd.f32 %v1166, %v2040
    %v2042 = vpop.f32.mrf.mxu0
    %v2043 = vadd.f32 %v1162, %v2042
    %v2044 = vpop.f32.mrf.mxu0
    %v2045 = vadd.f32 %v1166, %v2044
    %2046 = vmatprep.mubr.bf16.mxu0 %v1020
    %2047 = vmatmul.mubr.bf16.gmra.mxu0 %v1019
    %v2048 = vpop.f32.mrf.mxu0
    %v2049 = vadd.f32 %v1162, %v2048
    %v2050 = vpop.f32.mrf.mxu0
    %v2051 = vadd.f32 %v1166, %v2050
    %v2052 = vpop.f32.mrf.mxu0
    %v2053 = vadd.f32 %v1162, %v2052
    %v2054 = vpop.f32.mrf.mxu0
    %v2055 = vadd.f32 %v1166, %v2054
    %2056 = vdwg.mxu0
    %2057 = vmatprep.subr.bf16.mxu0 %v1636
    %2058 = vmatpush1.bf16.msra.mxu0 %v1635
    %2059 = vmatprep.subr.bf16.mxu0 %v1628
    %2060 = vmatpush1.bf16.msra.mxu0 %v1627
    %2061 = vmatprep.subr.bf16.mxu0 %v1620
    %2062 = vmatpush1.bf16.msra.mxu0 %v1619
    %2063 = vmatprep.subr.bf16.mxu0 %v1612
    %2064 = vmatpush1.bf16.msra.mxu0 %v1611
    %2065 = vmatprep.subr.bf16.mxu0 %v1604
    %2066 = vmatpush1.bf16.msra.mxu0 %v1603
    %2067 = vmatprep.subr.bf16.mxu0 %v1596
    %2068 = vmatpush1.bf16.msra.mxu0 %v1595
    %2069 = vmatprep.subr.bf16.mxu0 %v1588
    %2070 = vmatpush1.bf16.msra.mxu0 %v1587
    %2071 = vmatprep.subr.bf16.mxu0 %v1580
    %2072 = vmatpush1.bf16.msra.mxu0 %v1579
    %2073 = vmatprep.subr.bf16.mxu0 %v1700
    %2074 = vmatpush2.bf16.msra.mxu0 %v1699
    %2075 = vmatprep.subr.bf16.mxu0 %v1692
    %2076 = vmatpush2.bf16.msra.mxu0 %v1691
    %2077 = vmatprep.subr.bf16.mxu0 %v1684
    %2078 = vmatpush2.bf16.msra.mxu0 %v1683
    %2079 = vmatprep.subr.bf16.mxu0 %v1676
    %2080 = vmatpush2.bf16.msra.mxu0 %v1675
    %2081 = vmatprep.subr.bf16.mxu0 %v1668
    %2082 = vmatpush2.bf16.msra.mxu0 %v1667
    %2083 = vmatprep.subr.bf16.mxu0 %v1660
    %2084 = vmatpush2.bf16.msra.mxu0 %v1659
    %2085 = vmatprep.subr.bf16.mxu0 %v1652
    %2086 = vmatpush2.bf16.msra.mxu0 %v1651
    %2087 = vmatprep.subr.bf16.mxu0 %v1644
    %2088 = vmatpush2.bf16.msra.mxu0 %v1643
    %2089 = vmatprep.mubr.bf16.mxu0 %v1006
    %2090 = vmatmul.mubr.bf16.gmra.mxu0 %v1005
    %v2091 = vpop.f32.mrf.mxu0
    %v2092 = vadd.f32 %v1170, %v2091
    %v2093 = vpop.f32.mrf.mxu0
    %v2094 = vadd.f32 %v1174, %v2093
    %v2095 = vpop.f32.mrf.mxu0
    %v2096 = vadd.f32 %v1170, %v2095
    %v2097 = vpop.f32.mrf.mxu0
    %v2098 = vadd.f32 %v1174, %v2097
    %2099 = vmatprep.mubr.bf16.mxu0 %v1008
    %2100 = vmatmul.mubr.bf16.gmra.mxu0 %v1007
    %v2101 = vpop.f32.mrf.mxu0
    %v2102 = vadd.f32 %v1170, %v2101
    %v2103 = vpop.f32.mrf.mxu0
    %v2104 = vadd.f32 %v1174, %v2103
    %v2105 = vpop.f32.mrf.mxu0
    %v2106 = vadd.f32 %v1170, %v2105
    %v2107 = vpop.f32.mrf.mxu0
    %v2108 = vadd.f32 %v1174, %v2107
    %2109 = vmatprep.mubr.bf16.mxu0 %v1010
    %2110 = vmatmul.mubr.bf16.gmra.mxu0 %v1009
    %v2111 = vpop.f32.mrf.mxu0
    %v2112 = vadd.f32 %v1170, %v2111
    %v2113 = vpop.f32.mrf.mxu0
    %v2114 = vadd.f32 %v1174, %v2113
    %v2115 = vpop.f32.mrf.mxu0
    %v2116 = vadd.f32 %v1170, %v2115
    %v2117 = vpop.f32.mrf.mxu0
    %v2118 = vadd.f32 %v1174, %v2117
    %2119 = vmatprep.mubr.bf16.mxu0 %v1012
    %2120 = vmatmul.mubr.bf16.gmra.mxu0 %v1011
    %v2121 = vpop.f32.mrf.mxu0
    %v2122 = vadd.f32 %v1170, %v2121
    %v2123 = vpop.f32.mrf.mxu0
    %v2124 = vadd.f32 %v1174, %v2123
    %v2125 = vpop.f32.mrf.mxu0
    %v2126 = vadd.f32 %v1170, %v2125
    %v2127 = vpop.f32.mrf.mxu0
    %v2128 = vadd.f32 %v1174, %v2127
    %2129 = vmatprep.mubr.bf16.mxu0 %v1014
    %2130 = vmatmul.mubr.bf16.gmra.mxu0 %v1013
    %v2131 = vpop.f32.mrf.mxu0
    %v2132 = vadd.f32 %v1170, %v2131
    %v2133 = vpop.f32.mrf.mxu0
    %v2134 = vadd.f32 %v1174, %v2133
    %v2135 = vpop.f32.mrf.mxu0
    %v2136 = vadd.f32 %v1170, %v2135
    %v2137 = vpop.f32.mrf.mxu0
    %v2138 = vadd.f32 %v1174, %v2137
    %2139 = vmatprep.mubr.bf16.mxu0 %v1016
    %2140 = vmatmul.mubr.bf16.gmra.mxu0 %v1015
    %v2141 = vpop.f32.mrf.mxu0
    %v2142 = vadd.f32 %v1170, %v2141
    %v2143 = vpop.f32.mrf.mxu0
    %v2144 = vadd.f32 %v1174, %v2143
    %v2145 = vpop.f32.mrf.mxu0
    %v2146 = vadd.f32 %v1170, %v2145
    %v2147 = vpop.f32.mrf.mxu0
    %v2148 = vadd.f32 %v1174, %v2147
    %2149 = vmatprep.mubr.bf16.mxu0 %v1018
    %2150 = vmatmul.mubr.bf16.gmra.mxu0 %v1017
    %v2151 = vpop.f32.mrf.mxu0
    %v2152 = vadd.f32 %v1170, %v2151
    %v2153 = vpop.f32.mrf.mxu0
    %v2154 = vadd.f32 %v1174, %v2153
    %v2155 = vpop.f32.mrf.mxu0
    %v2156 = vadd.f32 %v1170, %v2155
    %v2157 = vpop.f32.mrf.mxu0
    %v2158 = vadd.f32 %v1174, %v2157
    %2159 = vmatprep.mubr.bf16.mxu0 %v1020
    %2160 = vmatmul.mubr.bf16.gmra.mxu0 %v1019
    %v2161 = vpop.f32.mrf.mxu0
    %v2162 = vadd.f32 %v1170, %v2161
    %v2163 = vpop.f32.mrf.mxu0
    %v2164 = vadd.f32 %v1174, %v2163
    %v2165 = vpop.f32.mrf.mxu0
    %v2166 = vadd.f32 %v1170, %v2165
    %v2167 = vpop.f32.mrf.mxu0
    %v2168 = vadd.f32 %v1174, %v2167
    %2169 = vdwg.mxu0
    %2170 = vmatprep.subr.bf16.mxu0 %v1638
    %2171 = vmatpush1.bf16.msra.mxu0 %v1637
    %2172 = vmatprep.subr.bf16.mxu0 %v1630
    %2173 = vmatpush1.bf16.msra.mxu0 %v1629
    %2174 = vmatprep.subr.bf16.mxu0 %v1622
    %2175 = vmatpush1.bf16.msra.mxu0 %v1621
    %2176 = vmatprep.subr.bf16.mxu0 %v1614
    %2177 = vmatpush1.bf16.msra.mxu0 %v1613
    %2178 = vmatprep.subr.bf16.mxu0 %v1606
    %2179 = vmatpush1.bf16.msra.mxu0 %v1605
    %2180 = vmatprep.subr.bf16.mxu0 %v1598
    %2181 = vmatpush1.bf16.msra.mxu0 %v1597
    %2182 = vmatprep.subr.bf16.mxu0 %v1590
    %2183 = vmatpush1.bf16.msra.mxu0 %v1589
    %2184 = vmatprep.subr.bf16.mxu0 %v1582
    %2185 = vmatpush1.bf16.msra.mxu0 %v1581
    %2186 = vmatprep.subr.bf16.mxu0 %v1702
    %2187 = vmatpush2.bf16.msra.mxu0 %v1701
    %2188 = vmatprep.subr.bf16.mxu0 %v1694
    %2189 = vmatpush2.bf16.msra.mxu0 %v1693
    %2190 = vmatprep.subr.bf16.mxu0 %v1686
    %2191 = vmatpush2.bf16.msra.mxu0 %v1685
    %2192 = vmatprep.subr.bf16.mxu0 %v1678
    %2193 = vmatpush2.bf16.msra.mxu0 %v1677
    %2194 = vmatprep.subr.bf16.mxu0 %v1670
    %2195 = vmatpush2.bf16.msra.mxu0 %v1669
    %2196 = vmatprep.subr.bf16.mxu0 %v1662
    %2197 = vmatpush2.bf16.msra.mxu0 %v1661
    %2198 = vmatprep.subr.bf16.mxu0 %v1654
    %2199 = vmatpush2.bf16.msra.mxu0 %v1653
    %2200 = vmatprep.subr.bf16.mxu0 %v1646
    %2201 = vmatpush2.bf16.msra.mxu0 %v1645
    %2202 = vmatprep.mubr.bf16.mxu0 %v1006
    %2203 = vmatmul.mubr.bf16.gmra.mxu0 %v1005
    %v2204 = vpop.f32.mrf.mxu0
    %v2205 = vadd.f32 %v1178, %v2204
    %v2206 = vpop.f32.mrf.mxu0
    %v2207 = vadd.f32 %v1182, %v2206
    %v2208 = vpop.f32.mrf.mxu0
    %v2209 = vadd.f32 %v1178, %v2208
    %v2210 = vpop.f32.mrf.mxu0
    %v2211 = vadd.f32 %v1182, %v2210
    %2212 = vmatprep.mubr.bf16.mxu0 %v1008
    %2213 = vmatmul.mubr.bf16.gmra.mxu0 %v1007
    %v2214 = vpop.f32.mrf.mxu0
    %v2215 = vadd.f32 %v1178, %v2214
    %v2216 = vpop.f32.mrf.mxu0
    %v2217 = vadd.f32 %v1182, %v2216
    %v2218 = vpop.f32.mrf.mxu0
    %v2219 = vadd.f32 %v1178, %v2218
    %v2220 = vpop.f32.mrf.mxu0
    %v2221 = vadd.f32 %v1182, %v2220
    %2222 = vmatprep.mubr.bf16.mxu0 %v1010
    %2223 = vmatmul.mubr.bf16.gmra.mxu0 %v1009
    %v2224 = vpop.f32.mrf.mxu0
    %v2225 = vadd.f32 %v1178, %v2224
    %v2226 = vpop.f32.mrf.mxu0
    %v2227 = vadd.f32 %v1182, %v2226
    %v2228 = vpop.f32.mrf.mxu0
    %v2229 = vadd.f32 %v1178, %v2228
    %v2230 = vpop.f32.mrf.mxu0
    %v2231 = vadd.f32 %v1182, %v2230
    %2232 = vmatprep.mubr.bf16.mxu0 %v1012
    %2233 = vmatmul.mubr.bf16.gmra.mxu0 %v1011
    %v2234 = vpop.f32.mrf.mxu0
    %v2235 = vadd.f32 %v1178, %v2234
    %v2236 = vpop.f32.mrf.mxu0
    %v2237 = vadd.f32 %v1182, %v2236
    %v2238 = vpop.f32.mrf.mxu0
    %v2239 = vadd.f32 %v1178, %v2238
    %v2240 = vpop.f32.mrf.mxu0
    %v2241 = vadd.f32 %v1182, %v2240
    %2242 = vmatprep.mubr.bf16.mxu0 %v1014
    %2243 = vmatmul.mubr.bf16.gmra.mxu0 %v1013
    %v2244 = vpop.f32.mrf.mxu0
    %v2245 = vadd.f32 %v1178, %v2244
    %v2246 = vpop.f32.mrf.mxu0
    %v2247 = vadd.f32 %v1182, %v2246
    %v2248 = vpop.f32.mrf.mxu0
    %v2249 = vadd.f32 %v1178, %v2248
    %v2250 = vpop.f32.mrf.mxu0
    %v2251 = vadd.f32 %v1182, %v2250
    %2252 = vmatprep.mubr.bf16.mxu0 %v1016
    %2253 = vmatmul.mubr.bf16.gmra.mxu0 %v1015
    %v2254 = vpop.f32.mrf.mxu0
    %v2255 = vadd.f32 %v1178, %v2254
    %v2256 = vpop.f32.mrf.mxu0
    %v2257 = vadd.f32 %v1182, %v2256
    %v2258 = vpop.f32.mrf.mxu0
    %v2259 = vadd.f32 %v1178, %v2258
    %v2260 = vpop.f32.mrf.mxu0
    %v2261 = vadd.f32 %v1182, %v2260
    %2262 = vmatprep.mubr.bf16.mxu0 %v1018
    %2263 = vmatmul.mubr.bf16.gmra.mxu0 %v1017
    %v2264 = vpop.f32.mrf.mxu0
    %v2265 = vadd.f32 %v1178, %v2264
    %v2266 = vpop.f32.mrf.mxu0
    %v2267 = vadd.f32 %v1182, %v2266
    %v2268 = vpop.f32.mrf.mxu0
    %v2269 = vadd.f32 %v1178, %v2268
    %v2270 = vpop.f32.mrf.mxu0
    %v2271 = vadd.f32 %v1182, %v2270
    %2272 = vmatprep.mubr.bf16.mxu0 %v1020
    %2273 = vmatmul.mubr.bf16.gmra.mxu0 %v1019
    %v2274 = vpop.f32.mrf.mxu0
    %v2275 = vadd.f32 %v1178, %v2274
    %v2276 = vpop.f32.mrf.mxu0
    %v2277 = vadd.f32 %v1182, %v2276
    %v2278 = vpop.f32.mrf.mxu0
    %v2279 = vadd.f32 %v1178, %v2278
    %v2280 = vpop.f32.mrf.mxu0
    %v2281 = vadd.f32 %v1182, %v2280
    %2282 = vdwg.mxu0
    %v2283 = vmax.f32 %v1866, 0.0
    %v2284 = vmax.f32 %v1868, 0.0
    %v2285 = vmax.f32 %v1979, 0.0
    %v2286 = vmax.f32 %v1981, 0.0
    %v2287 = vmax.f32 %v2092, 0.0
    %v2288 = vmax.f32 %v2094, 0.0
    %v2289 = vmax.f32 %v2205, 0.0
    %v2290 = vmax.f32 %v2207, 0.0
    %v2291 = vmax.f32 %v1870, 0.0
    %v2292 = vmax.f32 %v1872, 0.0
    %v2293 = vmax.f32 %v1983, 0.0
    %v2294 = vmax.f32 %v1985, 0.0
    %v2295 = vmax.f32 %v2096, 0.0
    %v2296 = vmax.f32 %v2098, 0.0
    %v2297 = vmax.f32 %v2209, 0.0
    %v2298 = vmax.f32 %v2211, 0.0
    %v2299 = vmax.f32 %v1876, 0.0
    %v2300 = vmax.f32 %v1878, 0.0
    %v2301 = vmax.f32 %v1989, 0.0
    %v2302 = vmax.f32 %v1991, 0.0
    %v2303 = vmax.f32 %v2102, 0.0
    %v2304 = vmax.f32 %v2104, 0.0
    %v2305 = vmax.f32 %v2215, 0.0
    %v2306 = vmax.f32 %v2217, 0.0
    %v2307 = vmax.f32 %v1880, 0.0
    %v2308 = vmax.f32 %v1882, 0.0
    %v2309 = vmax.f32 %v1993, 0.0
    %v2310 = vmax.f32 %v1995, 0.0
    %v2311 = vmax.f32 %v2106, 0.0
    %v2312 = vmax.f32 %v2108, 0.0
    %v2313 = vmax.f32 %v2219, 0.0
    %v2314 = vmax.f32 %v2221, 0.0
    %v2315 = vmax.f32 %v1886, 0.0
    %v2316 = vmax.f32 %v1888, 0.0
    %v2317 = vmax.f32 %v1999, 0.0
    %v2318 = vmax.f32 %v2001, 0.0
    %v2319 = vmax.f32 %v2112, 0.0
    %v2320 = vmax.f32 %v2114, 0.0
    %v2321 = vmax.f32 %v2225, 0.0
    %v2322 = vmax.f32 %v2227, 0.0
    %v2323 = vmax.f32 %v1890, 0.0
    %v2324 = vmax.f32 %v1892, 0.0
    %v2325 = vmax.f32 %v2003, 0.0
    %v2326 = vmax.f32 %v2005, 0.0
    %v2327 = vmax.f32 %v2116, 0.0
    %v2328 = vmax.f32 %v2118, 0.0
    %v2329 = vmax.f32 %v2229, 0.0
    %v2330 = vmax.f32 %v2231, 0.0
    %v2331 = vmax.f32 %v1896, 0.0
    %v2332 = vmax.f32 %v1898, 0.0
    %v2333 = vmax.f32 %v2009, 0.0
    %v2334 = vmax.f32 %v2011, 0.0
    %v2335 = vmax.f32 %v2122, 0.0
    %v2336 = vmax.f32 %v2124, 0.0
    %v2337 = vmax.f32 %v2235, 0.0
    %v2338 = vmax.f32 %v2237, 0.0
    %v2339 = vmax.f32 %v1900, 0.0
    %v2340 = vmax.f32 %v1902, 0.0
    %v2341 = vmax.f32 %v2013, 0.0
    %v2342 = vmax.f32 %v2015, 0.0
    %v2343 = vmax.f32 %v2126, 0.0
    %v2344 = vmax.f32 %v2128, 0.0
    %v2345 = vmax.f32 %v2239, 0.0
    %v2346 = vmax.f32 %v2241, 0.0
    %v2347 = vmax.f32 %v1906, 0.0
    %v2348 = vmax.f32 %v1908, 0.0
    %v2349 = vmax.f32 %v2019, 0.0
    %v2350 = vmax.f32 %v2021, 0.0
    %v2351 = vmax.f32 %v2132, 0.0
    %v2352 = vmax.f32 %v2134, 0.0
    %v2353 = vmax.f32 %v2245, 0.0
    %v2354 = vmax.f32 %v2247, 0.0
    %v2355 = vmax.f32 %v1910, 0.0
    %v2356 = vmax.f32 %v1912, 0.0
    %v2357 = vmax.f32 %v2023, 0.0
    %v2358 = vmax.f32 %v2025, 0.0
    %v2359 = vmax.f32 %v2136, 0.0
    %v2360 = vmax.f32 %v2138, 0.0
    %v2361 = vmax.f32 %v2249, 0.0
    %v2362 = vmax.f32 %v2251, 0.0
    %v2363 = vmax.f32 %v1916, 0.0
    %v2364 = vmax.f32 %v1918, 0.0
    %v2365 = vmax.f32 %v2029, 0.0
    %v2366 = vmax.f32 %v2031, 0.0
    %v2367 = vmax.f32 %v2142, 0.0
    %v2368 = vmax.f32 %v2144, 0.0
    %v2369 = vmax.f32 %v2255, 0.0
    %v2370 = vmax.f32 %v2257, 0.0
    %v2371 = vmax.f32 %v1920, 0.0
    %v2372 = vmax.f32 %v1922, 0.0
    %v2373 = vmax.f32 %v2033, 0.0
    %v2374 = vmax.f32 %v2035, 0.0
    %v2375 = vmax.f32 %v2146, 0.0
    %v2376 = vmax.f32 %v2148, 0.0
    %v2377 = vmax.f32 %v2259, 0.0
    %v2378 = vmax.f32 %v2261, 0.0
    %v2379 = vmax.f32 %v1926, 0.0
    %v2380 = vmax.f32 %v1928, 0.0
    %v2381 = vmax.f32 %v2039, 0.0
    %v2382 = vmax.f32 %v2041, 0.0
    %v2383 = vmax.f32 %v2152, 0.0
    %v2384 = vmax.f32 %v2154, 0.0
    %v2385 = vmax.f32 %v2265, 0.0
    %v2386 = vmax.f32 %v2267, 0.0
    %v2387 = vmax.f32 %v1930, 0.0
    %v2388 = vmax.f32 %v1932, 0.0
    %v2389 = vmax.f32 %v2043, 0.0
    %v2390 = vmax.f32 %v2045, 0.0
    %v2391 = vmax.f32 %v2156, 0.0
    %v2392 = vmax.f32 %v2158, 0.0
    %v2393 = vmax.f32 %v2269, 0.0
    %v2394 = vmax.f32 %v2271, 0.0
    %v2395 = vmax.f32 %v1936, 0.0
    %v2396 = vmax.f32 %v1938, 0.0
    %v2397 = vmax.f32 %v2049, 0.0
    %v2398 = vmax.f32 %v2051, 0.0
    %v2399 = vmax.f32 %v2162, 0.0
    %v2400 = vmax.f32 %v2164, 0.0
    %v2401 = vmax.f32 %v2275, 0.0
    %v2402 = vmax.f32 %v2277, 0.0
    %v2403 = vmax.f32 %v1940, 0.0
    %v2404 = vmax.f32 %v1942, 0.0
    %v2405 = vmax.f32 %v2053, 0.0
    %v2406 = vmax.f32 %v2055, 0.0
    %v2407 = vmax.f32 %v2166, 0.0
    %v2408 = vmax.f32 %v2168, 0.0
    %v2409 = vmax.f32 %v2279, 0.0
    %v2410 = vmax.f32 %v2281, 0.0
    %v2411 = vmax.f32 %v2283, %v2291
    %v2412 = vmax.f32 %v2411, %v2299
    %v2413 = vmax.f32 %v2412, %v2307
    %v2414 = vmax.f32 %v2413, %v2315
    %v2415 = vmax.f32 %v2414, %v2323
    %v2416 = vmax.f32 %v2415, %v2331
    %v2417 = vmax.f32 %v2416, %v2339
    %v2418 = vrot.slane %v2417, 4
    %v2419 = vmax.f32 %v2417, %v2418
    %v2420 = vrot.slane %v2419, 2
    %v2421 = vmax.f32 %v2419, %v2420
    %v2422 = vrot.slane %v2421, 1
    %v2423 = vmax.f32 %v2421, %v2422
    %v2424 = vmax.f32 %v2284, %v2292
    %v2425 = vmax.f32 %v2424, %v2300
    %v2426 = vmax.f32 %v2425, %v2308
    %v2427 = vmax.f32 %v2426, %v2316
    %v2428 = vmax.f32 %v2427, %v2324
    %v2429 = vmax.f32 %v2428, %v2332
    %v2430 = vmax.f32 %v2429, %v2340
    %v2431 = vrot.slane %v2430, 4
    %v2432 = vmax.f32 %v2430, %v2431
    %v2433 = vrot.slane %v2432, 2
    %v2434 = vmax.f32 %v2432, %v2433
    %v2435 = vrot.slane %v2434, 1
    %v2436 = vmax.f32 %v2434, %v2435
    %v2437 = vmax.f32 %v2285, %v2293
    %v2438 = vmax.f32 %v2437, %v2301
    %v2439 = vmax.f32 %v2438, %v2309
    %v2440 = vmax.f32 %v2439, %v2317
    %v2441 = vmax.f32 %v2440, %v2325
    %v2442 = vmax.f32 %v2441, %v2333
    %v2443 = vmax.f32 %v2442, %v2341
    %v2444 = vrot.slane %v2443, 4
    %v2445 = vmax.f32 %v2443, %v2444
    %v2446 = vrot.slane %v2445, 2
    %v2447 = vmax.f32 %v2445, %v2446
    %v2448 = vrot.slane %v2447, 1
    %v2449 = vmax.f32 %v2447, %v2448
    %v2450 = vmax.f32 %v2286, %v2294
    %v2451 = vmax.f32 %v2450, %v2302
    %v2452 = vmax.f32 %v2451, %v2310
    %v2453 = vmax.f32 %v2452, %v2318
    %v2454 = vmax.f32 %v2453, %v2326
    %v2455 = vmax.f32 %v2454, %v2334
    %v2456 = vmax.f32 %v2455, %v2342
    %v2457 = vrot.slane %v2456, 4
    %v2458 = vmax.f32 %v2456, %v2457
    %v2459 = vrot.slane %v2458, 2
    %v2460 = vmax.f32 %v2458, %v2459
    %v2461 = vrot.slane %v2460, 1
    %v2462 = vmax.f32 %v2460, %v2461
    %v2463 = vmax.f32 %v2287, %v2295
    %v2464 = vmax.f32 %v2463, %v2303
    %v2465 = vmax.f32 %v2464, %v2311
    %v2466 = vmax.f32 %v2465, %v2319
    %v2467 = vmax.f32 %v2466, %v2327
    %v2468 = vmax.f32 %v2467, %v2335
    %v2469 = vmax.f32 %v2468, %v2343
    %v2470 = vrot.slane %v2469, 4
    %v2471 = vmax.f32 %v2469, %v2470
    %v2472 = vrot.slane %v2471, 2
    %v2473 = vmax.f32 %v2471, %v2472
    %v2474 = vrot.slane %v2473, 1
    %v2475 = vmax.f32 %v2473, %v2474
    %v2476 = vmax.f32 %v2288, %v2296
    %v2477 = vmax.f32 %v2476, %v2304
    %v2478 = vmax.f32 %v2477, %v2312
    %v2479 = vmax.f32 %v2478, %v2320
    %v2480 = vmax.f32 %v2479, %v2328
    %v2481 = vmax.f32 %v2480, %v2336
    %v2482 = vmax.f32 %v2481, %v2344
    %v2483 = vrot.slane %v2482, 4
    %v2484 = vmax.f32 %v2482, %v2483
    %v2485 = vrot.slane %v2484, 2
    %v2486 = vmax.f32 %v2484, %v2485
    %v2487 = vrot.slane %v2486, 1
    %v2488 = vmax.f32 %v2486, %v2487
    %v2489 = vmax.f32 %v2289, %v2297
    %v2490 = vmax.f32 %v2489, %v2305
    %v2491 = vmax.f32 %v2490, %v2313
    %v2492 = vmax.f32 %v2491, %v2321
    %v2493 = vmax.f32 %v2492, %v2329
    %v2494 = vmax.f32 %v2493, %v2337
    %v2495 = vmax.f32 %v2494, %v2345
    %v2496 = vrot.slane %v2495, 4
    %v2497 = vmax.f32 %v2495, %v2496
    %v2498 = vrot.slane %v2497, 2
    %v2499 = vmax.f32 %v2497, %v2498
    %v2500 = vrot.slane %v2499, 1
    %v2501 = vmax.f32 %v2499, %v2500
    %v2502 = vmax.f32 %v2290, %v2298
    %v2503 = vmax.f32 %v2502, %v2306
    %v2504 = vmax.f32 %v2503, %v2314
    %v2505 = vmax.f32 %v2504, %v2322
    %v2506 = vmax.f32 %v2505, %v2330
    %v2507 = vmax.f32 %v2506, %v2338
    %v2508 = vmax.f32 %v2507, %v2346
    %v2509 = vrot.slane %v2508, 4
    %v2510 = vmax.f32 %v2508, %v2509
    %v2511 = vrot.slane %v2510, 2
    %v2512 = vmax.f32 %v2510, %v2511
    %v2513 = vrot.slane %v2512, 1
    %v2514 = vmax.f32 %v2512, %v2513
    %v2515 = vmax.f32 %v2347, %v2355
    %v2516 = vmax.f32 %v2515, %v2363
    %v2517 = vmax.f32 %v2516, %v2371
    %v2518 = vmax.f32 %v2517, %v2379
    %v2519 = vmax.f32 %v2518, %v2387
    %v2520 = vmax.f32 %v2519, %v2395
    %v2521 = vmax.f32 %v2520, %v2403
    %v2522 = vrot.slane %v2521, 4
    %v2523 = vmax.f32 %v2521, %v2522
    %v2524 = vrot.slane %v2523, 2
    %v2525 = vmax.f32 %v2523, %v2524
    %v2526 = vrot.slane %v2525, 1
    %v2527 = vmax.f32 %v2525, %v2526
    %v2528 = vmax.f32 %v2348, %v2356
    %v2529 = vmax.f32 %v2528, %v2364
    %v2530 = vmax.f32 %v2529, %v2372
    %v2531 = vmax.f32 %v2530, %v2380
    %v2532 = vmax.f32 %v2531, %v2388
    %v2533 = vmax.f32 %v2532, %v2396
    %v2534 = vmax.f32 %v2533, %v2404
    %v2535 = vrot.slane %v2534, 4
    %v2536 = vmax.f32 %v2534, %v2535
    %v2537 = vrot.slane %v2536, 2
    %v2538 = vmax.f32 %v2536, %v2537
    %v2539 = vrot.slane %v2538, 1
    %v2540 = vmax.f32 %v2538, %v2539
    %v2541 = vmax.f32 %v2349, %v2357
    %v2542 = vmax.f32 %v2541, %v2365
    %v2543 = vmax.f32 %v2542, %v2373
    %v2544 = vmax.f32 %v2543, %v2381
    %v2545 = vmax.f32 %v2544, %v2389
    %v2546 = vmax.f32 %v2545, %v2397
    %v2547 = vmax.f32 %v2546, %v2405
    %v2548 = vrot.slane %v2547, 4
    %v2549 = vmax.f32 %v2547, %v2548
    %v2550 = vrot.slane %v2549, 2
    %v2551 = vmax.f32 %v2549, %v2550
    %v2552 = vrot.slane %v2551, 1
    %v2553 = vmax.f32 %v2551, %v2552
    %v2554 = vmax.f32 %v2350, %v2358
    %v2555 = vmax.f32 %v2554, %v2366
    %v2556 = vmax.f32 %v2555, %v2374
    %v2557 = vmax.f32 %v2556, %v2382
    %v2558 = vmax.f32 %v2557, %v2390
    %v2559 = vmax.f32 %v2558, %v2398
    %v2560 = vmax.f32 %v2559, %v2406
    %v2561 = vrot.slane %v2560, 4
    %v2562 = vmax.f32 %v2560, %v2561
    %v2563 = vrot.slane %v2562, 2
    %v2564 = vmax.f32 %v2562, %v2563
    %v2565 = vrot.slane %v2564, 1
    %v2566 = vmax.f32 %v2564, %v2565
    %v2567 = vmax.f32 %v2351, %v2359
    %v2568 = vmax.f32 %v2567, %v2367
    %v2569 = vmax.f32 %v2568, %v2375
    %v2570 = vmax.f32 %v2569, %v2383
    %v2571 = vmax.f32 %v2570, %v2391
    %v2572 = vmax.f32 %v2571, %v2399
    %v2573 = vmax.f32 %v2572, %v2407
    %v2574 = vrot.slane %v2573, 4
    %v2575 = vmax.f32 %v2573, %v2574
    %v2576 = vrot.slane %v2575, 2
    %v2577 = vmax.f32 %v2575, %v2576
    %v2578 = vrot.slane %v2577, 1
    %v2579 = vmax.f32 %v2577, %v2578
    %v2580 = vmax.f32 %v2352, %v2360
    %v2581 = vmax.f32 %v2580, %v2368
    %v2582 = vmax.f32 %v2581, %v2376
    %v2583 = vmax.f32 %v2582, %v2384
    %v2584 = vmax.f32 %v2583, %v2392
    %v2585 = vmax.f32 %v2584, %v2400
    %v2586 = vmax.f32 %v2585, %v2408
    %v2587 = vrot.slane %v2586, 4
    %v2588 = vmax.f32 %v2586, %v2587
    %v2589 = vrot.slane %v2588, 2
    %v2590 = vmax.f32 %v2588, %v2589
    %v2591 = vrot.slane %v2590, 1
    %v2592 = vmax.f32 %v2590, %v2591
    %v2593 = vmax.f32 %v2353, %v2361
    %v2594 = vmax.f32 %v2593, %v2369
    %v2595 = vmax.f32 %v2594, %v2377
    %v2596 = vmax.f32 %v2595, %v2385
    %v2597 = vmax.f32 %v2596, %v2393
    %v2598 = vmax.f32 %v2597, %v2401
    %v2599 = vmax.f32 %v2598, %v2409
    %v2600 = vrot.slane %v2599, 4
    %v2601 = vmax.f32 %v2599, %v2600
    %v2602 = vrot.slane %v2601, 2
    %v2603 = vmax.f32 %v2601, %v2602
    %v2604 = vrot.slane %v2603, 1
    %v2605 = vmax.f32 %v2603, %v2604
    %v2606 = vmax.f32 %v2354, %v2362
    %v2607 = vmax.f32 %v2606, %v2370
    %v2608 = vmax.f32 %v2607, %v2378
    %v2609 = vmax.f32 %v2608, %v2386
    %v2610 = vmax.f32 %v2609, %v2394
    %v2611 = vmax.f32 %v2610, %v2402
    %v2612 = vmax.f32 %v2611, %v2410
    %v2613 = vrot.slane %v2612, 4
    %v2614 = vmax.f32 %v2612, %v2613
    %v2615 = vrot.slane %v2614, 2
    %v2616 = vmax.f32 %v2614, %v2615
    %v2617 = vrot.slane %v2616, 1
    %v2618 = vmax.f32 %v2616, %v2617
    %v2619 = vld [vmem:[#allocation2] sm:$0xff]
    %v2620 = vld [vmem:[#allocation2 + $0x8] sm:$0xff]
    %v2637 = vcombine.low %v2423, %v2436
    %v2638 = vcombine.low %v2449, %v2462
    %v2640 = vunpack.c.l.s4 1983009808
    %v2641 = vunpack.c.0.s8 %v2640
    %v2642 = vlaneseq
    %v2643 = vshrl.u32 %v2642, 7
    %v2644 = vsub.s32 %v2641, %v2643
    %v2645 = vrot.slane %v2637, %v2644
    %v2647 = vunpack.c.l.s4 1983009808
    %v2648 = vunpack.c.0.s8 %v2647
    %v2649 = vlaneseq
    %v2650 = vshrl.u32 %v2649, 7
    %v2651 = vsub.s32 %v2648, %v2650
    %v2652 = vrot.slane %v2638, %v2651
    %v2653 = vcombine.low %v2645, %v2652
    %v2654 = vcombine.low %v2475, %v2488
    %v2655 = vcombine.low %v2501, %v2514
    %v2657 = vunpack.c.l.s4 1983009808
    %v2658 = vunpack.c.0.s8 %v2657
    %v2659 = vlaneseq
    %v2660 = vshrl.u32 %v2659, 7
    %v2661 = vsub.s32 %v2658, %v2660
    %v2662 = vrot.slane %v2654, %v2661
    %v2664 = vunpack.c.l.s4 1983009808
    %v2665 = vunpack.c.0.s8 %v2664
    %v2666 = vlaneseq
    %v2667 = vshrl.u32 %v2666, 7
    %v2668 = vsub.s32 %v2665, %v2667
    %v2669 = vrot.slane %v2655, %v2668
    %v2670 = vcombine.low %v2662, %v2669
    %v2671 = vcombine.low %v2527, %v2540
    %v2672 = vcombine.low %v2553, %v2566
    %v2674 = vunpack.c.l.s4 1983009808
    %v2675 = vunpack.c.0.s8 %v2674
    %v2676 = vlaneseq
    %v2677 = vshrl.u32 %v2676, 7
    %v2678 = vsub.s32 %v2675, %v2677
    %v2679 = vrot.slane %v2671, %v2678
    %v2681 = vunpack.c.l.s4 1983009808
    %v2682 = vunpack.c.0.s8 %v2681
    %v2683 = vlaneseq
    %v2684 = vshrl.u32 %v2683, 7
    %v2685 = vsub.s32 %v2682, %v2684
    %v2686 = vrot.slane %v2672, %v2685
    %v2687 = vcombine.low %v2679, %v2686
    %v2688 = vcombine.low %v2579, %v2592
    %v2689 = vcombine.low %v2605, %v2618
    %v2691 = vunpack.c.l.s4 1983009808
    %v2692 = vunpack.c.0.s8 %v2691
    %v2693 = vlaneseq
    %v2694 = vshrl.u32 %v2693, 7
    %v2695 = vsub.s32 %v2692, %v2694
    %v2696 = vrot.slane %v2688, %v2695
    %v2698 = vunpack.c.l.s4 1983009808
    %v2699 = vunpack.c.0.s8 %v2698
    %v2700 = vlaneseq
    %v2701 = vshrl.u32 %v2700, 7
    %v2702 = vsub.s32 %v2699, %v2701
    %v2703 = vrot.slane %v2689, %v2702
    %v2704 = vcombine.low %v2696, %v2703
    %vm2705 = vcmask 1044484
    %v2706 = vsel %vm2705, %v2653, %v2653
    %vm2707 = vcmask 1046534
    %v2708 = vsel %vm2707, %v2653, %v2706
    %v2709 = vrot.slane %v2687, 7
    %vm2710 = vcmask 1041409
    %v2711 = vsel %vm2710, %v2709, %v2708
    %vm2712 = vcmask 1043459
    %v2713 = vsel %vm2712, %v2709, %v2711
    %vm2714 = vcmask 1045509
    %v2715 = vsel %vm2714, %v2709, %v2713
    %vm2716 = vcmask 1047559
    %v2717 = vsel %vm2716, %v2709, %v2715
    %v2718 = vsel %vm2705, %v2670, %v2670
    %v2719 = vsel %vm2707, %v2670, %v2718
    %v2720 = vrot.slane %v2704, 7
    %v2721 = vsel %vm2710, %v2720, %v2719
    %v2722 = vsel %vm2712, %v2720, %v2721
    %v2723 = vsel %vm2714, %v2720, %v2722
    %v2724 = vsel %vm2716, %v2720, %v2723
    %v2727 = vmax.f32 %v2619, %v2717
    %v2728 = vmax.f32 %v2620, %v2724
    %2729 = vst [vmem:[#allocation2] sm:$0xff] %v2727
    %2730 = vst [vmem:[#allocation2 + $0x8] sm:$0xff] %v2728
    // Predicated region
    $region106: #{tpu_custom_call.1} parent=1 // pred_check
      %p2731 = pneg %p195
    $region107: #{tpu_custom_call.1} parent=1 // pred_check_branch
      %2733 = sbr.rel (%p2731) target = $region109
    $region108: #{tpu_custom_call.1} parent=1 // pred_region
      %v2734 = vld [vmem:[#allocation2] sm:$0xff]
      %v2735 = vld [vmem:[#allocation2 + $0x8] sm:$0xff]
      %v2738 = vcombine.high %v2734, %v2734
      %v2740 = vunpack.c.l.s4 1983009808
      %v2741 = vunpack.c.0.s8 %v2740
      %v2742 = vlaneseq
      %v2743 = vshrl.u32 %v2742, 7
      %v2744 = vsub.s32 %v2741, %v2743
      %v2745 = vrot.slane %v2734, %v2744
      %v2747 = vunpack.c.l.s4 1983009808
      %v2748 = vunpack.c.0.s8 %v2747
      %v2749 = vlaneseq
      %v2750 = vshrl.u32 %v2749, 7
      %v2751 = vsub.s32 %v2748, %v2750
      %v2752 = vrot.slane %v2738, %v2751
      %v2753 = vcombine.high %v2745, %v2745
      %v2754 = vcombine.high %v2752, %v2752
      %v2755 = vcombine.high %v2735, %v2735
      %v2757 = vunpack.c.l.s4 1983009808
      %v2758 = vunpack.c.0.s8 %v2757
      %v2759 = vlaneseq
      %v2760 = vshrl.u32 %v2759, 7
      %v2761 = vsub.s32 %v2758, %v2760
      %v2762 = vrot.slane %v2735, %v2761
      %v2764 = vunpack.c.l.s4 1983009808
      %v2765 = vunpack.c.0.s8 %v2764
      %v2766 = vlaneseq
      %v2767 = vshrl.u32 %v2766, 7
      %v2768 = vsub.s32 %v2765, %v2767
      %v2769 = vrot.slane %v2755, %v2768
      %v2770 = vcombine.high %v2762, %v2762
      %v2771 = vcombine.high %v2769, %v2769
      %v2780 = vpack.c.bf16 %v2745, %v2745
      %v2781 = vpack.c.bf16 %v2753, %v2753
      %v2782 = vpack.c.bf16 %v2752, %v2752
      %v2783 = vpack.c.bf16 %v2754, %v2754
      %v2784 = vpack.c.bf16 %v2762, %v2762
      %v2785 = vpack.c.bf16 %v2770, %v2770
      %v2786 = vpack.c.bf16 %v2769, %v2769
      %v2787 = vpack.c.bf16 %v2771, %v2771
      %v2788 = vld [vmem:[#allocation17] sm:$0xff]
      %v2789 = vld [vmem:[#allocation17 + $0x8] sm:$0xff]
      %v2790 = vld [vmem:[#allocation17 + $0x10] sm:$0xff]
      %v2791 = vld [vmem:[#allocation17 + $0x18] sm:$0xff]
      %v2792 = vld [vmem:[#allocation17 + $0x20] sm:$0xff]
      %v2793 = vld [vmem:[#allocation17 + $0x28] sm:$0xff]
      %v2794 = vld [vmem:[#allocation17 + $0x30] sm:$0xff]
      %v2795 = vld [vmem:[#allocation17 + $0x38] sm:$0xff]
      %v2796 = vld [vmem:[#allocation17 + $0x40] sm:$0xff]
      %v2797 = vld [vmem:[#allocation17 + $0x48] sm:$0xff]
      %v2798 = vld [vmem:[#allocation17 + $0x50] sm:$0xff]
      %v2799 = vld [vmem:[#allocation17 + $0x58] sm:$0xff]
      %v2800 = vld [vmem:[#allocation17 + $0x60] sm:$0xff]
      %v2801 = vld [vmem:[#allocation17 + $0x68] sm:$0xff]
      %v2802 = vld [vmem:[#allocation17 + $0x70] sm:$0xff]
      %v2803 = vld [vmem:[#allocation17 + $0x78] sm:$0xff]
      %v2804 = vld [vmem:[#allocation17 + $0x80] sm:$0xff]
      %v2805 = vld [vmem:[#allocation17 + $0x88] sm:$0xff]
      %v2806 = vld [vmem:[#allocation17 + $0x90] sm:$0xff]
      %v2807 = vld [vmem:[#allocation17 + $0x98] sm:$0xff]
      %v2808 = vld [vmem:[#allocation17 + $0xa0] sm:$0xff]
      %v2809 = vld [vmem:[#allocation17 + $0xa8] sm:$0xff]
      %v2810 = vld [vmem:[#allocation17 + $0xb0] sm:$0xff]
      %v2811 = vld [vmem:[#allocation17 + $0xb8] sm:$0xff]
      %v2812 = vld [vmem:[#allocation17 + $0xc0] sm:$0xff]
      %v2813 = vld [vmem:[#allocation17 + $0xc8] sm:$0xff]
      %v2814 = vld [vmem:[#allocation17 + $0xd0] sm:$0xff]
      %v2815 = vld [vmem:[#allocation17 + $0xd8] sm:$0xff]
      %v2816 = vld [vmem:[#allocation17 + $0xe0] sm:$0xff]
      %v2817 = vld [vmem:[#allocation17 + $0xe8] sm:$0xff]
      %v2818 = vld [vmem:[#allocation17 + $0xf0] sm:$0xff]
      %v2819 = vld [vmem:[#allocation17 + $0xf8] sm:$0xff]
      %v2820 = vld [vmem:[#allocation17 + $0x100] sm:$0xff]
      %v2821 = vld [vmem:[#allocation17 + $0x108] sm:$0xff]
      %v2822 = vld [vmem:[#allocation17 + $0x110] sm:$0xff]
      %v2823 = vld [vmem:[#allocation17 + $0x118] sm:$0xff]
      %v2824 = vld [vmem:[#allocation17 + $0x120] sm:$0xff]
      %v2825 = vld [vmem:[#allocation17 + $0x128] sm:$0xff]
      %v2826 = vld [vmem:[#allocation17 + $0x130] sm:$0xff]
      %v2827 = vld [vmem:[#allocation17 + $0x138] sm:$0xff]
      %v2828 = vld [vmem:[#allocation17 + $0x140] sm:$0xff]
      %v2829 = vld [vmem:[#allocation17 + $0x148] sm:$0xff]
      %v2830 = vld [vmem:[#allocation17 + $0x150] sm:$0xff]
      %v2831 = vld [vmem:[#allocation17 + $0x158] sm:$0xff]
      %v2832 = vld [vmem:[#allocation17 + $0x160] sm:$0xff]
      %v2833 = vld [vmem:[#allocation17 + $0x168] sm:$0xff]
      %v2834 = vld [vmem:[#allocation17 + $0x170] sm:$0xff]
      %v2835 = vld [vmem:[#allocation17 + $0x178] sm:$0xff]
      %v2836 = vld [vmem:[#allocation17 + $0x180] sm:$0xff]
      %v2837 = vld [vmem:[#allocation17 + $0x188] sm:$0xff]
      %v2838 = vld [vmem:[#allocation17 + $0x190] sm:$0xff]
      %v2839 = vld [vmem:[#allocation17 + $0x198] sm:$0xff]
      %v2840 = vld [vmem:[#allocation17 + $0x1a0] sm:$0xff]
      %v2841 = vld [vmem:[#allocation17 + $0x1a8] sm:$0xff]
      %v2842 = vld [vmem:[#allocation17 + $0x1b0] sm:$0xff]
      %v2843 = vld [vmem:[#allocation17 + $0x1b8] sm:$0xff]
      %v2844 = vld [vmem:[#allocation17 + $0x1c0] sm:$0xff]
      %v2845 = vld [vmem:[#allocation17 + $0x1c8] sm:$0xff]
      %v2846 = vld [vmem:[#allocation17 + $0x1d0] sm:$0xff]
      %v2847 = vld [vmem:[#allocation17 + $0x1d8] sm:$0xff]
      %v2848 = vld [vmem:[#allocation17 + $0x1e0] sm:$0xff]
      %v2849 = vld [vmem:[#allocation17 + $0x1e8] sm:$0xff]
      %v2850 = vld [vmem:[#allocation17 + $0x1f0] sm:$0xff]
      %v2851 = vld [vmem:[#allocation17 + $0x1f8] sm:$0xff]
      %v2852 = vld [vmem:[#allocation17 + $0x200] sm:$0xff]
      %v2853 = vld [vmem:[#allocation17 + $0x208] sm:$0xff]
      %v2854 = vld [vmem:[#allocation17 + $0x210] sm:$0xff]
      %v2855 = vld [vmem:[#allocation17 + $0x218] sm:$0xff]
      %v2856 = vld [vmem:[#allocation17 + $0x220] sm:$0xff]
      %v2857 = vld [vmem:[#allocation17 + $0x228] sm:$0xff]
      %v2858 = vld [vmem:[#allocation17 + $0x230] sm:$0xff]
      %v2859 = vld [vmem:[#allocation17 + $0x238] sm:$0xff]
      %v2860 = vld [vmem:[#allocation17 + $0x240] sm:$0xff]
      %v2861 = vld [vmem:[#allocation17 + $0x248] sm:$0xff]
      %v2862 = vld [vmem:[#allocation17 + $0x250] sm:$0xff]
      %v2863 = vld [vmem:[#allocation17 + $0x258] sm:$0xff]
      %v2864 = vld [vmem:[#allocation17 + $0x260] sm:$0xff]
      %v2865 = vld [vmem:[#allocation17 + $0x268] sm:$0xff]
      %v2866 = vld [vmem:[#allocation17 + $0x270] sm:$0xff]
      %v2867 = vld [vmem:[#allocation17 + $0x278] sm:$0xff]
      %v2868 = vld [vmem:[#allocation17 + $0x280] sm:$0xff]
      %v2869 = vld [vmem:[#allocation17 + $0x288] sm:$0xff]
      %v2870 = vld [vmem:[#allocation17 + $0x290] sm:$0xff]
      %v2871 = vld [vmem:[#allocation17 + $0x298] sm:$0xff]
      %v2872 = vld [vmem:[#allocation17 + $0x2a0] sm:$0xff]
      %v2873 = vld [vmem:[#allocation17 + $0x2a8] sm:$0xff]
      %v2874 = vld [vmem:[#allocation17 + $0x2b0] sm:$0xff]
      %v2875 = vld [vmem:[#allocation17 + $0x2b8] sm:$0xff]
      %v2876 = vld [vmem:[#allocation17 + $0x2c0] sm:$0xff]
      %v2877 = vld [vmem:[#allocation17 + $0x2c8] sm:$0xff]
      %v2878 = vld [vmem:[#allocation17 + $0x2d0] sm:$0xff]
      %v2879 = vld [vmem:[#allocation17 + $0x2d8] sm:$0xff]
      %v2880 = vld [vmem:[#allocation17 + $0x2e0] sm:$0xff]
      %v2881 = vld [vmem:[#allocation17 + $0x2e8] sm:$0xff]
      %v2882 = vld [vmem:[#allocation17 + $0x2f0] sm:$0xff]
      %v2883 = vld [vmem:[#allocation17 + $0x2f8] sm:$0xff]
      %v2884 = vld [vmem:[#allocation17 + $0x300] sm:$0xff]
      %v2885 = vld [vmem:[#allocation17 + $0x308] sm:$0xff]
      %v2886 = vld [vmem:[#allocation17 + $0x310] sm:$0xff]
      %v2887 = vld [vmem:[#allocation17 + $0x318] sm:$0xff]
      %v2888 = vld [vmem:[#allocation17 + $0x320] sm:$0xff]
      %v2889 = vld [vmem:[#allocation17 + $0x328] sm:$0xff]
      %v2890 = vld [vmem:[#allocation17 + $0x330] sm:$0xff]
      %v2891 = vld [vmem:[#allocation17 + $0x338] sm:$0xff]
      %v2892 = vld [vmem:[#allocation17 + $0x340] sm:$0xff]
      %v2893 = vld [vmem:[#allocation17 + $0x348] sm:$0xff]
      %v2894 = vld [vmem:[#allocation17 + $0x350] sm:$0xff]
      %v2895 = vld [vmem:[#allocation17 + $0x358] sm:$0xff]
      %v2896 = vld [vmem:[#allocation17 + $0x360] sm:$0xff]
      %v2897 = vld [vmem:[#allocation17 + $0x368] sm:$0xff]
      %v2898 = vld [vmem:[#allocation17 + $0x370] sm:$0xff]
      %v2899 = vld [vmem:[#allocation17 + $0x378] sm:$0xff]
      %v2900 = vld [vmem:[#allocation17 + $0x380] sm:$0xff]
      %v2901 = vld [vmem:[#allocation17 + $0x388] sm:$0xff]
      %v2902 = vld [vmem:[#allocation17 + $0x390] sm:$0xff]
      %v2903 = vld [vmem:[#allocation17 + $0x398] sm:$0xff]
      %v2904 = vld [vmem:[#allocation17 + $0x3a0] sm:$0xff]
      %v2905 = vld [vmem:[#allocation17 + $0x3a8] sm:$0xff]
      %v2906 = vld [vmem:[#allocation17 + $0x3b0] sm:$0xff]
      %v2907 = vld [vmem:[#allocation17 + $0x3b8] sm:$0xff]
      %v2908 = vld [vmem:[#allocation17 + $0x3c0] sm:$0xff]
      %v2909 = vld [vmem:[#allocation17 + $0x3c8] sm:$0xff]
      %v2910 = vld [vmem:[#allocation17 + $0x3d0] sm:$0xff]
      %v2911 = vld [vmem:[#allocation17 + $0x3d8] sm:$0xff]
      %v2912 = vld [vmem:[#allocation17 + $0x3e0] sm:$0xff]
      %v2913 = vld [vmem:[#allocation17 + $0x3e8] sm:$0xff]
      %v2914 = vld [vmem:[#allocation17 + $0x3f0] sm:$0xff]
      %v2915 = vld [vmem:[#allocation17 + $0x3f8] sm:$0xff]
      %v2916 = vld [vmem:[#allocation17 + $0x400] sm:$0xff]
      %v2917 = vld [vmem:[#allocation17 + $0x408] sm:$0xff]
      %v2918 = vld [vmem:[#allocation17 + $0x410] sm:$0xff]
      %v2919 = vld [vmem:[#allocation17 + $0x418] sm:$0xff]
      %v2920 = vld [vmem:[#allocation17 + $0x420] sm:$0xff]
      %v2921 = vld [vmem:[#allocation17 + $0x428] sm:$0xff]
      %v2922 = vld [vmem:[#allocation17 + $0x430] sm:$0xff]
      %v2923 = vld [vmem:[#allocation17 + $0x438] sm:$0xff]
      %v2924 = vld [vmem:[#allocation17 + $0x440] sm:$0xff]
      %v2925 = vld [vmem:[#allocation17 + $0x448] sm:$0xff]
      %v2926 = vld [vmem:[#allocation17 + $0x450] sm:$0xff]
      %v2927 = vld [vmem:[#allocation17 + $0x458] sm:$0xff]
      %v2928 = vld [vmem:[#allocation17 + $0x460] sm:$0xff]
      %v2929 = vld [vmem:[#allocation17 + $0x468] sm:$0xff]
      %v2930 = vld [vmem:[#allocation17 + $0x470] sm:$0xff]
      %v2931 = vld [vmem:[#allocation17 + $0x478] sm:$0xff]
      %v2932 = vld [vmem:[#allocation17 + $0x480] sm:$0xff]
      %v2933 = vld [vmem:[#allocation17 + $0x488] sm:$0xff]
      %v2934 = vld [vmem:[#allocation17 + $0x490] sm:$0xff]
      %v2935 = vld [vmem:[#allocation17 + $0x498] sm:$0xff]
      %v2936 = vld [vmem:[#allocation17 + $0x4a0] sm:$0xff]
      %v2937 = vld [vmem:[#allocation17 + $0x4a8] sm:$0xff]
      %v2938 = vld [vmem:[#allocation17 + $0x4b0] sm:$0xff]
      %v2939 = vld [vmem:[#allocation17 + $0x4b8] sm:$0xff]
      %v2940 = vld [vmem:[#allocation17 + $0x4c0] sm:$0xff]
      %v2941 = vld [vmem:[#allocation17 + $0x4c8] sm:$0xff]
      %v2942 = vld [vmem:[#allocation17 + $0x4d0] sm:$0xff]
      %v2943 = vld [vmem:[#allocation17 + $0x4d8] sm:$0xff]
      %v2944 = vld [vmem:[#allocation17 + $0x4e0] sm:$0xff]
      %v2945 = vld [vmem:[#allocation17 + $0x4e8] sm:$0xff]
      %v2946 = vld [vmem:[#allocation17 + $0x4f0] sm:$0xff]
      %v2947 = vld [vmem:[#allocation17 + $0x4f8] sm:$0xff]
      %v2948 = vld [vmem:[#allocation17 + $0x500] sm:$0xff]
      %v2949 = vld [vmem:[#allocation17 + $0x508] sm:$0xff]
      %v2950 = vld [vmem:[#allocation17 + $0x510] sm:$0xff]
      %v2951 = vld [vmem:[#allocation17 + $0x518] sm:$0xff]
      %v2952 = vld [vmem:[#allocation17 + $0x520] sm:$0xff]
      %v2953 = vld [vmem:[#allocation17 + $0x528] sm:$0xff]
      %v2954 = vld [vmem:[#allocation17 + $0x530] sm:$0xff]
      %v2955 = vld [vmem:[#allocation17 + $0x538] sm:$0xff]
      %v2956 = vld [vmem:[#allocation17 + $0x540] sm:$0xff]
      %v2957 = vld [vmem:[#allocation17 + $0x548] sm:$0xff]
      %v2958 = vld [vmem:[#allocation17 + $0x550] sm:$0xff]
      %v2959 = vld [vmem:[#allocation17 + $0x558] sm:$0xff]
      %v2960 = vld [vmem:[#allocation17 + $0x560] sm:$0xff]
      %v2961 = vld [vmem:[#allocation17 + $0x568] sm:$0xff]
      %v2962 = vld [vmem:[#allocation17 + $0x570] sm:$0xff]
      %v2963 = vld [vmem:[#allocation17 + $0x578] sm:$0xff]
      %v2964 = vld [vmem:[#allocation17 + $0x580] sm:$0xff]
      %v2965 = vld [vmem:[#allocation17 + $0x588] sm:$0xff]
      %v2966 = vld [vmem:[#allocation17 + $0x590] sm:$0xff]
      %v2967 = vld [vmem:[#allocation17 + $0x598] sm:$0xff]
      %v2968 = vld [vmem:[#allocation17 + $0x5a0] sm:$0xff]
      %v2969 = vld [vmem:[#allocation17 + $0x5a8] sm:$0xff]
      %v2970 = vld [vmem:[#allocation17 + $0x5b0] sm:$0xff]
      %v2971 = vld [vmem:[#allocation17 + $0x5b8] sm:$0xff]
      %v2972 = vld [vmem:[#allocation17 + $0x5c0] sm:$0xff]
      %v2973 = vld [vmem:[#allocation17 + $0x5c8] sm:$0xff]
      %v2974 = vld [vmem:[#allocation17 + $0x5d0] sm:$0xff]
      %v2975 = vld [vmem:[#allocation17 + $0x5d8] sm:$0xff]
      %v2976 = vld [vmem:[#allocation17 + $0x5e0] sm:$0xff]
      %v2977 = vld [vmem:[#allocation17 + $0x5e8] sm:$0xff]
      %v2978 = vld [vmem:[#allocation17 + $0x5f0] sm:$0xff]
      %v2979 = vld [vmem:[#allocation17 + $0x5f8] sm:$0xff]
      %v2980 = vld [vmem:[#allocation17 + $0x600] sm:$0xff]
      %v2981 = vld [vmem:[#allocation17 + $0x608] sm:$0xff]
      %v2982 = vld [vmem:[#allocation17 + $0x610] sm:$0xff]
      %v2983 = vld [vmem:[#allocation17 + $0x618] sm:$0xff]
      %v2984 = vld [vmem:[#allocation17 + $0x620] sm:$0xff]
      %v2985 = vld [vmem:[#allocation17 + $0x628] sm:$0xff]
      %v2986 = vld [vmem:[#allocation17 + $0x630] sm:$0xff]
      %v2987 = vld [vmem:[#allocation17 + $0x638] sm:$0xff]
      %v2988 = vld [vmem:[#allocation17 + $0x640] sm:$0xff]
      %v2989 = vld [vmem:[#allocation17 + $0x648] sm:$0xff]
      %v2990 = vld [vmem:[#allocation17 + $0x650] sm:$0xff]
      %v2991 = vld [vmem:[#allocation17 + $0x658] sm:$0xff]
      %v2992 = vld [vmem:[#allocation17 + $0x660] sm:$0xff]
      %v2993 = vld [vmem:[#allocation17 + $0x668] sm:$0xff]
      %v2994 = vld [vmem:[#allocation17 + $0x670] sm:$0xff]
      %v2995 = vld [vmem:[#allocation17 + $0x678] sm:$0xff]
      %v2996 = vld [vmem:[#allocation17 + $0x680] sm:$0xff]
      %v2997 = vld [vmem:[#allocation17 + $0x688] sm:$0xff]
      %v2998 = vld [vmem:[#allocation17 + $0x690] sm:$0xff]
      %v2999 = vld [vmem:[#allocation17 + $0x698] sm:$0xff]
      %v3000 = vld [vmem:[#allocation17 + $0x6a0] sm:$0xff]
      %v3001 = vld [vmem:[#allocation17 + $0x6a8] sm:$0xff]
      %v3002 = vld [vmem:[#allocation17 + $0x6b0] sm:$0xff]
      %v3003 = vld [vmem:[#allocation17 + $0x6b8] sm:$0xff]
      %v3004 = vld [vmem:[#allocation17 + $0x6c0] sm:$0xff]
      %v3005 = vld [vmem:[#allocation17 + $0x6c8] sm:$0xff]
      %v3006 = vld [vmem:[#allocation17 + $0x6d0] sm:$0xff]
      %v3007 = vld [vmem:[#allocation17 + $0x6d8] sm:$0xff]
      %v3008 = vld [vmem:[#allocation17 + $0x6e0] sm:$0xff]
      %v3009 = vld [vmem:[#allocation17 + $0x6e8] sm:$0xff]
      %v3010 = vld [vmem:[#allocation17 + $0x6f0] sm:$0xff]
      %v3011 = vld [vmem:[#allocation17 + $0x6f8] sm:$0xff]
      %v3012 = vld [vmem:[#allocation17 + $0x700] sm:$0xff]
      %v3013 = vld [vmem:[#allocation17 + $0x708] sm:$0xff]
      %v3014 = vld [vmem:[#allocation17 + $0x710] sm:$0xff]
      %v3015 = vld [vmem:[#allocation17 + $0x718] sm:$0xff]
      %v3016 = vld [vmem:[#allocation17 + $0x720] sm:$0xff]
      %v3017 = vld [vmem:[#allocation17 + $0x728] sm:$0xff]
      %v3018 = vld [vmem:[#allocation17 + $0x730] sm:$0xff]
      %v3019 = vld [vmem:[#allocation17 + $0x738] sm:$0xff]
      %v3020 = vld [vmem:[#allocation17 + $0x740] sm:$0xff]
      %v3021 = vld [vmem:[#allocation17 + $0x748] sm:$0xff]
      %v3022 = vld [vmem:[#allocation17 + $0x750] sm:$0xff]
      %v3023 = vld [vmem:[#allocation17 + $0x758] sm:$0xff]
      %v3024 = vld [vmem:[#allocation17 + $0x760] sm:$0xff]
      %v3025 = vld [vmem:[#allocation17 + $0x768] sm:$0xff]
      %v3026 = vld [vmem:[#allocation17 + $0x770] sm:$0xff]
      %v3027 = vld [vmem:[#allocation17 + $0x778] sm:$0xff]
      %v3028 = vld [vmem:[#allocation17 + $0x780] sm:$0xff]
      %v3029 = vld [vmem:[#allocation17 + $0x788] sm:$0xff]
      %v3030 = vld [vmem:[#allocation17 + $0x790] sm:$0xff]
      %v3031 = vld [vmem:[#allocation17 + $0x798] sm:$0xff]
      %v3032 = vld [vmem:[#allocation17 + $0x7a0] sm:$0xff]
      %v3033 = vld [vmem:[#allocation17 + $0x7a8] sm:$0xff]
      %v3034 = vld [vmem:[#allocation17 + $0x7b0] sm:$0xff]
      %v3035 = vld [vmem:[#allocation17 + $0x7b8] sm:$0xff]
      %v3036 = vld [vmem:[#allocation17 + $0x7c0] sm:$0xff]
      %v3037 = vld [vmem:[#allocation17 + $0x7c8] sm:$0xff]
      %v3038 = vld [vmem:[#allocation17 + $0x7d0] sm:$0xff]
      %v3039 = vld [vmem:[#allocation17 + $0x7d8] sm:$0xff]
      %v3040 = vld [vmem:[#allocation17 + $0x7e0] sm:$0xff]
      %v3041 = vld [vmem:[#allocation17 + $0x7e8] sm:$0xff]
      %v3042 = vld [vmem:[#allocation17 + $0x7f0] sm:$0xff]
      %v3043 = vld [vmem:[#allocation17 + $0x7f8] sm:$0xff]
      %v3044 = vld [vmem:[#allocation17 + $0x800] sm:$0xff]
      %v3045 = vld [vmem:[#allocation17 + $0x808] sm:$0xff]
      %v3046 = vld [vmem:[#allocation17 + $0x810] sm:$0xff]
      %v3047 = vld [vmem:[#allocation17 + $0x818] sm:$0xff]
      %v3048 = vld [vmem:[#allocation17 + $0x820] sm:$0xff]
      %v3049 = vld [vmem:[#allocation17 + $0x828] sm:$0xff]
      %v3050 = vld [vmem:[#allocation17 + $0x830] sm:$0xff]
      %v3051 = vld [vmem:[#allocation17 + $0x838] sm:$0xff]
      %v3052 = vld [vmem:[#allocation17 + $0x840] sm:$0xff]
      %v3053 = vld [vmem:[#allocation17 + $0x848] sm:$0xff]
      %v3054 = vld [vmem:[#allocation17 + $0x850] sm:$0xff]
      %v3055 = vld [vmem:[#allocation17 + $0x858] sm:$0xff]
      %v3056 = vld [vmem:[#allocation17 + $0x860] sm:$0xff]
      %v3057 = vld [vmem:[#allocation17 + $0x868] sm:$0xff]
      %v3058 = vld [vmem:[#allocation17 + $0x870] sm:$0xff]
      %v3059 = vld [vmem:[#allocation17 + $0x878] sm:$0xff]
      %v3060 = vld [vmem:[#allocation17 + $0x880] sm:$0xff]
      %v3061 = vld [vmem:[#allocation17 + $0x888] sm:$0xff]
      %v3062 = vld [vmem:[#allocation17 + $0x890] sm:$0xff]
      %v3063 = vld [vmem:[#allocation17 + $0x898] sm:$0xff]
      %v3064 = vld [vmem:[#allocation17 + $0x8a0] sm:$0xff]
      %v3065 = vld [vmem:[#allocation17 + $0x8a8] sm:$0xff]
      %v3066 = vld [vmem:[#allocation17 + $0x8b0] sm:$0xff]
      %v3067 = vld [vmem:[#allocation17 + $0x8b8] sm:$0xff]
      %v3068 = vld [vmem:[#allocation17 + $0x8c0] sm:$0xff]
      %v3069 = vld [vmem:[#allocation17 + $0x8c8] sm:$0xff]
      %v3070 = vld [vmem:[#allocation17 + $0x8d0] sm:$0xff]
      %v3071 = vld [vmem:[#allocation17 + $0x8d8] sm:$0xff]
      %v3072 = vld [vmem:[#allocation17 + $0x8e0] sm:$0xff]
      %v3073 = vld [vmem:[#allocation17 + $0x8e8] sm:$0xff]
      %v3074 = vld [vmem:[#allocation17 + $0x8f0] sm:$0xff]
      %v3075 = vld [vmem:[#allocation17 + $0x8f8] sm:$0xff]
      %v3076 = vld [vmem:[#allocation17 + $0x900] sm:$0xff]
      %v3077 = vld [vmem:[#allocation17 + $0x908] sm:$0xff]
      %v3078 = vld [vmem:[#allocation17 + $0x910] sm:$0xff]
      %v3079 = vld [vmem:[#allocation17 + $0x918] sm:$0xff]
      %v3080 = vld [vmem:[#allocation17 + $0x920] sm:$0xff]
      %v3081 = vld [vmem:[#allocation17 + $0x928] sm:$0xff]
      %v3082 = vld [vmem:[#allocation17 + $0x930] sm:$0xff]
      %v3083 = vld [vmem:[#allocation17 + $0x938] sm:$0xff]
      %v3084 = vld [vmem:[#allocation17 + $0x940] sm:$0xff]
      %v3085 = vld [vmem:[#allocation17 + $0x948] sm:$0xff]
      %v3086 = vld [vmem:[#allocation17 + $0x950] sm:$0xff]
      %v3087 = vld [vmem:[#allocation17 + $0x958] sm:$0xff]
      %v3088 = vld [vmem:[#allocation17 + $0x960] sm:$0xff]
      %v3089 = vld [vmem:[#allocation17 + $0x968] sm:$0xff]
      %v3090 = vld [vmem:[#allocation17 + $0x970] sm:$0xff]
      %v3091 = vld [vmem:[#allocation17 + $0x978] sm:$0xff]
      %v3092 = vld [vmem:[#allocation17 + $0x980] sm:$0xff]
      %v3093 = vld [vmem:[#allocation17 + $0x988] sm:$0xff]
      %v3094 = vld [vmem:[#allocation17 + $0x990] sm:$0xff]
      %v3095 = vld [vmem:[#allocation17 + $0x998] sm:$0xff]
      %v3096 = vld [vmem:[#allocation17 + $0x9a0] sm:$0xff]
      %v3097 = vld [vmem:[#allocation17 + $0x9a8] sm:$0xff]
      %v3098 = vld [vmem:[#allocation17 + $0x9b0] sm:$0xff]
      %v3099 = vld [vmem:[#allocation17 + $0x9b8] sm:$0xff]
      %v3100 = vld [vmem:[#allocation17 + $0x9c0] sm:$0xff]
      %v3101 = vld [vmem:[#allocation17 + $0x9c8] sm:$0xff]
      %v3102 = vld [vmem:[#allocation17 + $0x9d0] sm:$0xff]
      %v3103 = vld [vmem:[#allocation17 + $0x9d8] sm:$0xff]
      %v3104 = vld [vmem:[#allocation17 + $0x9e0] sm:$0xff]
      %v3105 = vld [vmem:[#allocation17 + $0x9e8] sm:$0xff]
      %v3106 = vld [vmem:[#allocation17 + $0x9f0] sm:$0xff]
      %v3107 = vld [vmem:[#allocation17 + $0x9f8] sm:$0xff]
      %v3108 = vld [vmem:[#allocation17 + $0xa00] sm:$0xff]
      %v3109 = vld [vmem:[#allocation17 + $0xa08] sm:$0xff]
      %v3110 = vld [vmem:[#allocation17 + $0xa10] sm:$0xff]
      %v3111 = vld [vmem:[#allocation17 + $0xa18] sm:$0xff]
      %v3112 = vld [vmem:[#allocation17 + $0xa20] sm:$0xff]
      %v3113 = vld [vmem:[#allocation17 + $0xa28] sm:$0xff]
      %v3114 = vld [vmem:[#allocation17 + $0xa30] sm:$0xff]
      %v3115 = vld [vmem:[#allocation17 + $0xa38] sm:$0xff]
      %v3116 = vld [vmem:[#allocation17 + $0xa40] sm:$0xff]
      %v3117 = vld [vmem:[#allocation17 + $0xa48] sm:$0xff]
      %v3118 = vld [vmem:[#allocation17 + $0xa50] sm:$0xff]
      %v3119 = vld [vmem:[#allocation17 + $0xa58] sm:$0xff]
      %v3120 = vld [vmem:[#allocation17 + $0xa60] sm:$0xff]
      %v3121 = vld [vmem:[#allocation17 + $0xa68] sm:$0xff]
      %v3122 = vld [vmem:[#allocation17 + $0xa70] sm:$0xff]
      %v3123 = vld [vmem:[#allocation17 + $0xa78] sm:$0xff]
      %v3124 = vld [vmem:[#allocation17 + $0xa80] sm:$0xff]
      %v3125 = vld [vmem:[#allocation17 + $0xa88] sm:$0xff]
      %v3126 = vld [vmem:[#allocation17 + $0xa90] sm:$0xff]
      %v3127 = vld [vmem:[#allocation17 + $0xa98] sm:$0xff]
      %v3128 = vld [vmem:[#allocation17 + $0xaa0] sm:$0xff]
      %v3129 = vld [vmem:[#allocation17 + $0xaa8] sm:$0xff]
      %v3130 = vld [vmem:[#allocation17 + $0xab0] sm:$0xff]
      %v3131 = vld [vmem:[#allocation17 + $0xab8] sm:$0xff]
      %v3132 = vld [vmem:[#allocation17 + $0xac0] sm:$0xff]
      %v3133 = vld [vmem:[#allocation17 + $0xac8] sm:$0xff]
      %v3134 = vld [vmem:[#allocation17 + $0xad0] sm:$0xff]
      %v3135 = vld [vmem:[#allocation17 + $0xad8] sm:$0xff]
      %v3136 = vld [vmem:[#allocation17 + $0xae0] sm:$0xff]
      %v3137 = vld [vmem:[#allocation17 + $0xae8] sm:$0xff]
      %v3138 = vld [vmem:[#allocation17 + $0xaf0] sm:$0xff]
      %v3139 = vld [vmem:[#allocation17 + $0xaf8] sm:$0xff]
      %v3140 = vld [vmem:[#allocation17 + $0xb00] sm:$0xff]
      %v3141 = vld [vmem:[#allocation17 + $0xb08] sm:$0xff]
      %v3142 = vld [vmem:[#allocation17 + $0xb10] sm:$0xff]
      %v3143 = vld [vmem:[#allocation17 + $0xb18] sm:$0xff]
      %v3144 = vld [vmem:[#allocation17 + $0xb20] sm:$0xff]
      %v3145 = vld [vmem:[#allocation17 + $0xb28] sm:$0xff]
      %v3146 = vld [vmem:[#allocation17 + $0xb30] sm:$0xff]
      %v3147 = vld [vmem:[#allocation17 + $0xb38] sm:$0xff]
      %v3148 = vld [vmem:[#allocation17 + $0xb40] sm:$0xff]
      %v3149 = vld [vmem:[#allocation17 + $0xb48] sm:$0xff]
      %v3150 = vld [vmem:[#allocation17 + $0xb50] sm:$0xff]
      %v3151 = vld [vmem:[#allocation17 + $0xb58] sm:$0xff]
      %v3152 = vld [vmem:[#allocation17 + $0xb60] sm:$0xff]
      %v3153 = vld [vmem:[#allocation17 + $0xb68] sm:$0xff]
      %v3154 = vld [vmem:[#allocation17 + $0xb70] sm:$0xff]
      %v3155 = vld [vmem:[#allocation17 + $0xb78] sm:$0xff]
      %v3156 = vld [vmem:[#allocation17 + $0xb80] sm:$0xff]
      %v3157 = vld [vmem:[#allocation17 + $0xb88] sm:$0xff]
      %v3158 = vld [vmem:[#allocation17 + $0xb90] sm:$0xff]
      %v3159 = vld [vmem:[#allocation17 + $0xb98] sm:$0xff]
      %v3160 = vld [vmem:[#allocation17 + $0xba0] sm:$0xff]
      %v3161 = vld [vmem:[#allocation17 + $0xba8] sm:$0xff]
      %v3162 = vld [vmem:[#allocation17 + $0xbb0] sm:$0xff]
      %v3163 = vld [vmem:[#allocation17 + $0xbb8] sm:$0xff]
      %v3164 = vld [vmem:[#allocation17 + $0xbc0] sm:$0xff]
      %v3165 = vld [vmem:[#allocation17 + $0xbc8] sm:$0xff]
      %v3166 = vld [vmem:[#allocation17 + $0xbd0] sm:$0xff]
      %v3167 = vld [vmem:[#allocation17 + $0xbd8] sm:$0xff]
      %v3168 = vld [vmem:[#allocation17 + $0xbe0] sm:$0xff]
      %v3169 = vld [vmem:[#allocation17 + $0xbe8] sm:$0xff]
      %v3170 = vld [vmem:[#allocation17 + $0xbf0] sm:$0xff]
      %v3171 = vld [vmem:[#allocation17 + $0xbf8] sm:$0xff]
      %v3172 = vld [vmem:[#allocation17 + $0xc00] sm:$0xff]
      %v3173 = vld [vmem:[#allocation17 + $0xc08] sm:$0xff]
      %v3174 = vld [vmem:[#allocation17 + $0xc10] sm:$0xff]
      %v3175 = vld [vmem:[#allocation17 + $0xc18] sm:$0xff]
      %v3176 = vld [vmem:[#allocation17 + $0xc20] sm:$0xff]
      %v3177 = vld [vmem:[#allocation17 + $0xc28] sm:$0xff]
      %v3178 = vld [vmem:[#allocation17 + $0xc30] sm:$0xff]
      %v3179 = vld [vmem:[#allocation17 + $0xc38] sm:$0xff]
      %v3180 = vld [vmem:[#allocation17 + $0xc40] sm:$0xff]
      %v3181 = vld [vmem:[#allocation17 + $0xc48] sm:$0xff]
      %v3182 = vld [vmem:[#allocation17 + $0xc50] sm:$0xff]
      %v3183 = vld [vmem:[#allocation17 + $0xc58] sm:$0xff]
      %v3184 = vld [vmem:[#allocation17 + $0xc60] sm:$0xff]
      %v3185 = vld [vmem:[#allocation17 + $0xc68] sm:$0xff]
      %v3186 = vld [vmem:[#allocation17 + $0xc70] sm:$0xff]
      %v3187 = vld [vmem:[#allocation17 + $0xc78] sm:$0xff]
      %v3188 = vld [vmem:[#allocation17 + $0xc80] sm:$0xff]
      %v3189 = vld [vmem:[#allocation17 + $0xc88] sm:$0xff]
      %v3190 = vld [vmem:[#allocation17 + $0xc90] sm:$0xff]
      %v3191 = vld [vmem:[#allocation17 + $0xc98] sm:$0xff]
      %v3192 = vld [vmem:[#allocation17 + $0xca0] sm:$0xff]
      %v3193 = vld [vmem:[#allocation17 + $0xca8] sm:$0xff]
      %v3194 = vld [vmem:[#allocation17 + $0xcb0] sm:$0xff]
      %v3195 = vld [vmem:[#allocation17 + $0xcb8] sm:$0xff]
      %v3196 = vld [vmem:[#allocation17 + $0xcc0] sm:$0xff]
      %v3197 = vld [vmem:[#allocation17 + $0xcc8] sm:$0xff]
      %v3198 = vld [vmem:[#allocation17 + $0xcd0] sm:$0xff]
      %v3199 = vld [vmem:[#allocation17 + $0xcd8] sm:$0xff]
      %v3200 = vld [vmem:[#allocation17 + $0xce0] sm:$0xff]
      %v3201 = vld [vmem:[#allocation17 + $0xce8] sm:$0xff]
      %v3202 = vld [vmem:[#allocation17 + $0xcf0] sm:$0xff]
      %v3203 = vld [vmem:[#allocation17 + $0xcf8] sm:$0xff]
      %v3204 = vld [vmem:[#allocation17 + $0xd00] sm:$0xff]
      %v3205 = vld [vmem:[#allocation17 + $0xd08] sm:$0xff]
      %v3206 = vld [vmem:[#allocation17 + $0xd10] sm:$0xff]
      %v3207 = vld [vmem:[#allocation17 + $0xd18] sm:$0xff]
      %v3208 = vld [vmem:[#allocation17 + $0xd20] sm:$0xff]
      %v3209 = vld [vmem:[#allocation17 + $0xd28] sm:$0xff]
      %v3210 = vld [vmem:[#allocation17 + $0xd30] sm:$0xff]
      %v3211 = vld [vmem:[#allocation17 + $0xd38] sm:$0xff]
      %v3212 = vld [vmem:[#allocation17 + $0xd40] sm:$0xff]
      %v3213 = vld [vmem:[#allocation17 + $0xd48] sm:$0xff]
      %v3214 = vld [vmem:[#allocation17 + $0xd50] sm:$0xff]
      %v3215 = vld [vmem:[#allocation17 + $0xd58] sm:$0xff]
      %v3216 = vld [vmem:[#allocation17 + $0xd60] sm:$0xff]
      %v3217 = vld [vmem:[#allocation17 + $0xd68] sm:$0xff]
      %v3218 = vld [vmem:[#allocation17 + $0xd70] sm:$0xff]
      %v3219 = vld [vmem:[#allocation17 + $0xd78] sm:$0xff]
      %v3220 = vld [vmem:[#allocation17 + $0xd80] sm:$0xff]
      %v3221 = vld [vmem:[#allocation17 + $0xd88] sm:$0xff]
      %v3222 = vld [vmem:[#allocation17 + $0xd90] sm:$0xff]
      %v3223 = vld [vmem:[#allocation17 + $0xd98] sm:$0xff]
      %v3224 = vld [vmem:[#allocation17 + $0xda0] sm:$0xff]
      %v3225 = vld [vmem:[#allocation17 + $0xda8] sm:$0xff]
      %v3226 = vld [vmem:[#allocation17 + $0xdb0] sm:$0xff]
      %v3227 = vld [vmem:[#allocation17 + $0xdb8] sm:$0xff]
      %v3228 = vld [vmem:[#allocation17 + $0xdc0] sm:$0xff]
      %v3229 = vld [vmem:[#allocation17 + $0xdc8] sm:$0xff]
      %v3230 = vld [vmem:[#allocation17 + $0xdd0] sm:$0xff]
      %v3231 = vld [vmem:[#allocation17 + $0xdd8] sm:$0xff]
      %v3232 = vld [vmem:[#allocation17 + $0xde0] sm:$0xff]
      %v3233 = vld [vmem:[#allocation17 + $0xde8] sm:$0xff]
      %v3234 = vld [vmem:[#allocation17 + $0xdf0] sm:$0xff]
      %v3235 = vld [vmem:[#allocation17 + $0xdf8] sm:$0xff]
      %v3236 = vld [vmem:[#allocation17 + $0xe00] sm:$0xff]
      %v3237 = vld [vmem:[#allocation17 + $0xe08] sm:$0xff]
      %v3238 = vld [vmem:[#allocation17 + $0xe10] sm:$0xff]
      %v3239 = vld [vmem:[#allocation17 + $0xe18] sm:$0xff]
      %v3240 = vld [vmem:[#allocation17 + $0xe20] sm:$0xff]
      %v3241 = vld [vmem:[#allocation17 + $0xe28] sm:$0xff]
      %v3242 = vld [vmem:[#allocation17 + $0xe30] sm:$0xff]
      %v3243 = vld [vmem:[#allocation17 + $0xe38] sm:$0xff]
      %v3244 = vld [vmem:[#allocation17 + $0xe40] sm:$0xff]
      %v3245 = vld [vmem:[#allocation17 + $0xe48] sm:$0xff]
      %v3246 = vld [vmem:[#allocation17 + $0xe50] sm:$0xff]
      %v3247 = vld [vmem:[#allocation17 + $0xe58] sm:$0xff]
      %v3248 = vld [vmem:[#allocation17 + $0xe60] sm:$0xff]
      %v3249 = vld [vmem:[#allocation17 + $0xe68] sm:$0xff]
      %v3250 = vld [vmem:[#allocation17 + $0xe70] sm:$0xff]
      %v3251 = vld [vmem:[#allocation17 + $0xe78] sm:$0xff]
      %v3252 = vld [vmem:[#allocation17 + $0xe80] sm:$0xff]
      %v3253 = vld [vmem:[#allocation17 + $0xe88] sm:$0xff]
      %v3254 = vld [vmem:[#allocation17 + $0xe90] sm:$0xff]
      %v3255 = vld [vmem:[#allocation17 + $0xe98] sm:$0xff]
      %v3256 = vld [vmem:[#allocation17 + $0xea0] sm:$0xff]
      %v3257 = vld [vmem:[#allocation17 + $0xea8] sm:$0xff]
      %v3258 = vld [vmem:[#allocation17 + $0xeb0] sm:$0xff]
      %v3259 = vld [vmem:[#allocation17 + $0xeb8] sm:$0xff]
      %v3260 = vld [vmem:[#allocation17 + $0xec0] sm:$0xff]
      %v3261 = vld [vmem:[#allocation17 + $0xec8] sm:$0xff]
      %v3262 = vld [vmem:[#allocation17 + $0xed0] sm:$0xff]
      %v3263 = vld [vmem:[#allocation17 + $0xed8] sm:$0xff]
      %v3264 = vld [vmem:[#allocation17 + $0xee0] sm:$0xff]
      %v3265 = vld [vmem:[#allocation17 + $0xee8] sm:$0xff]
      %v3266 = vld [vmem:[#allocation17 + $0xef0] sm:$0xff]
      %v3267 = vld [vmem:[#allocation17 + $0xef8] sm:$0xff]
      %v3268 = vld [vmem:[#allocation17 + $0xf00] sm:$0xff]
      %v3269 = vld [vmem:[#allocation17 + $0xf08] sm:$0xff]
      %v3270 = vld [vmem:[#allocation17 + $0xf10] sm:$0xff]
      %v3271 = vld [vmem:[#allocation17 + $0xf18] sm:$0xff]
      %v3272 = vld [vmem:[#allocation17 + $0xf20] sm:$0xff]
      %v3273 = vld [vmem:[#allocation17 + $0xf28] sm:$0xff]
      %v3274 = vld [vmem:[#allocation17 + $0xf30] sm:$0xff]
      %v3275 = vld [vmem:[#allocation17 + $0xf38] sm:$0xff]
      %v3276 = vld [vmem:[#allocation17 + $0xf40] sm:$0xff]
      %v3277 = vld [vmem:[#allocation17 + $0xf48] sm:$0xff]
      %v3278 = vld [vmem:[#allocation17 + $0xf50] sm:$0xff]
      %v3279 = vld [vmem:[#allocation17 + $0xf58] sm:$0xff]
      %v3280 = vld [vmem:[#allocation17 + $0xf60] sm:$0xff]
      %v3281 = vld [vmem:[#allocation17 + $0xf68] sm:$0xff]
      %v3282 = vld [vmem:[#allocation17 + $0xf70] sm:$0xff]
      %v3283 = vld [vmem:[#allocation17 + $0xf78] sm:$0xff]
      %v3284 = vld [vmem:[#allocation17 + $0xf80] sm:$0xff]
      %v3285 = vld [vmem:[#allocation17 + $0xf88] sm:$0xff]
      %v3286 = vld [vmem:[#allocation17 + $0xf90] sm:$0xff]
      %v3287 = vld [vmem:[#allocation17 + $0xf98] sm:$0xff]
      %v3288 = vld [vmem:[#allocation17 + $0xfa0] sm:$0xff]
      %v3289 = vld [vmem:[#allocation17 + $0xfa8] sm:$0xff]
      %v3290 = vld [vmem:[#allocation17 + $0xfb0] sm:$0xff]
      %v3291 = vld [vmem:[#allocation17 + $0xfb8] sm:$0xff]
      %v3292 = vld [vmem:[#allocation17 + $0xfc0] sm:$0xff]
      %v3293 = vld [vmem:[#allocation17 + $0xfc8] sm:$0xff]
      %v3294 = vld [vmem:[#allocation17 + $0xfd0] sm:$0xff]
      %v3295 = vld [vmem:[#allocation17 + $0xfd8] sm:$0xff]
      %v3296 = vld [vmem:[#allocation17 + $0xfe0] sm:$0xff]
      %v3297 = vld [vmem:[#allocation17 + $0xfe8] sm:$0xff]
      %v3298 = vld [vmem:[#allocation17 + $0xff0] sm:$0xff]
      %v3299 = vld [vmem:[#allocation17 + $0xff8] sm:$0xff]
      %v3300 = vld [vmem:[#allocation18] sm:$0xff]
      %v3302 = vlaneseq
      %v3303 = vshrl.u32 %v3302, 7
      %v3304 = vsub.s32 0, %v3303
      %v3305 = vrot.slane %v3300, %v3304
      %v3306 = vlaneseq
      %v3307 = vshrl.u32 %v3306, 7
      %v3308 = vsub.s32 1, %v3307
      %v3309 = vrot.slane %v3300, %v3308
      %v3310 = vlaneseq
      %v3311 = vshrl.u32 %v3310, 7
      %v3312 = vsub.s32 2, %v3311
      %v3313 = vrot.slane %v3300, %v3312
      %v3314 = vlaneseq
      %v3315 = vshrl.u32 %v3314, 7
      %v3316 = vsub.s32 3, %v3315
      %v3317 = vrot.slane %v3300, %v3316
      %v3318 = vlaneseq
      %v3319 = vshrl.u32 %v3318, 7
      %v3320 = vsub.s32 4, %v3319
      %v3321 = vrot.slane %v3300, %v3320
      %v3322 = vlaneseq
      %v3323 = vshrl.u32 %v3322, 7
      %v3324 = vsub.s32 5, %v3323
      %v3325 = vrot.slane %v3300, %v3324
      %v3326 = vlaneseq
      %v3327 = vshrl.u32 %v3326, 7
      %v3328 = vsub.s32 6, %v3327
      %v3329 = vrot.slane %v3300, %v3328
      %v3330 = vlaneseq
      %v3331 = vshrl.u32 %v3330, 7
      %v3332 = vsub.s32 7, %v3331
      %v3333 = vrot.slane %v3300, %v3332
      %v3854 = vunpack.c.l.b16 %v2788
      %v3855 = vunpack.c.h.b16 %v2788
      %v3856 = vunpack.c.l.b16 %v2789
      %v3857 = vunpack.c.h.b16 %v2789
      %v3858 = vunpack.c.l.b16 %v2790
      %v3859 = vunpack.c.h.b16 %v2790
      %v3860 = vunpack.c.l.b16 %v2791
      %v3861 = vunpack.c.h.b16 %v2791
      %v3862 = vunpack.c.l.b16 %v2792
      %v3863 = vunpack.c.h.b16 %v2792
      %v3864 = vunpack.c.l.b16 %v2793
      %v3865 = vunpack.c.h.b16 %v2793
      %v3866 = vunpack.c.l.b16 %v2794
      %v3867 = vunpack.c.h.b16 %v2794
      %v3868 = vunpack.c.l.b16 %v2795
      %v3869 = vunpack.c.h.b16 %v2795
      %v3870 = vunpack.c.l.b16 %v2796
      %v3871 = vunpack.c.h.b16 %v2796
      %v3872 = vunpack.c.l.b16 %v2797
      %v3873 = vunpack.c.h.b16 %v2797
      %v3874 = vunpack.c.l.b16 %v2798
      %v3875 = vunpack.c.h.b16 %v2798
      %v3876 = vunpack.c.l.b16 %v2799
      %v3877 = vunpack.c.h.b16 %v2799
      %v3878 = vunpack.c.l.b16 %v2800
      %v3879 = vunpack.c.h.b16 %v2800
      %v3880 = vunpack.c.l.b16 %v2801
      %v3881 = vunpack.c.h.b16 %v2801
      %v3882 = vunpack.c.l.b16 %v2802
      %v3883 = vunpack.c.h.b16 %v2802
      %v3884 = vunpack.c.l.b16 %v2803
      %v3885 = vunpack.c.h.b16 %v2803
      %v3886 = vunpack.c.l.b16 %v2804
      %v3887 = vunpack.c.h.b16 %v2804
      %v3888 = vunpack.c.l.b16 %v2805
      %v3889 = vunpack.c.h.b16 %v2805
      %v3890 = vunpack.c.l.b16 %v2806
      %v3891 = vunpack.c.h.b16 %v2806
      %v3892 = vunpack.c.l.b16 %v2807
      %v3893 = vunpack.c.h.b16 %v2807
      %v3894 = vunpack.c.l.b16 %v2808
      %v3895 = vunpack.c.h.b16 %v2808
      %v3896 = vunpack.c.l.b16 %v2809
      %v3897 = vunpack.c.h.b16 %v2809
      %v3898 = vunpack.c.l.b16 %v2810
      %v3899 = vunpack.c.h.b16 %v2810
      %v3900 = vunpack.c.l.b16 %v2811
      %v3901 = vunpack.c.h.b16 %v2811
      %v3902 = vunpack.c.l.b16 %v2812
      %v3903 = vunpack.c.h.b16 %v2812
      %v3904 = vunpack.c.l.b16 %v2813
      %v3905 = vunpack.c.h.b16 %v2813
      %v3906 = vunpack.c.l.b16 %v2814
      %v3907 = vunpack.c.h.b16 %v2814
      %v3908 = vunpack.c.l.b16 %v2815
      %v3909 = vunpack.c.h.b16 %v2815
      %v3910 = vunpack.c.l.b16 %v2816
      %v3911 = vunpack.c.h.b16 %v2816
      %v3912 = vunpack.c.l.b16 %v2817
      %v3913 = vunpack.c.h.b16 %v2817
      %v3914 = vunpack.c.l.b16 %v2818
      %v3915 = vunpack.c.h.b16 %v2818
      %v3916 = vunpack.c.l.b16 %v2819
      %v3917 = vunpack.c.h.b16 %v2819
      %v3918 = vunpack.c.l.b16 %v2820
      %v3919 = vunpack.c.h.b16 %v2820
      %v3920 = vunpack.c.l.b16 %v2821
      %v3921 = vunpack.c.h.b16 %v2821
      %v3922 = vunpack.c.l.b16 %v2822
      %v3923 = vunpack.c.h.b16 %v2822
      %v3924 = vunpack.c.l.b16 %v2823
      %v3925 = vunpack.c.h.b16 %v2823
      %v3926 = vunpack.c.l.b16 %v2824
      %v3927 = vunpack.c.h.b16 %v2824
      %v3928 = vunpack.c.l.b16 %v2825
      %v3929 = vunpack.c.h.b16 %v2825
      %v3930 = vunpack.c.l.b16 %v2826
      %v3931 = vunpack.c.h.b16 %v2826
      %v3932 = vunpack.c.l.b16 %v2827
      %v3933 = vunpack.c.h.b16 %v2827
      %v3934 = vunpack.c.l.b16 %v2828
      %v3935 = vunpack.c.h.b16 %v2828
      %v3936 = vunpack.c.l.b16 %v2829
      %v3937 = vunpack.c.h.b16 %v2829
      %v3938 = vunpack.c.l.b16 %v2830
      %v3939 = vunpack.c.h.b16 %v2830
      %v3940 = vunpack.c.l.b16 %v2831
      %v3941 = vunpack.c.h.b16 %v2831
      %v3942 = vunpack.c.l.b16 %v2832
      %v3943 = vunpack.c.h.b16 %v2832
      %v3944 = vunpack.c.l.b16 %v2833
      %v3945 = vunpack.c.h.b16 %v2833
      %v3946 = vunpack.c.l.b16 %v2834
      %v3947 = vunpack.c.h.b16 %v2834
      %v3948 = vunpack.c.l.b16 %v2835
      %v3949 = vunpack.c.h.b16 %v2835
      %v3950 = vunpack.c.l.b16 %v2836
      %v3951 = vunpack.c.h.b16 %v2836
      %v3952 = vunpack.c.l.b16 %v2837
      %v3953 = vunpack.c.h.b16 %v2837
      %v3954 = vunpack.c.l.b16 %v2838
      %v3955 = vunpack.c.h.b16 %v2838
      %v3956 = vunpack.c.l.b16 %v2839
      %v3957 = vunpack.c.h.b16 %v2839
      %v3958 = vunpack.c.l.b16 %v2840
      %v3959 = vunpack.c.h.b16 %v2840
      %v3960 = vunpack.c.l.b16 %v2841
      %v3961 = vunpack.c.h.b16 %v2841
      %v3962 = vunpack.c.l.b16 %v2842
      %v3963 = vunpack.c.h.b16 %v2842
      %v3964 = vunpack.c.l.b16 %v2843
      %v3965 = vunpack.c.h.b16 %v2843
      %v3966 = vunpack.c.l.b16 %v2844
      %v3967 = vunpack.c.h.b16 %v2844
      %v3968 = vunpack.c.l.b16 %v2845
      %v3969 = vunpack.c.h.b16 %v2845
      %v3970 = vunpack.c.l.b16 %v2846
      %v3971 = vunpack.c.h.b16 %v2846
      %v3972 = vunpack.c.l.b16 %v2847
      %v3973 = vunpack.c.h.b16 %v2847
      %v3974 = vunpack.c.l.b16 %v2848
      %v3975 = vunpack.c.h.b16 %v2848
      %v3976 = vunpack.c.l.b16 %v2849
      %v3977 = vunpack.c.h.b16 %v2849
      %v3978 = vunpack.c.l.b16 %v2850
      %v3979 = vunpack.c.h.b16 %v2850
      %v3980 = vunpack.c.l.b16 %v2851
      %v3981 = vunpack.c.h.b16 %v2851
      %v3982 = vunpack.c.l.b16 %v2852
      %v3983 = vunpack.c.h.b16 %v2852
      %v3984 = vunpack.c.l.b16 %v2853
      %v3985 = vunpack.c.h.b16 %v2853
      %v3986 = vunpack.c.l.b16 %v2854
      %v3987 = vunpack.c.h.b16 %v2854
      %v3988 = vunpack.c.l.b16 %v2855
      %v3989 = vunpack.c.h.b16 %v2855
      %v3990 = vunpack.c.l.b16 %v2856
      %v3991 = vunpack.c.h.b16 %v2856
      %v3992 = vunpack.c.l.b16 %v2857
      %v3993 = vunpack.c.h.b16 %v2857
      %v3994 = vunpack.c.l.b16 %v2858
      %v3995 = vunpack.c.h.b16 %v2858
      %v3996 = vunpack.c.l.b16 %v2859
      %v3997 = vunpack.c.h.b16 %v2859
      %v3998 = vunpack.c.l.b16 %v2860
      %v3999 = vunpack.c.h.b16 %v2860
      %v4000 = vunpack.c.l.b16 %v2861
      %v4001 = vunpack.c.h.b16 %v2861
      %v4002 = vunpack.c.l.b16 %v2862
      %v4003 = vunpack.c.h.b16 %v2862
      %v4004 = vunpack.c.l.b16 %v2863
      %v4005 = vunpack.c.h.b16 %v2863
      %v4006 = vunpack.c.l.b16 %v2864
      %v4007 = vunpack.c.h.b16 %v2864
      %v4008 = vunpack.c.l.b16 %v2865
      %v4009 = vunpack.c.h.b16 %v2865
      %v4010 = vunpack.c.l.b16 %v2866
      %v4011 = vunpack.c.h.b16 %v2866
      %v4012 = vunpack.c.l.b16 %v2867
      %v4013 = vunpack.c.h.b16 %v2867
      %v4014 = vunpack.c.l.b16 %v2868
      %v4015 = vunpack.c.h.b16 %v2868
      %v4016 = vunpack.c.l.b16 %v2869
      %v4017 = vunpack.c.h.b16 %v2869
      %v4018 = vunpack.c.l.b16 %v2870
      %v4019 = vunpack.c.h.b16 %v2870
      %v4020 = vunpack.c.l.b16 %v2871
      %v4021 = vunpack.c.h.b16 %v2871
      %v4022 = vunpack.c.l.b16 %v2872
      %v4023 = vunpack.c.h.b16 %v2872
      %v4024 = vunpack.c.l.b16 %v2873
      %v4025 = vunpack.c.h.b16 %v2873
      %v4026 = vunpack.c.l.b16 %v2874
      %v4027 = vunpack.c.h.b16 %v2874
      %v4028 = vunpack.c.l.b16 %v2875
      %v4029 = vunpack.c.h.b16 %v2875
      %v4030 = vunpack.c.l.b16 %v2876
      %v4031 = vunpack.c.h.b16 %v2876
      %v4032 = vunpack.c.l.b16 %v2877
      %v4033 = vunpack.c.h.b16 %v2877
      %v4034 = vunpack.c.l.b16 %v2878
      %v4035 = vunpack.c.h.b16 %v2878
      %v4036 = vunpack.c.l.b16 %v2879
      %v4037 = vunpack.c.h.b16 %v2879
      %v4038 = vunpack.c.l.b16 %v2880
      %v4039 = vunpack.c.h.b16 %v2880
      %v4040 = vunpack.c.l.b16 %v2881
      %v4041 = vunpack.c.h.b16 %v2881
      %v4042 = vunpack.c.l.b16 %v2882
      %v4043 = vunpack.c.h.b16 %v2882
      %v4044 = vunpack.c.l.b16 %v2883
      %v4045 = vunpack.c.h.b16 %v2883
      %v4046 = vunpack.c.l.b16 %v2884
      %v4047 = vunpack.c.h.b16 %v2884
      %v4048 = vunpack.c.l.b16 %v2885
      %v4049 = vunpack.c.h.b16 %v2885
      %v4050 = vunpack.c.l.b16 %v2886
      %v4051 = vunpack.c.h.b16 %v2886
      %v4052 = vunpack.c.l.b16 %v2887
      %v4053 = vunpack.c.h.b16 %v2887
      %v4054 = vunpack.c.l.b16 %v2888
      %v4055 = vunpack.c.h.b16 %v2888
      %v4056 = vunpack.c.l.b16 %v2889
      %v4057 = vunpack.c.h.b16 %v2889
      %v4058 = vunpack.c.l.b16 %v2890
      %v4059 = vunpack.c.h.b16 %v2890
      %v4060 = vunpack.c.l.b16 %v2891
      %v4061 = vunpack.c.h.b16 %v2891
      %v4062 = vunpack.c.l.b16 %v2892
      %v4063 = vunpack.c.h.b16 %v2892
      %v4064 = vunpack.c.l.b16 %v2893
      %v4065 = vunpack.c.h.b16 %v2893
      %v4066 = vunpack.c.l.b16 %v2894
      %v4067 = vunpack.c.h.b16 %v2894
      %v4068 = vunpack.c.l.b16 %v2895
      %v4069 = vunpack.c.h.b16 %v2895
      %v4070 = vunpack.c.l.b16 %v2896
      %v4071 = vunpack.c.h.b16 %v2896
      %v4072 = vunpack.c.l.b16 %v2897
      %v4073 = vunpack.c.h.b16 %v2897
      %v4074 = vunpack.c.l.b16 %v2898
      %v4075 = vunpack.c.h.b16 %v2898
      %v4076 = vunpack.c.l.b16 %v2899
      %v4077 = vunpack.c.h.b16 %v2899
      %v4078 = vunpack.c.l.b16 %v2900
      %v4079 = vunpack.c.h.b16 %v2900
      %v4080 = vunpack.c.l.b16 %v2901
      %v4081 = vunpack.c.h.b16 %v2901
      %v4082 = vunpack.c.l.b16 %v2902
      %v4083 = vunpack.c.h.b16 %v2902
      %v4084 = vunpack.c.l.b16 %v2903
      %v4085 = vunpack.c.h.b16 %v2903
      %v4086 = vunpack.c.l.b16 %v2904
      %v4087 = vunpack.c.h.b16 %v2904
      %v4088 = vunpack.c.l.b16 %v2905
      %v4089 = vunpack.c.h.b16 %v2905
      %v4090 = vunpack.c.l.b16 %v2906
      %v4091 = vunpack.c.h.b16 %v2906
      %v4092 = vunpack.c.l.b16 %v2907
      %v4093 = vunpack.c.h.b16 %v2907
      %v4094 = vunpack.c.l.b16 %v2908
      %v4095 = vunpack.c.h.b16 %v2908
      %v4096 = vunpack.c.l.b16 %v2909
      %v4097 = vunpack.c.h.b16 %v2909
      %v4098 = vunpack.c.l.b16 %v2910
      %v4099 = vunpack.c.h.b16 %v2910
      %v4100 = vunpack.c.l.b16 %v2911
      %v4101 = vunpack.c.h.b16 %v2911
      %v4102 = vunpack.c.l.b16 %v2912
      %v4103 = vunpack.c.h.b16 %v2912
      %v4104 = vunpack.c.l.b16 %v2913
      %v4105 = vunpack.c.h.b16 %v2913
      %v4106 = vunpack.c.l.b16 %v2914
      %v4107 = vunpack.c.h.b16 %v2914
      %v4108 = vunpack.c.l.b16 %v2915
      %v4109 = vunpack.c.h.b16 %v2915
      %v4110 = vunpack.c.l.b16 %v2916
      %v4111 = vunpack.c.h.b16 %v2916
      %v4112 = vunpack.c.l.b16 %v2917
      %v4113 = vunpack.c.h.b16 %v2917
      %v4114 = vunpack.c.l.b16 %v2918
      %v4115 = vunpack.c.h.b16 %v2918
      %v4116 = vunpack.c.l.b16 %v2919
      %v4117 = vunpack.c.h.b16 %v2919
      %v4118 = vunpack.c.l.b16 %v2920
      %v4119 = vunpack.c.h.b16 %v2920
      %v4120 = vunpack.c.l.b16 %v2921
      %v4121 = vunpack.c.h.b16 %v2921
      %v4122 = vunpack.c.l.b16 %v2922
      %v4123 = vunpack.c.h.b16 %v2922
      %v4124 = vunpack.c.l.b16 %v2923
      %v4125 = vunpack.c.h.b16 %v2923
      %v4126 = vunpack.c.l.b16 %v2924
      %v4127 = vunpack.c.h.b16 %v2924
      %v4128 = vunpack.c.l.b16 %v2925
      %v4129 = vunpack.c.h.b16 %v2925
      %v4130 = vunpack.c.l.b16 %v2926
      %v4131 = vunpack.c.h.b16 %v2926
      %v4132 = vunpack.c.l.b16 %v2927
      %v4133 = vunpack.c.h.b16 %v2927
      %v4134 = vunpack.c.l.b16 %v2928
      %v4135 = vunpack.c.h.b16 %v2928
      %v4136 = vunpack.c.l.b16 %v2929
      %v4137 = vunpack.c.h.b16 %v2929
      %v4138 = vunpack.c.l.b16 %v2930
      %v4139 = vunpack.c.h.b16 %v2930
      %v4140 = vunpack.c.l.b16 %v2931
      %v4141 = vunpack.c.h.b16 %v2931
      %v4142 = vunpack.c.l.b16 %v2932
      %v4143 = vunpack.c.h.b16 %v2932
      %v4144 = vunpack.c.l.b16 %v2933
      %v4145 = vunpack.c.h.b16 %v2933
      %v4146 = vunpack.c.l.b16 %v2934
      %v4147 = vunpack.c.h.b16 %v2934
      %v4148 = vunpack.c.l.b16 %v2935
      %v4149 = vunpack.c.h.b16 %v2935
      %v4150 = vunpack.c.l.b16 %v2936
      %v4151 = vunpack.c.h.b16 %v2936
      %v4152 = vunpack.c.l.b16 %v2937
      %v4153 = vunpack.c.h.b16 %v2937
      %v4154 = vunpack.c.l.b16 %v2938
      %v4155 = vunpack.c.h.b16 %v2938
      %v4156 = vunpack.c.l.b16 %v2939
      %v4157 = vunpack.c.h.b16 %v2939
      %v4158 = vunpack.c.l.b16 %v2940
      %v4159 = vunpack.c.h.b16 %v2940
      %v4160 = vunpack.c.l.b16 %v2941
      %v4161 = vunpack.c.h.b16 %v2941
      %v4162 = vunpack.c.l.b16 %v2942
      %v4163 = vunpack.c.h.b16 %v2942
      %v4164 = vunpack.c.l.b16 %v2943
      %v4165 = vunpack.c.h.b16 %v2943
      %v4166 = vunpack.c.l.b16 %v2944
      %v4167 = vunpack.c.h.b16 %v2944
      %v4168 = vunpack.c.l.b16 %v2945
      %v4169 = vunpack.c.h.b16 %v2945
      %v4170 = vunpack.c.l.b16 %v2946
      %v4171 = vunpack.c.h.b16 %v2946
      %v4172 = vunpack.c.l.b16 %v2947
      %v4173 = vunpack.c.h.b16 %v2947
      %v4174 = vunpack.c.l.b16 %v2948
      %v4175 = vunpack.c.h.b16 %v2948
      %v4176 = vunpack.c.l.b16 %v2949
      %v4177 = vunpack.c.h.b16 %v2949
      %v4178 = vunpack.c.l.b16 %v2950
      %v4179 = vunpack.c.h.b16 %v2950
      %v4180 = vunpack.c.l.b16 %v2951
      %v4181 = vunpack.c.h.b16 %v2951
      %v4182 = vunpack.c.l.b16 %v2952
      %v4183 = vunpack.c.h.b16 %v2952
      %v4184 = vunpack.c.l.b16 %v2953
      %v4185 = vunpack.c.h.b16 %v2953
      %v4186 = vunpack.c.l.b16 %v2954
      %v4187 = vunpack.c.h.b16 %v2954
      %v4188 = vunpack.c.l.b16 %v2955
      %v4189 = vunpack.c.h.b16 %v2955
      %v4190 = vunpack.c.l.b16 %v2956
      %v4191 = vunpack.c.h.b16 %v2956
      %v4192 = vunpack.c.l.b16 %v2957
      %v4193 = vunpack.c.h.b16 %v2957
      %v4194 = vunpack.c.l.b16 %v2958
      %v4195 = vunpack.c.h.b16 %v2958
      %v4196 = vunpack.c.l.b16 %v2959
      %v4197 = vunpack.c.h.b16 %v2959
      %v4198 = vunpack.c.l.b16 %v2960
      %v4199 = vunpack.c.h.b16 %v2960
      %v4200 = vunpack.c.l.b16 %v2961
      %v4201 = vunpack.c.h.b16 %v2961
      %v4202 = vunpack.c.l.b16 %v2962
      %v4203 = vunpack.c.h.b16 %v2962
      %v4204 = vunpack.c.l.b16 %v2963
      %v4205 = vunpack.c.h.b16 %v2963
      %v4206 = vunpack.c.l.b16 %v2964
      %v4207 = vunpack.c.h.b16 %v2964
      %v4208 = vunpack.c.l.b16 %v2965
      %v4209 = vunpack.c.h.b16 %v2965
      %v4210 = vunpack.c.l.b16 %v2966
      %v4211 = vunpack.c.h.b16 %v2966
      %v4212 = vunpack.c.l.b16 %v2967
      %v4213 = vunpack.c.h.b16 %v2967
      %v4214 = vunpack.c.l.b16 %v2968
      %v4215 = vunpack.c.h.b16 %v2968
      %v4216 = vunpack.c.l.b16 %v2969
      %v4217 = vunpack.c.h.b16 %v2969
      %v4218 = vunpack.c.l.b16 %v2970
      %v4219 = vunpack.c.h.b16 %v2970
      %v4220 = vunpack.c.l.b16 %v2971
      %v4221 = vunpack.c.h.b16 %v2971
      %v4222 = vunpack.c.l.b16 %v2972
      %v4223 = vunpack.c.h.b16 %v2972
      %v4224 = vunpack.c.l.b16 %v2973
      %v4225 = vunpack.c.h.b16 %v2973
      %v4226 = vunpack.c.l.b16 %v2974
      %v4227 = vunpack.c.h.b16 %v2974
      %v4228 = vunpack.c.l.b16 %v2975
      %v4229 = vunpack.c.h.b16 %v2975
      %v4230 = vunpack.c.l.b16 %v2976
      %v4231 = vunpack.c.h.b16 %v2976
      %v4232 = vunpack.c.l.b16 %v2977
      %v4233 = vunpack.c.h.b16 %v2977
      %v4234 = vunpack.c.l.b16 %v2978
      %v4235 = vunpack.c.h.b16 %v2978
      %v4236 = vunpack.c.l.b16 %v2979
      %v4237 = vunpack.c.h.b16 %v2979
      %v4238 = vunpack.c.l.b16 %v2980
      %v4239 = vunpack.c.h.b16 %v2980
      %v4240 = vunpack.c.l.b16 %v2981
      %v4241 = vunpack.c.h.b16 %v2981
      %v4242 = vunpack.c.l.b16 %v2982
      %v4243 = vunpack.c.h.b16 %v2982
      %v4244 = vunpack.c.l.b16 %v2983
      %v4245 = vunpack.c.h.b16 %v2983
      %v4246 = vunpack.c.l.b16 %v2984
      %v4247 = vunpack.c.h.b16 %v2984
      %v4248 = vunpack.c.l.b16 %v2985
      %v4249 = vunpack.c.h.b16 %v2985
      %v4250 = vunpack.c.l.b16 %v2986
      %v4251 = vunpack.c.h.b16 %v2986
      %v4252 = vunpack.c.l.b16 %v2987
      %v4253 = vunpack.c.h.b16 %v2987
      %v4254 = vunpack.c.l.b16 %v2988
      %v4255 = vunpack.c.h.b16 %v2988
      %v4256 = vunpack.c.l.b16 %v2989
      %v4257 = vunpack.c.h.b16 %v2989
      %v4258 = vunpack.c.l.b16 %v2990
      %v4259 = vunpack.c.h.b16 %v2990
      %v4260 = vunpack.c.l.b16 %v2991
      %v4261 = vunpack.c.h.b16 %v2991
      %v4262 = vunpack.c.l.b16 %v2992
      %v4263 = vunpack.c.h.b16 %v2992
      %v4264 = vunpack.c.l.b16 %v2993
      %v4265 = vunpack.c.h.b16 %v2993
      %v4266 = vunpack.c.l.b16 %v2994
      %v4267 = vunpack.c.h.b16 %v2994
      %v4268 = vunpack.c.l.b16 %v2995
      %v4269 = vunpack.c.h.b16 %v2995
      %v4270 = vunpack.c.l.b16 %v2996
      %v4271 = vunpack.c.h.b16 %v2996
      %v4272 = vunpack.c.l.b16 %v2997
      %v4273 = vunpack.c.h.b16 %v2997
      %v4274 = vunpack.c.l.b16 %v2998
      %v4275 = vunpack.c.h.b16 %v2998
      %v4276 = vunpack.c.l.b16 %v2999
      %v4277 = vunpack.c.h.b16 %v2999
      %v4278 = vunpack.c.l.b16 %v3000
      %v4279 = vunpack.c.h.b16 %v3000
      %v4280 = vunpack.c.l.b16 %v3001
      %v4281 = vunpack.c.h.b16 %v3001
      %v4282 = vunpack.c.l.b16 %v3002
      %v4283 = vunpack.c.h.b16 %v3002
      %v4284 = vunpack.c.l.b16 %v3003
      %v4285 = vunpack.c.h.b16 %v3003
      %v4286 = vunpack.c.l.b16 %v3004
      %v4287 = vunpack.c.h.b16 %v3004
      %v4288 = vunpack.c.l.b16 %v3005
      %v4289 = vunpack.c.h.b16 %v3005
      %v4290 = vunpack.c.l.b16 %v3006
      %v4291 = vunpack.c.h.b16 %v3006
      %v4292 = vunpack.c.l.b16 %v3007
      %v4293 = vunpack.c.h.b16 %v3007
      %v4294 = vunpack.c.l.b16 %v3008
      %v4295 = vunpack.c.h.b16 %v3008
      %v4296 = vunpack.c.l.b16 %v3009
      %v4297 = vunpack.c.h.b16 %v3009
      %v4298 = vunpack.c.l.b16 %v3010
      %v4299 = vunpack.c.h.b16 %v3010
      %v4300 = vunpack.c.l.b16 %v3011
      %v4301 = vunpack.c.h.b16 %v3011
      %v4302 = vunpack.c.l.b16 %v3012
      %v4303 = vunpack.c.h.b16 %v3012
      %v4304 = vunpack.c.l.b16 %v3013
      %v4305 = vunpack.c.h.b16 %v3013
      %v4306 = vunpack.c.l.b16 %v3014
      %v4307 = vunpack.c.h.b16 %v3014
      %v4308 = vunpack.c.l.b16 %v3015
      %v4309 = vunpack.c.h.b16 %v3015
      %v4310 = vunpack.c.l.b16 %v3016
      %v4311 = vunpack.c.h.b16 %v3016
      %v4312 = vunpack.c.l.b16 %v3017
      %v4313 = vunpack.c.h.b16 %v3017
      %v4314 = vunpack.c.l.b16 %v3018
      %v4315 = vunpack.c.h.b16 %v3018
      %v4316 = vunpack.c.l.b16 %v3019
      %v4317 = vunpack.c.h.b16 %v3019
      %v4318 = vunpack.c.l.b16 %v3020
      %v4319 = vunpack.c.h.b16 %v3020
      %v4320 = vunpack.c.l.b16 %v3021
      %v4321 = vunpack.c.h.b16 %v3021
      %v4322 = vunpack.c.l.b16 %v3022
      %v4323 = vunpack.c.h.b16 %v3022
      %v4324 = vunpack.c.l.b16 %v3023
      %v4325 = vunpack.c.h.b16 %v3023
      %v4326 = vunpack.c.l.b16 %v3024
      %v4327 = vunpack.c.h.b16 %v3024
      %v4328 = vunpack.c.l.b16 %v3025
      %v4329 = vunpack.c.h.b16 %v3025
      %v4330 = vunpack.c.l.b16 %v3026
      %v4331 = vunpack.c.h.b16 %v3026
      %v4332 = vunpack.c.l.b16 %v3027
      %v4333 = vunpack.c.h.b16 %v3027
      %v4334 = vunpack.c.l.b16 %v3028
      %v4335 = vunpack.c.h.b16 %v3028
      %v4336 = vunpack.c.l.b16 %v3029
      %v4337 = vunpack.c.h.b16 %v3029
      %v4338 = vunpack.c.l.b16 %v3030
      %v4339 = vunpack.c.h.b16 %v3030
      %v4340 = vunpack.c.l.b16 %v3031
      %v4341 = vunpack.c.h.b16 %v3031
      %v4342 = vunpack.c.l.b16 %v3032
      %v4343 = vunpack.c.h.b16 %v3032
      %v4344 = vunpack.c.l.b16 %v3033
      %v4345 = vunpack.c.h.b16 %v3033
      %v4346 = vunpack.c.l.b16 %v3034
      %v4347 = vunpack.c.h.b16 %v3034
      %v4348 = vunpack.c.l.b16 %v3035
      %v4349 = vunpack.c.h.b16 %v3035
      %v4350 = vunpack.c.l.b16 %v3036
      %v4351 = vunpack.c.h.b16 %v3036
      %v4352 = vunpack.c.l.b16 %v3037
      %v4353 = vunpack.c.h.b16 %v3037
      %v4354 = vunpack.c.l.b16 %v3038
      %v4355 = vunpack.c.h.b16 %v3038
      %v4356 = vunpack.c.l.b16 %v3039
      %v4357 = vunpack.c.h.b16 %v3039
      %v4358 = vunpack.c.l.b16 %v3040
      %v4359 = vunpack.c.h.b16 %v3040
      %v4360 = vunpack.c.l.b16 %v3041
      %v4361 = vunpack.c.h.b16 %v3041
      %v4362 = vunpack.c.l.b16 %v3042
      %v4363 = vunpack.c.h.b16 %v3042
      %v4364 = vunpack.c.l.b16 %v3043
      %v4365 = vunpack.c.h.b16 %v3043
      %v4366 = vunpack.c.l.b16 %v3044
      %v4367 = vunpack.c.h.b16 %v3044
      %v4368 = vunpack.c.l.b16 %v3045
      %v4369 = vunpack.c.h.b16 %v3045
      %v4370 = vunpack.c.l.b16 %v3046
      %v4371 = vunpack.c.h.b16 %v3046
      %v4372 = vunpack.c.l.b16 %v3047
      %v4373 = vunpack.c.h.b16 %v3047
      %v4374 = vunpack.c.l.b16 %v3048
      %v4375 = vunpack.c.h.b16 %v3048
      %v4376 = vunpack.c.l.b16 %v3049
      %v4377 = vunpack.c.h.b16 %v3049
      %v4378 = vunpack.c.l.b16 %v3050
      %v4379 = vunpack.c.h.b16 %v3050
      %v4380 = vunpack.c.l.b16 %v3051
      %v4381 = vunpack.c.h.b16 %v3051
      %v4382 = vunpack.c.l.b16 %v3052
      %v4383 = vunpack.c.h.b16 %v3052
      %v4384 = vunpack.c.l.b16 %v3053
      %v4385 = vunpack.c.h.b16 %v3053
      %v4386 = vunpack.c.l.b16 %v3054
      %v4387 = vunpack.c.h.b16 %v3054
      %v4388 = vunpack.c.l.b16 %v3055
      %v4389 = vunpack.c.h.b16 %v3055
      %v4390 = vunpack.c.l.b16 %v3056
      %v4391 = vunpack.c.h.b16 %v3056
      %v4392 = vunpack.c.l.b16 %v3057
      %v4393 = vunpack.c.h.b16 %v3057
      %v4394 = vunpack.c.l.b16 %v3058
      %v4395 = vunpack.c.h.b16 %v3058
      %v4396 = vunpack.c.l.b16 %v3059
      %v4397 = vunpack.c.h.b16 %v3059
      %v4398 = vunpack.c.l.b16 %v3060
      %v4399 = vunpack.c.h.b16 %v3060
      %v4400 = vunpack.c.l.b16 %v3061
      %v4401 = vunpack.c.h.b16 %v3061
      %v4402 = vunpack.c.l.b16 %v3062
      %v4403 = vunpack.c.h.b16 %v3062
      %v4404 = vunpack.c.l.b16 %v3063
      %v4405 = vunpack.c.h.b16 %v3063
      %v4406 = vunpack.c.l.b16 %v3064
      %v4407 = vunpack.c.h.b16 %v3064
      %v4408 = vunpack.c.l.b16 %v3065
      %v4409 = vunpack.c.h.b16 %v3065
      %v4410 = vunpack.c.l.b16 %v3066
      %v4411 = vunpack.c.h.b16 %v3066
      %v4412 = vunpack.c.l.b16 %v3067
      %v4413 = vunpack.c.h.b16 %v3067
      %v4414 = vunpack.c.l.b16 %v3068
      %v4415 = vunpack.c.h.b16 %v3068
      %v4416 = vunpack.c.l.b16 %v3069
      %v4417 = vunpack.c.h.b16 %v3069
      %v4418 = vunpack.c.l.b16 %v3070
      %v4419 = vunpack.c.h.b16 %v3070
      %v4420 = vunpack.c.l.b16 %v3071
      %v4421 = vunpack.c.h.b16 %v3071
      %v4422 = vunpack.c.l.b16 %v3072
      %v4423 = vunpack.c.h.b16 %v3072
      %v4424 = vunpack.c.l.b16 %v3073
      %v4425 = vunpack.c.h.b16 %v3073
      %v4426 = vunpack.c.l.b16 %v3074
      %v4427 = vunpack.c.h.b16 %v3074
      %v4428 = vunpack.c.l.b16 %v3075
      %v4429 = vunpack.c.h.b16 %v3075
      %v4430 = vunpack.c.l.b16 %v3076
      %v4431 = vunpack.c.h.b16 %v3076
      %v4432 = vunpack.c.l.b16 %v3077
      %v4433 = vunpack.c.h.b16 %v3077
      %v4434 = vunpack.c.l.b16 %v3078
      %v4435 = vunpack.c.h.b16 %v3078
      %v4436 = vunpack.c.l.b16 %v3079
      %v4437 = vunpack.c.h.b16 %v3079
      %v4438 = vunpack.c.l.b16 %v3080
      %v4439 = vunpack.c.h.b16 %v3080
      %v4440 = vunpack.c.l.b16 %v3081
      %v4441 = vunpack.c.h.b16 %v3081
      %v4442 = vunpack.c.l.b16 %v3082
      %v4443 = vunpack.c.h.b16 %v3082
      %v4444 = vunpack.c.l.b16 %v3083
      %v4445 = vunpack.c.h.b16 %v3083
      %v4446 = vunpack.c.l.b16 %v3084
      %v4447 = vunpack.c.h.b16 %v3084
      %v4448 = vunpack.c.l.b16 %v3085
      %v4449 = vunpack.c.h.b16 %v3085
      %v4450 = vunpack.c.l.b16 %v3086
      %v4451 = vunpack.c.h.b16 %v3086
      %v4452 = vunpack.c.l.b16 %v3087
      %v4453 = vunpack.c.h.b16 %v3087
      %v4454 = vunpack.c.l.b16 %v3088
      %v4455 = vunpack.c.h.b16 %v3088
      %v4456 = vunpack.c.l.b16 %v3089
      %v4457 = vunpack.c.h.b16 %v3089
      %v4458 = vunpack.c.l.b16 %v3090
      %v4459 = vunpack.c.h.b16 %v3090
      %v4460 = vunpack.c.l.b16 %v3091
      %v4461 = vunpack.c.h.b16 %v3091
      %v4462 = vunpack.c.l.b16 %v3092
      %v4463 = vunpack.c.h.b16 %v3092
      %v4464 = vunpack.c.l.b16 %v3093
      %v4465 = vunpack.c.h.b16 %v3093
      %v4466 = vunpack.c.l.b16 %v3094
      %v4467 = vunpack.c.h.b16 %v3094
      %v4468 = vunpack.c.l.b16 %v3095
      %v4469 = vunpack.c.h.b16 %v3095
      %v4470 = vunpack.c.l.b16 %v3096
      %v4471 = vunpack.c.h.b16 %v3096
      %v4472 = vunpack.c.l.b16 %v3097
      %v4473 = vunpack.c.h.b16 %v3097
      %v4474 = vunpack.c.l.b16 %v3098
      %v4475 = vunpack.c.h.b16 %v3098
      %v4476 = vunpack.c.l.b16 %v3099
      %v4477 = vunpack.c.h.b16 %v3099
      %v4478 = vunpack.c.l.b16 %v3100
      %v4479 = vunpack.c.h.b16 %v3100
      %v4480 = vunpack.c.l.b16 %v3101
      %v4481 = vunpack.c.h.b16 %v3101
      %v4482 = vunpack.c.l.b16 %v3102
      %v4483 = vunpack.c.h.b16 %v3102
      %v4484 = vunpack.c.l.b16 %v3103
      %v4485 = vunpack.c.h.b16 %v3103
      %v4486 = vunpack.c.l.b16 %v3104
      %v4487 = vunpack.c.h.b16 %v3104
      %v4488 = vunpack.c.l.b16 %v3105
      %v4489 = vunpack.c.h.b16 %v3105
      %v4490 = vunpack.c.l.b16 %v3106
      %v4491 = vunpack.c.h.b16 %v3106
      %v4492 = vunpack.c.l.b16 %v3107
      %v4493 = vunpack.c.h.b16 %v3107
      %v4494 = vunpack.c.l.b16 %v3108
      %v4495 = vunpack.c.h.b16 %v3108
      %v4496 = vunpack.c.l.b16 %v3109
      %v4497 = vunpack.c.h.b16 %v3109
      %v4498 = vunpack.c.l.b16 %v3110
      %v4499 = vunpack.c.h.b16 %v3110
      %v4500 = vunpack.c.l.b16 %v3111
      %v4501 = vunpack.c.h.b16 %v3111
      %v4502 = vunpack.c.l.b16 %v3112
      %v4503 = vunpack.c.h.b16 %v3112
      %v4504 = vunpack.c.l.b16 %v3113
      %v4505 = vunpack.c.h.b16 %v3113
      %v4506 = vunpack.c.l.b16 %v3114
      %v4507 = vunpack.c.h.b16 %v3114
      %v4508 = vunpack.c.l.b16 %v3115
      %v4509 = vunpack.c.h.b16 %v3115
      %v4510 = vunpack.c.l.b16 %v3116
      %v4511 = vunpack.c.h.b16 %v3116
      %v4512 = vunpack.c.l.b16 %v3117
      %v4513 = vunpack.c.h.b16 %v3117
      %v4514 = vunpack.c.l.b16 %v3118
      %v4515 = vunpack.c.h.b16 %v3118
      %v4516 = vunpack.c.l.b16 %v3119
      %v4517 = vunpack.c.h.b16 %v3119
      %v4518 = vunpack.c.l.b16 %v3120
      %v4519 = vunpack.c.h.b16 %v3120
      %v4520 = vunpack.c.l.b16 %v3121
      %v4521 = vunpack.c.h.b16 %v3121
      %v4522 = vunpack.c.l.b16 %v3122
      %v4523 = vunpack.c.h.b16 %v3122
      %v4524 = vunpack.c.l.b16 %v3123
      %v4525 = vunpack.c.h.b16 %v3123
      %v4526 = vunpack.c.l.b16 %v3124
      %v4527 = vunpack.c.h.b16 %v3124
      %v4528 = vunpack.c.l.b16 %v3125
      %v4529 = vunpack.c.h.b16 %v3125
      %v4530 = vunpack.c.l.b16 %v3126
      %v4531 = vunpack.c.h.b16 %v3126
      %v4532 = vunpack.c.l.b16 %v3127
      %v4533 = vunpack.c.h.b16 %v3127
      %v4534 = vunpack.c.l.b16 %v3128
      %v4535 = vunpack.c.h.b16 %v3128
      %v4536 = vunpack.c.l.b16 %v3129
      %v4537 = vunpack.c.h.b16 %v3129
      %v4538 = vunpack.c.l.b16 %v3130
      %v4539 = vunpack.c.h.b16 %v3130
      %v4540 = vunpack.c.l.b16 %v3131
      %v4541 = vunpack.c.h.b16 %v3131
      %v4542 = vunpack.c.l.b16 %v3132
      %v4543 = vunpack.c.h.b16 %v3132
      %v4544 = vunpack.c.l.b16 %v3133
      %v4545 = vunpack.c.h.b16 %v3133
      %v4546 = vunpack.c.l.b16 %v3134
      %v4547 = vunpack.c.h.b16 %v3134
      %v4548 = vunpack.c.l.b16 %v3135
      %v4549 = vunpack.c.h.b16 %v3135
      %v4550 = vunpack.c.l.b16 %v3136
      %v4551 = vunpack.c.h.b16 %v3136
      %v4552 = vunpack.c.l.b16 %v3137
      %v4553 = vunpack.c.h.b16 %v3137
      %v4554 = vunpack.c.l.b16 %v3138
      %v4555 = vunpack.c.h.b16 %v3138
      %v4556 = vunpack.c.l.b16 %v3139
      %v4557 = vunpack.c.h.b16 %v3139
      %v4558 = vunpack.c.l.b16 %v3140
      %v4559 = vunpack.c.h.b16 %v3140
      %v4560 = vunpack.c.l.b16 %v3141
      %v4561 = vunpack.c.h.b16 %v3141
      %v4562 = vunpack.c.l.b16 %v3142
      %v4563 = vunpack.c.h.b16 %v3142
      %v4564 = vunpack.c.l.b16 %v3143
      %v4565 = vunpack.c.h.b16 %v3143
      %v4566 = vunpack.c.l.b16 %v3144
      %v4567 = vunpack.c.h.b16 %v3144
      %v4568 = vunpack.c.l.b16 %v3145
      %v4569 = vunpack.c.h.b16 %v3145
      %v4570 = vunpack.c.l.b16 %v3146
      %v4571 = vunpack.c.h.b16 %v3146
      %v4572 = vunpack.c.l.b16 %v3147
      %v4573 = vunpack.c.h.b16 %v3147
      %v4574 = vunpack.c.l.b16 %v3148
      %v4575 = vunpack.c.h.b16 %v3148
      %v4576 = vunpack.c.l.b16 %v3149
      %v4577 = vunpack.c.h.b16 %v3149
      %v4578 = vunpack.c.l.b16 %v3150
      %v4579 = vunpack.c.h.b16 %v3150
      %v4580 = vunpack.c.l.b16 %v3151
      %v4581 = vunpack.c.h.b16 %v3151
      %v4582 = vunpack.c.l.b16 %v3152
      %v4583 = vunpack.c.h.b16 %v3152
      %v4584 = vunpack.c.l.b16 %v3153
      %v4585 = vunpack.c.h.b16 %v3153
      %v4586 = vunpack.c.l.b16 %v3154
      %v4587 = vunpack.c.h.b16 %v3154
      %v4588 = vunpack.c.l.b16 %v3155
      %v4589 = vunpack.c.h.b16 %v3155
      %v4590 = vunpack.c.l.b16 %v3156
      %v4591 = vunpack.c.h.b16 %v3156
      %v4592 = vunpack.c.l.b16 %v3157
      %v4593 = vunpack.c.h.b16 %v3157
      %v4594 = vunpack.c.l.b16 %v3158
      %v4595 = vunpack.c.h.b16 %v3158
      %v4596 = vunpack.c.l.b16 %v3159
      %v4597 = vunpack.c.h.b16 %v3159
      %v4598 = vunpack.c.l.b16 %v3160
      %v4599 = vunpack.c.h.b16 %v3160
      %v4600 = vunpack.c.l.b16 %v3161
      %v4601 = vunpack.c.h.b16 %v3161
      %v4602 = vunpack.c.l.b16 %v3162
      %v4603 = vunpack.c.h.b16 %v3162
      %v4604 = vunpack.c.l.b16 %v3163
      %v4605 = vunpack.c.h.b16 %v3163
      %v4606 = vunpack.c.l.b16 %v3164
      %v4607 = vunpack.c.h.b16 %v3164
      %v4608 = vunpack.c.l.b16 %v3165
      %v4609 = vunpack.c.h.b16 %v3165
      %v4610 = vunpack.c.l.b16 %v3166
      %v4611 = vunpack.c.h.b16 %v3166
      %v4612 = vunpack.c.l.b16 %v3167
      %v4613 = vunpack.c.h.b16 %v3167
      %v4614 = vunpack.c.l.b16 %v3168
      %v4615 = vunpack.c.h.b16 %v3168
      %v4616 = vunpack.c.l.b16 %v3169
      %v4617 = vunpack.c.h.b16 %v3169
      %v4618 = vunpack.c.l.b16 %v3170
      %v4619 = vunpack.c.h.b16 %v3170
      %v4620 = vunpack.c.l.b16 %v3171
      %v4621 = vunpack.c.h.b16 %v3171
      %v4622 = vunpack.c.l.b16 %v3172
      %v4623 = vunpack.c.h.b16 %v3172
      %v4624 = vunpack.c.l.b16 %v3173
      %v4625 = vunpack.c.h.b16 %v3173
      %v4626 = vunpack.c.l.b16 %v3174
      %v4627 = vunpack.c.h.b16 %v3174
      %v4628 = vunpack.c.l.b16 %v3175
      %v4629 = vunpack.c.h.b16 %v3175
      %v4630 = vunpack.c.l.b16 %v3176
      %v4631 = vunpack.c.h.b16 %v3176
      %v4632 = vunpack.c.l.b16 %v3177
      %v4633 = vunpack.c.h.b16 %v3177
      %v4634 = vunpack.c.l.b16 %v3178
      %v4635 = vunpack.c.h.b16 %v3178
      %v4636 = vunpack.c.l.b16 %v3179
      %v4637 = vunpack.c.h.b16 %v3179
      %v4638 = vunpack.c.l.b16 %v3180
      %v4639 = vunpack.c.h.b16 %v3180
      %v4640 = vunpack.c.l.b16 %v3181
      %v4641 = vunpack.c.h.b16 %v3181
      %v4642 = vunpack.c.l.b16 %v3182
      %v4643 = vunpack.c.h.b16 %v3182
      %v4644 = vunpack.c.l.b16 %v3183
      %v4645 = vunpack.c.h.b16 %v3183
      %v4646 = vunpack.c.l.b16 %v3184
      %v4647 = vunpack.c.h.b16 %v3184
      %v4648 = vunpack.c.l.b16 %v3185
      %v4649 = vunpack.c.h.b16 %v3185
      %v4650 = vunpack.c.l.b16 %v3186
      %v4651 = vunpack.c.h.b16 %v3186
      %v4652 = vunpack.c.l.b16 %v3187
      %v4653 = vunpack.c.h.b16 %v3187
      %v4654 = vunpack.c.l.b16 %v3188
      %v4655 = vunpack.c.h.b16 %v3188
      %v4656 = vunpack.c.l.b16 %v3189
      %v4657 = vunpack.c.h.b16 %v3189
      %v4658 = vunpack.c.l.b16 %v3190
      %v4659 = vunpack.c.h.b16 %v3190
      %v4660 = vunpack.c.l.b16 %v3191
      %v4661 = vunpack.c.h.b16 %v3191
      %v4662 = vunpack.c.l.b16 %v3192
      %v4663 = vunpack.c.h.b16 %v3192
      %v4664 = vunpack.c.l.b16 %v3193
      %v4665 = vunpack.c.h.b16 %v3193
      %v4666 = vunpack.c.l.b16 %v3194
      %v4667 = vunpack.c.h.b16 %v3194
      %v4668 = vunpack.c.l.b16 %v3195
      %v4669 = vunpack.c.h.b16 %v3195
      %v4670 = vunpack.c.l.b16 %v3196
      %v4671 = vunpack.c.h.b16 %v3196
      %v4672 = vunpack.c.l.b16 %v3197
      %v4673 = vunpack.c.h.b16 %v3197
      %v4674 = vunpack.c.l.b16 %v3198
      %v4675 = vunpack.c.h.b16 %v3198
      %v4676 = vunpack.c.l.b16 %v3199
      %v4677 = vunpack.c.h.b16 %v3199
      %v4678 = vunpack.c.l.b16 %v3200
      %v4679 = vunpack.c.h.b16 %v3200
      %v4680 = vunpack.c.l.b16 %v3201
      %v4681 = vunpack.c.h.b16 %v3201
      %v4682 = vunpack.c.l.b16 %v3202
      %v4683 = vunpack.c.h.b16 %v3202
      %v4684 = vunpack.c.l.b16 %v3203
      %v4685 = vunpack.c.h.b16 %v3203
      %v4686 = vunpack.c.l.b16 %v3204
      %v4687 = vunpack.c.h.b16 %v3204
      %v4688 = vunpack.c.l.b16 %v3205
      %v4689 = vunpack.c.h.b16 %v3205
      %v4690 = vunpack.c.l.b16 %v3206
      %v4691 = vunpack.c.h.b16 %v3206
      %v4692 = vunpack.c.l.b16 %v3207
      %v4693 = vunpack.c.h.b16 %v3207
      %v4694 = vunpack.c.l.b16 %v3208
      %v4695 = vunpack.c.h.b16 %v3208
      %v4696 = vunpack.c.l.b16 %v3209
      %v4697 = vunpack.c.h.b16 %v3209
      %v4698 = vunpack.c.l.b16 %v3210
      %v4699 = vunpack.c.h.b16 %v3210
      %v4700 = vunpack.c.l.b16 %v3211
      %v4701 = vunpack.c.h.b16 %v3211
      %v4702 = vunpack.c.l.b16 %v3212
      %v4703 = vunpack.c.h.b16 %v3212
      %v4704 = vunpack.c.l.b16 %v3213
      %v4705 = vunpack.c.h.b16 %v3213
      %v4706 = vunpack.c.l.b16 %v3214
      %v4707 = vunpack.c.h.b16 %v3214
      %v4708 = vunpack.c.l.b16 %v3215
      %v4709 = vunpack.c.h.b16 %v3215
      %v4710 = vunpack.c.l.b16 %v3216
      %v4711 = vunpack.c.h.b16 %v3216
      %v4712 = vunpack.c.l.b16 %v3217
      %v4713 = vunpack.c.h.b16 %v3217
      %v4714 = vunpack.c.l.b16 %v3218
      %v4715 = vunpack.c.h.b16 %v3218
      %v4716 = vunpack.c.l.b16 %v3219
      %v4717 = vunpack.c.h.b16 %v3219
      %v4718 = vunpack.c.l.b16 %v3220
      %v4719 = vunpack.c.h.b16 %v3220
      %v4720 = vunpack.c.l.b16 %v3221
      %v4721 = vunpack.c.h.b16 %v3221
      %v4722 = vunpack.c.l.b16 %v3222
      %v4723 = vunpack.c.h.b16 %v3222
      %v4724 = vunpack.c.l.b16 %v3223
      %v4725 = vunpack.c.h.b16 %v3223
      %v4726 = vunpack.c.l.b16 %v3224
      %v4727 = vunpack.c.h.b16 %v3224
      %v4728 = vunpack.c.l.b16 %v3225
      %v4729 = vunpack.c.h.b16 %v3225
      %v4730 = vunpack.c.l.b16 %v3226
      %v4731 = vunpack.c.h.b16 %v3226
      %v4732 = vunpack.c.l.b16 %v3227
      %v4733 = vunpack.c.h.b16 %v3227
      %v4734 = vunpack.c.l.b16 %v3228
      %v4735 = vunpack.c.h.b16 %v3228
      %v4736 = vunpack.c.l.b16 %v3229
      %v4737 = vunpack.c.h.b16 %v3229
      %v4738 = vunpack.c.l.b16 %v3230
      %v4739 = vunpack.c.h.b16 %v3230
      %v4740 = vunpack.c.l.b16 %v3231
      %v4741 = vunpack.c.h.b16 %v3231
      %v4742 = vunpack.c.l.b16 %v3232
      %v4743 = vunpack.c.h.b16 %v3232
      %v4744 = vunpack.c.l.b16 %v3233
      %v4745 = vunpack.c.h.b16 %v3233
      %v4746 = vunpack.c.l.b16 %v3234
      %v4747 = vunpack.c.h.b16 %v3234
      %v4748 = vunpack.c.l.b16 %v3235
      %v4749 = vunpack.c.h.b16 %v3235
      %v4750 = vunpack.c.l.b16 %v3236
      %v4751 = vunpack.c.h.b16 %v3236
      %v4752 = vunpack.c.l.b16 %v3237
      %v4753 = vunpack.c.h.b16 %v3237
      %v4754 = vunpack.c.l.b16 %v3238
      %v4755 = vunpack.c.h.b16 %v3238
      %v4756 = vunpack.c.l.b16 %v3239
      %v4757 = vunpack.c.h.b16 %v3239
      %v4758 = vunpack.c.l.b16 %v3240
      %v4759 = vunpack.c.h.b16 %v3240
      %v4760 = vunpack.c.l.b16 %v3241
      %v4761 = vunpack.c.h.b16 %v3241
      %v4762 = vunpack.c.l.b16 %v3242
      %v4763 = vunpack.c.h.b16 %v3242
      %v4764 = vunpack.c.l.b16 %v3243
      %v4765 = vunpack.c.h.b16 %v3243
      %v4766 = vunpack.c.l.b16 %v3244
      %v4767 = vunpack.c.h.b16 %v3244
      %v4768 = vunpack.c.l.b16 %v3245
      %v4769 = vunpack.c.h.b16 %v3245
      %v4770 = vunpack.c.l.b16 %v3246
      %v4771 = vunpack.c.h.b16 %v3246
      %v4772 = vunpack.c.l.b16 %v3247
      %v4773 = vunpack.c.h.b16 %v3247
      %v4774 = vunpack.c.l.b16 %v3248
      %v4775 = vunpack.c.h.b16 %v3248
      %v4776 = vunpack.c.l.b16 %v3249
      %v4777 = vunpack.c.h.b16 %v3249
      %v4778 = vunpack.c.l.b16 %v3250
      %v4779 = vunpack.c.h.b16 %v3250
      %v4780 = vunpack.c.l.b16 %v3251
      %v4781 = vunpack.c.h.b16 %v3251
      %v4782 = vunpack.c.l.b16 %v3252
      %v4783 = vunpack.c.h.b16 %v3252
      %v4784 = vunpack.c.l.b16 %v3253
      %v4785 = vunpack.c.h.b16 %v3253
      %v4786 = vunpack.c.l.b16 %v3254
      %v4787 = vunpack.c.h.b16 %v3254
      %v4788 = vunpack.c.l.b16 %v3255
      %v4789 = vunpack.c.h.b16 %v3255
      %v4790 = vunpack.c.l.b16 %v3256
      %v4791 = vunpack.c.h.b16 %v3256
      %v4792 = vunpack.c.l.b16 %v3257
      %v4793 = vunpack.c.h.b16 %v3257
      %v4794 = vunpack.c.l.b16 %v3258
      %v4795 = vunpack.c.h.b16 %v3258
      %v4796 = vunpack.c.l.b16 %v3259
      %v4797 = vunpack.c.h.b16 %v3259
      %v4798 = vunpack.c.l.b16 %v3260
      %v4799 = vunpack.c.h.b16 %v3260
      %v4800 = vunpack.c.l.b16 %v3261
      %v4801 = vunpack.c.h.b16 %v3261
      %v4802 = vunpack.c.l.b16 %v3262
      %v4803 = vunpack.c.h.b16 %v3262
      %v4804 = vunpack.c.l.b16 %v3263
      %v4805 = vunpack.c.h.b16 %v3263
      %v4806 = vunpack.c.l.b16 %v3264
      %v4807 = vunpack.c.h.b16 %v3264
      %v4808 = vunpack.c.l.b16 %v3265
      %v4809 = vunpack.c.h.b16 %v3265
      %v4810 = vunpack.c.l.b16 %v3266
      %v4811 = vunpack.c.h.b16 %v3266
      %v4812 = vunpack.c.l.b16 %v3267
      %v4813 = vunpack.c.h.b16 %v3267
      %v4814 = vunpack.c.l.b16 %v3268
      %v4815 = vunpack.c.h.b16 %v3268
      %v4816 = vunpack.c.l.b16 %v3269
      %v4817 = vunpack.c.h.b16 %v3269
      %v4818 = vunpack.c.l.b16 %v3270
      %v4819 = vunpack.c.h.b16 %v3270
      %v4820 = vunpack.c.l.b16 %v3271
      %v4821 = vunpack.c.h.b16 %v3271
      %v4822 = vunpack.c.l.b16 %v3272
      %v4823 = vunpack.c.h.b16 %v3272
      %v4824 = vunpack.c.l.b16 %v3273
      %v4825 = vunpack.c.h.b16 %v3273
      %v4826 = vunpack.c.l.b16 %v3274
      %v4827 = vunpack.c.h.b16 %v3274
      %v4828 = vunpack.c.l.b16 %v3275
      %v4829 = vunpack.c.h.b16 %v3275
      %v4830 = vunpack.c.l.b16 %v3276
      %v4831 = vunpack.c.h.b16 %v3276
      %v4832 = vunpack.c.l.b16 %v3277
      %v4833 = vunpack.c.h.b16 %v3277
      %v4834 = vunpack.c.l.b16 %v3278
      %v4835 = vunpack.c.h.b16 %v3278
      %v4836 = vunpack.c.l.b16 %v3279
      %v4837 = vunpack.c.h.b16 %v3279
      %v4838 = vunpack.c.l.b16 %v3280
      %v4839 = vunpack.c.h.b16 %v3280
      %v4840 = vunpack.c.l.b16 %v3281
      %v4841 = vunpack.c.h.b16 %v3281
      %v4842 = vunpack.c.l.b16 %v3282
      %v4843 = vunpack.c.h.b16 %v3282
      %v4844 = vunpack.c.l.b16 %v3283
      %v4845 = vunpack.c.h.b16 %v3283
      %v4846 = vunpack.c.l.b16 %v3284
      %v4847 = vunpack.c.h.b16 %v3284
      %v4848 = vunpack.c.l.b16 %v3285
      %v4849 = vunpack.c.h.b16 %v3285
      %v4850 = vunpack.c.l.b16 %v3286
      %v4851 = vunpack.c.h.b16 %v3286
      %v4852 = vunpack.c.l.b16 %v3287
      %v4853 = vunpack.c.h.b16 %v3287
      %v4854 = vunpack.c.l.b16 %v3288
      %v4855 = vunpack.c.h.b16 %v3288
      %v4856 = vunpack.c.l.b16 %v3289
      %v4857 = vunpack.c.h.b16 %v3289
      %v4858 = vunpack.c.l.b16 %v3290
      %v4859 = vunpack.c.h.b16 %v3290
      %v4860 = vunpack.c.l.b16 %v3291
      %v4861 = vunpack.c.h.b16 %v3291
      %v4862 = vunpack.c.l.b16 %v3292
      %v4863 = vunpack.c.h.b16 %v3292
      %v4864 = vunpack.c.l.b16 %v3293
      %v4865 = vunpack.c.h.b16 %v3293
      %v4866 = vunpack.c.l.b16 %v3294
      %v4867 = vunpack.c.h.b16 %v3294
      %v4868 = vunpack.c.l.b16 %v3295
      %v4869 = vunpack.c.h.b16 %v3295
      %v4870 = vunpack.c.l.b16 %v3296
      %v4871 = vunpack.c.h.b16 %v3296
      %v4872 = vunpack.c.l.b16 %v3297
      %v4873 = vunpack.c.h.b16 %v3297
      %v4874 = vunpack.c.l.b16 %v3298
      %v4875 = vunpack.c.h.b16 %v3298
      %v4876 = vunpack.c.l.b16 %v3299
      %v4877 = vunpack.c.h.b16 %v3299
      %v4878 = vpack.c.b16 %v3862, %v3854
      %v4879 = vpack.c.b16 %v3863, %v3855
      %v4880 = vpack.c.b16 %v3864, %v3856
      %v4881 = vpack.c.b16 %v3865, %v3857
      %v4882 = vpack.c.b16 %v3866, %v3858
      %v4883 = vpack.c.b16 %v3867, %v3859
      %v4884 = vpack.c.b16 %v3868, %v3860
      %v4885 = vpack.c.b16 %v3869, %v3861
      %v4886 = vpack.c.b16 %v3878, %v3870
      %v4887 = vpack.c.b16 %v3879, %v3871
      %v4888 = vpack.c.b16 %v3880, %v3872
      %v4889 = vpack.c.b16 %v3881, %v3873
      %v4890 = vpack.c.b16 %v3882, %v3874
      %v4891 = vpack.c.b16 %v3883, %v3875
      %v4892 = vpack.c.b16 %v3884, %v3876
      %v4893 = vpack.c.b16 %v3885, %v3877
      %v4894 = vpack.c.b16 %v3894, %v3886
      %v4895 = vpack.c.b16 %v3895, %v3887
      %v4896 = vpack.c.b16 %v3896, %v3888
      %v4897 = vpack.c.b16 %v3897, %v3889
      %v4898 = vpack.c.b16 %v3898, %v3890
      %v4899 = vpack.c.b16 %v3899, %v3891
      %v4900 = vpack.c.b16 %v3900, %v3892
      %v4901 = vpack.c.b16 %v3901, %v3893
      %v4902 = vpack.c.b16 %v3910, %v3902
      %v4903 = vpack.c.b16 %v3911, %v3903
      %v4904 = vpack.c.b16 %v3912, %v3904
      %v4905 = vpack.c.b16 %v3913, %v3905
      %v4906 = vpack.c.b16 %v3914, %v3906
      %v4907 = vpack.c.b16 %v3915, %v3907
      %v4908 = vpack.c.b16 %v3916, %v3908
      %v4909 = vpack.c.b16 %v3917, %v3909
      %v4910 = vpack.c.b16 %v3926, %v3918
      %v4911 = vpack.c.b16 %v3927, %v3919
      %v4912 = vpack.c.b16 %v3928, %v3920
      %v4913 = vpack.c.b16 %v3929, %v3921
      %v4914 = vpack.c.b16 %v3930, %v3922
      %v4915 = vpack.c.b16 %v3931, %v3923
      %v4916 = vpack.c.b16 %v3932, %v3924
      %v4917 = vpack.c.b16 %v3933, %v3925
      %v4918 = vpack.c.b16 %v3942, %v3934
      %v4919 = vpack.c.b16 %v3943, %v3935
      %v4920 = vpack.c.b16 %v3944, %v3936
      %v4921 = vpack.c.b16 %v3945, %v3937
      %v4922 = vpack.c.b16 %v3946, %v3938
      %v4923 = vpack.c.b16 %v3947, %v3939
      %v4924 = vpack.c.b16 %v3948, %v3940
      %v4925 = vpack.c.b16 %v3949, %v3941
      %v4926 = vpack.c.b16 %v3958, %v3950
      %v4927 = vpack.c.b16 %v3959, %v3951
      %v4928 = vpack.c.b16 %v3960, %v3952
      %v4929 = vpack.c.b16 %v3961, %v3953
      %v4930 = vpack.c.b16 %v3962, %v3954
      %v4931 = vpack.c.b16 %v3963, %v3955
      %v4932 = vpack.c.b16 %v3964, %v3956
      %v4933 = vpack.c.b16 %v3965, %v3957
      %v4934 = vpack.c.b16 %v3974, %v3966
      %v4935 = vpack.c.b16 %v3975, %v3967
      %v4936 = vpack.c.b16 %v3976, %v3968
      %v4937 = vpack.c.b16 %v3977, %v3969
      %v4938 = vpack.c.b16 %v3978, %v3970
      %v4939 = vpack.c.b16 %v3979, %v3971
      %v4940 = vpack.c.b16 %v3980, %v3972
      %v4941 = vpack.c.b16 %v3981, %v3973
      %v4942 = vpack.c.b16 %v3990, %v3982
      %v4943 = vpack.c.b16 %v3991, %v3983
      %v4944 = vpack.c.b16 %v3992, %v3984
      %v4945 = vpack.c.b16 %v3993, %v3985
      %v4946 = vpack.c.b16 %v3994, %v3986
      %v4947 = vpack.c.b16 %v3995, %v3987
      %v4948 = vpack.c.b16 %v3996, %v3988
      %v4949 = vpack.c.b16 %v3997, %v3989
      %v4950 = vpack.c.b16 %v4006, %v3998
      %v4951 = vpack.c.b16 %v4007, %v3999
      %v4952 = vpack.c.b16 %v4008, %v4000
      %v4953 = vpack.c.b16 %v4009, %v4001
      %v4954 = vpack.c.b16 %v4010, %v4002
      %v4955 = vpack.c.b16 %v4011, %v4003
      %v4956 = vpack.c.b16 %v4012, %v4004
      %v4957 = vpack.c.b16 %v4013, %v4005
      %v4958 = vpack.c.b16 %v4022, %v4014
      %v4959 = vpack.c.b16 %v4023, %v4015
      %v4960 = vpack.c.b16 %v4024, %v4016
      %v4961 = vpack.c.b16 %v4025, %v4017
      %v4962 = vpack.c.b16 %v4026, %v4018
      %v4963 = vpack.c.b16 %v4027, %v4019
      %v4964 = vpack.c.b16 %v4028, %v4020
      %v4965 = vpack.c.b16 %v4029, %v4021
      %v4966 = vpack.c.b16 %v4038, %v4030
      %v4967 = vpack.c.b16 %v4039, %v4031
      %v4968 = vpack.c.b16 %v4040, %v4032
      %v4969 = vpack.c.b16 %v4041, %v4033
      %v4970 = vpack.c.b16 %v4042, %v4034
      %v4971 = vpack.c.b16 %v4043, %v4035
      %v4972 = vpack.c.b16 %v4044, %v4036
      %v4973 = vpack.c.b16 %v4045, %v4037
      %v4974 = vpack.c.b16 %v4054, %v4046
      %v4975 = vpack.c.b16 %v4055, %v4047
      %v4976 = vpack.c.b16 %v4056, %v4048
      %v4977 = vpack.c.b16 %v4057, %v4049
      %v4978 = vpack.c.b16 %v4058, %v4050
      %v4979 = vpack.c.b16 %v4059, %v4051
      %v4980 = vpack.c.b16 %v4060, %v4052
      %v4981 = vpack.c.b16 %v4061, %v4053
      %v4982 = vpack.c.b16 %v4070, %v4062
      %v4983 = vpack.c.b16 %v4071, %v4063
      %v4984 = vpack.c.b16 %v4072, %v4064
      %v4985 = vpack.c.b16 %v4073, %v4065
      %v4986 = vpack.c.b16 %v4074, %v4066
      %v4987 = vpack.c.b16 %v4075, %v4067
      %v4988 = vpack.c.b16 %v4076, %v4068
      %v4989 = vpack.c.b16 %v4077, %v4069
      %v4990 = vpack.c.b16 %v4086, %v4078
      %v4991 = vpack.c.b16 %v4087, %v4079
      %v4992 = vpack.c.b16 %v4088, %v4080
      %v4993 = vpack.c.b16 %v4089, %v4081
      %v4994 = vpack.c.b16 %v4090, %v4082
      %v4995 = vpack.c.b16 %v4091, %v4083
      %v4996 = vpack.c.b16 %v4092, %v4084
      %v4997 = vpack.c.b16 %v4093, %v4085
      %v4998 = vpack.c.b16 %v4102, %v4094
      %v4999 = vpack.c.b16 %v4103, %v4095
      %v5000 = vpack.c.b16 %v4104, %v4096
      %v5001 = vpack.c.b16 %v4105, %v4097
      %v5002 = vpack.c.b16 %v4106, %v4098
      %v5003 = vpack.c.b16 %v4107, %v4099
      %v5004 = vpack.c.b16 %v4108, %v4100
      %v5005 = vpack.c.b16 %v4109, %v4101
      %v5006 = vpack.c.b16 %v4118, %v4110
      %v5007 = vpack.c.b16 %v4119, %v4111
      %v5008 = vpack.c.b16 %v4120, %v4112
      %v5009 = vpack.c.b16 %v4121, %v4113
      %v5010 = vpack.c.b16 %v4122, %v4114
      %v5011 = vpack.c.b16 %v4123, %v4115
      %v5012 = vpack.c.b16 %v4124, %v4116
      %v5013 = vpack.c.b16 %v4125, %v4117
      %v5014 = vpack.c.b16 %v4134, %v4126
      %v5015 = vpack.c.b16 %v4135, %v4127
      %v5016 = vpack.c.b16 %v4136, %v4128
      %v5017 = vpack.c.b16 %v4137, %v4129
      %v5018 = vpack.c.b16 %v4138, %v4130
      %v5019 = vpack.c.b16 %v4139, %v4131
      %v5020 = vpack.c.b16 %v4140, %v4132
      %v5021 = vpack.c.b16 %v4141, %v4133
      %v5022 = vpack.c.b16 %v4150, %v4142
      %v5023 = vpack.c.b16 %v4151, %v4143
      %v5024 = vpack.c.b16 %v4152, %v4144
      %v5025 = vpack.c.b16 %v4153, %v4145
      %v5026 = vpack.c.b16 %v4154, %v4146
      %v5027 = vpack.c.b16 %v4155, %v4147
      %v5028 = vpack.c.b16 %v4156, %v4148
      %v5029 = vpack.c.b16 %v4157, %v4149
      %v5030 = vpack.c.b16 %v4166, %v4158
      %v5031 = vpack.c.b16 %v4167, %v4159
      %v5032 = vpack.c.b16 %v4168, %v4160
      %v5033 = vpack.c.b16 %v4169, %v4161
      %v5034 = vpack.c.b16 %v4170, %v4162
      %v5035 = vpack.c.b16 %v4171, %v4163
      %v5036 = vpack.c.b16 %v4172, %v4164
      %v5037 = vpack.c.b16 %v4173, %v4165
      %v5038 = vpack.c.b16 %v4182, %v4174
      %v5039 = vpack.c.b16 %v4183, %v4175
      %v5040 = vpack.c.b16 %v4184, %v4176
      %v5041 = vpack.c.b16 %v4185, %v4177
      %v5042 = vpack.c.b16 %v4186, %v4178
      %v5043 = vpack.c.b16 %v4187, %v4179
      %v5044 = vpack.c.b16 %v4188, %v4180
      %v5045 = vpack.c.b16 %v4189, %v4181
      %v5046 = vpack.c.b16 %v4198, %v4190
      %v5047 = vpack.c.b16 %v4199, %v4191
      %v5048 = vpack.c.b16 %v4200, %v4192
      %v5049 = vpack.c.b16 %v4201, %v4193
      %v5050 = vpack.c.b16 %v4202, %v4194
      %v5051 = vpack.c.b16 %v4203, %v4195
      %v5052 = vpack.c.b16 %v4204, %v4196
      %v5053 = vpack.c.b16 %v4205, %v4197
      %v5054 = vpack.c.b16 %v4214, %v4206
      %v5055 = vpack.c.b16 %v4215, %v4207
      %v5056 = vpack.c.b16 %v4216, %v4208
      %v5057 = vpack.c.b16 %v4217, %v4209
      %v5058 = vpack.c.b16 %v4218, %v4210
      %v5059 = vpack.c.b16 %v4219, %v4211
      %v5060 = vpack.c.b16 %v4220, %v4212
      %v5061 = vpack.c.b16 %v4221, %v4213
      %v5062 = vpack.c.b16 %v4230, %v4222
      %v5063 = vpack.c.b16 %v4231, %v4223
      %v5064 = vpack.c.b16 %v4232, %v4224
      %v5065 = vpack.c.b16 %v4233, %v4225
      %v5066 = vpack.c.b16 %v4234, %v4226
      %v5067 = vpack.c.b16 %v4235, %v4227
      %v5068 = vpack.c.b16 %v4236, %v4228
      %v5069 = vpack.c.b16 %v4237, %v4229
      %v5070 = vpack.c.b16 %v4246, %v4238
      %v5071 = vpack.c.b16 %v4247, %v4239
      %v5072 = vpack.c.b16 %v4248, %v4240
      %v5073 = vpack.c.b16 %v4249, %v4241
      %v5074 = vpack.c.b16 %v4250, %v4242
      %v5075 = vpack.c.b16 %v4251, %v4243
      %v5076 = vpack.c.b16 %v4252, %v4244
      %v5077 = vpack.c.b16 %v4253, %v4245
      %v5078 = vpack.c.b16 %v4262, %v4254
      %v5079 = vpack.c.b16 %v4263, %v4255
      %v5080 = vpack.c.b16 %v4264, %v4256
      %v5081 = vpack.c.b16 %v4265, %v4257
      %v5082 = vpack.c.b16 %v4266, %v4258
      %v5083 = vpack.c.b16 %v4267, %v4259
      %v5084 = vpack.c.b16 %v4268, %v4260
      %v5085 = vpack.c.b16 %v4269, %v4261
      %v5086 = vpack.c.b16 %v4278, %v4270
      %v5087 = vpack.c.b16 %v4279, %v4271
      %v5088 = vpack.c.b16 %v4280, %v4272
      %v5089 = vpack.c.b16 %v4281, %v4273
      %v5090 = vpack.c.b16 %v4282, %v4274
      %v5091 = vpack.c.b16 %v4283, %v4275
      %v5092 = vpack.c.b16 %v4284, %v4276
      %v5093 = vpack.c.b16 %v4285, %v4277
      %v5094 = vpack.c.b16 %v4294, %v4286
      %v5095 = vpack.c.b16 %v4295, %v4287
      %v5096 = vpack.c.b16 %v4296, %v4288
      %v5097 = vpack.c.b16 %v4297, %v4289
      %v5098 = vpack.c.b16 %v4298, %v4290
      %v5099 = vpack.c.b16 %v4299, %v4291
      %v5100 = vpack.c.b16 %v4300, %v4292
      %v5101 = vpack.c.b16 %v4301, %v4293
      %v5102 = vpack.c.b16 %v4310, %v4302
      %v5103 = vpack.c.b16 %v4311, %v4303
      %v5104 = vpack.c.b16 %v4312, %v4304
      %v5105 = vpack.c.b16 %v4313, %v4305
      %v5106 = vpack.c.b16 %v4314, %v4306
      %v5107 = vpack.c.b16 %v4315, %v4307
      %v5108 = vpack.c.b16 %v4316, %v4308
      %v5109 = vpack.c.b16 %v4317, %v4309
      %v5110 = vpack.c.b16 %v4326, %v4318
      %v5111 = vpack.c.b16 %v4327, %v4319
      %v5112 = vpack.c.b16 %v4328, %v4320
      %v5113 = vpack.c.b16 %v4329, %v4321
      %v5114 = vpack.c.b16 %v4330, %v4322
      %v5115 = vpack.c.b16 %v4331, %v4323
      %v5116 = vpack.c.b16 %v4332, %v4324
      %v5117 = vpack.c.b16 %v4333, %v4325
      %v5118 = vpack.c.b16 %v4342, %v4334
      %v5119 = vpack.c.b16 %v4343, %v4335
      %v5120 = vpack.c.b16 %v4344, %v4336
      %v5121 = vpack.c.b16 %v4345, %v4337
      %v5122 = vpack.c.b16 %v4346, %v4338
      %v5123 = vpack.c.b16 %v4347, %v4339
      %v5124 = vpack.c.b16 %v4348, %v4340
      %v5125 = vpack.c.b16 %v4349, %v4341
      %v5126 = vpack.c.b16 %v4358, %v4350
      %v5127 = vpack.c.b16 %v4359, %v4351
      %v5128 = vpack.c.b16 %v4360, %v4352
      %v5129 = vpack.c.b16 %v4361, %v4353
      %v5130 = vpack.c.b16 %v4362, %v4354
      %v5131 = vpack.c.b16 %v4363, %v4355
      %v5132 = vpack.c.b16 %v4364, %v4356
      %v5133 = vpack.c.b16 %v4365, %v4357
      %v5134 = vpack.c.b16 %v4374, %v4366
      %v5135 = vpack.c.b16 %v4375, %v4367
      %v5136 = vpack.c.b16 %v4376, %v4368
      %v5137 = vpack.c.b16 %v4377, %v4369
      %v5138 = vpack.c.b16 %v4378, %v4370
      %v5139 = vpack.c.b16 %v4379, %v4371
      %v5140 = vpack.c.b16 %v4380, %v4372
      %v5141 = vpack.c.b16 %v4381, %v4373
      %v5142 = vpack.c.b16 %v4390, %v4382
      %v5143 = vpack.c.b16 %v4391, %v4383
      %v5144 = vpack.c.b16 %v4392, %v4384
      %v5145 = vpack.c.b16 %v4393, %v4385
      %v5146 = vpack.c.b16 %v4394, %v4386
      %v5147 = vpack.c.b16 %v4395, %v4387
      %v5148 = vpack.c.b16 %v4396, %v4388
      %v5149 = vpack.c.b16 %v4397, %v4389
      %v5150 = vpack.c.b16 %v4406, %v4398
      %v5151 = vpack.c.b16 %v4407, %v4399
      %v5152 = vpack.c.b16 %v4408, %v4400
      %v5153 = vpack.c.b16 %v4409, %v4401
      %v5154 = vpack.c.b16 %v4410, %v4402
      %v5155 = vpack.c.b16 %v4411, %v4403
      %v5156 = vpack.c.b16 %v4412, %v4404
      %v5157 = vpack.c.b16 %v4413, %v4405
      %v5158 = vpack.c.b16 %v4422, %v4414
      %v5159 = vpack.c.b16 %v4423, %v4415
      %v5160 = vpack.c.b16 %v4424, %v4416
      %v5161 = vpack.c.b16 %v4425, %v4417
      %v5162 = vpack.c.b16 %v4426, %v4418
      %v5163 = vpack.c.b16 %v4427, %v4419
      %v5164 = vpack.c.b16 %v4428, %v4420
      %v5165 = vpack.c.b16 %v4429, %v4421
      %v5166 = vpack.c.b16 %v4438, %v4430
      %v5167 = vpack.c.b16 %v4439, %v4431
      %v5168 = vpack.c.b16 %v4440, %v4432
      %v5169 = vpack.c.b16 %v4441, %v4433
      %v5170 = vpack.c.b16 %v4442, %v4434
      %v5171 = vpack.c.b16 %v4443, %v4435
      %v5172 = vpack.c.b16 %v4444, %v4436
      %v5173 = vpack.c.b16 %v4445, %v4437
      %v5174 = vpack.c.b16 %v4454, %v4446
      %v5175 = vpack.c.b16 %v4455, %v4447
      %v5176 = vpack.c.b16 %v4456, %v4448
      %v5177 = vpack.c.b16 %v4457, %v4449
      %v5178 = vpack.c.b16 %v4458, %v4450
      %v5179 = vpack.c.b16 %v4459, %v4451
      %v5180 = vpack.c.b16 %v4460, %v4452
      %v5181 = vpack.c.b16 %v4461, %v4453
      %v5182 = vpack.c.b16 %v4470, %v4462
      %v5183 = vpack.c.b16 %v4471, %v4463
      %v5184 = vpack.c.b16 %v4472, %v4464
      %v5185 = vpack.c.b16 %v4473, %v4465
      %v5186 = vpack.c.b16 %v4474, %v4466
      %v5187 = vpack.c.b16 %v4475, %v4467
      %v5188 = vpack.c.b16 %v4476, %v4468
      %v5189 = vpack.c.b16 %v4477, %v4469
      %v5190 = vpack.c.b16 %v4486, %v4478
      %v5191 = vpack.c.b16 %v4487, %v4479
      %v5192 = vpack.c.b16 %v4488, %v4480
      %v5193 = vpack.c.b16 %v4489, %v4481
      %v5194 = vpack.c.b16 %v4490, %v4482
      %v5195 = vpack.c.b16 %v4491, %v4483
      %v5196 = vpack.c.b16 %v4492, %v4484
      %v5197 = vpack.c.b16 %v4493, %v4485
      %v5198 = vpack.c.b16 %v4502, %v4494
      %v5199 = vpack.c.b16 %v4503, %v4495
      %v5200 = vpack.c.b16 %v4504, %v4496
      %v5201 = vpack.c.b16 %v4505, %v4497
      %v5202 = vpack.c.b16 %v4506, %v4498
      %v5203 = vpack.c.b16 %v4507, %v4499
      %v5204 = vpack.c.b16 %v4508, %v4500
      %v5205 = vpack.c.b16 %v4509, %v4501
      %v5206 = vpack.c.b16 %v4518, %v4510
      %v5207 = vpack.c.b16 %v4519, %v4511
      %v5208 = vpack.c.b16 %v4520, %v4512
      %v5209 = vpack.c.b16 %v4521, %v4513
      %v5210 = vpack.c.b16 %v4522, %v4514
      %v5211 = vpack.c.b16 %v4523, %v4515
      %v5212 = vpack.c.b16 %v4524, %v4516
      %v5213 = vpack.c.b16 %v4525, %v4517
      %v5214 = vpack.c.b16 %v4534, %v4526
      %v5215 = vpack.c.b16 %v4535, %v4527
      %v5216 = vpack.c.b16 %v4536, %v4528
      %v5217 = vpack.c.b16 %v4537, %v4529
      %v5218 = vpack.c.b16 %v4538, %v4530
      %v5219 = vpack.c.b16 %v4539, %v4531
      %v5220 = vpack.c.b16 %v4540, %v4532
      %v5221 = vpack.c.b16 %v4541, %v4533
      %v5222 = vpack.c.b16 %v4550, %v4542
      %v5223 = vpack.c.b16 %v4551, %v4543
      %v5224 = vpack.c.b16 %v4552, %v4544
      %v5225 = vpack.c.b16 %v4553, %v4545
      %v5226 = vpack.c.b16 %v4554, %v4546
      %v5227 = vpack.c.b16 %v4555, %v4547
      %v5228 = vpack.c.b16 %v4556, %v4548
      %v5229 = vpack.c.b16 %v4557, %v4549
      %v5230 = vpack.c.b16 %v4566, %v4558
      %v5231 = vpack.c.b16 %v4567, %v4559
      %v5232 = vpack.c.b16 %v4568, %v4560
      %v5233 = vpack.c.b16 %v4569, %v4561
      %v5234 = vpack.c.b16 %v4570, %v4562
      %v5235 = vpack.c.b16 %v4571, %v4563
      %v5236 = vpack.c.b16 %v4572, %v4564
      %v5237 = vpack.c.b16 %v4573, %v4565
      %v5238 = vpack.c.b16 %v4582, %v4574
      %v5239 = vpack.c.b16 %v4583, %v4575
      %v5240 = vpack.c.b16 %v4584, %v4576
      %v5241 = vpack.c.b16 %v4585, %v4577
      %v5242 = vpack.c.b16 %v4586, %v4578
      %v5243 = vpack.c.b16 %v4587, %v4579
      %v5244 = vpack.c.b16 %v4588, %v4580
      %v5245 = vpack.c.b16 %v4589, %v4581
      %v5246 = vpack.c.b16 %v4598, %v4590
      %v5247 = vpack.c.b16 %v4599, %v4591
      %v5248 = vpack.c.b16 %v4600, %v4592
      %v5249 = vpack.c.b16 %v4601, %v4593
      %v5250 = vpack.c.b16 %v4602, %v4594
      %v5251 = vpack.c.b16 %v4603, %v4595
      %v5252 = vpack.c.b16 %v4604, %v4596
      %v5253 = vpack.c.b16 %v4605, %v4597
      %v5254 = vpack.c.b16 %v4614, %v4606
      %v5255 = vpack.c.b16 %v4615, %v4607
      %v5256 = vpack.c.b16 %v4616, %v4608
      %v5257 = vpack.c.b16 %v4617, %v4609
      %v5258 = vpack.c.b16 %v4618, %v4610
      %v5259 = vpack.c.b16 %v4619, %v4611
      %v5260 = vpack.c.b16 %v4620, %v4612
      %v5261 = vpack.c.b16 %v4621, %v4613
      %v5262 = vpack.c.b16 %v4630, %v4622
      %v5263 = vpack.c.b16 %v4631, %v4623
      %v5264 = vpack.c.b16 %v4632, %v4624
      %v5265 = vpack.c.b16 %v4633, %v4625
      %v5266 = vpack.c.b16 %v4634, %v4626
      %v5267 = vpack.c.b16 %v4635, %v4627
      %v5268 = vpack.c.b16 %v4636, %v4628
      %v5269 = vpack.c.b16 %v4637, %v4629
      %v5270 = vpack.c.b16 %v4646, %v4638
      %v5271 = vpack.c.b16 %v4647, %v4639
      %v5272 = vpack.c.b16 %v4648, %v4640
      %v5273 = vpack.c.b16 %v4649, %v4641
      %v5274 = vpack.c.b16 %v4650, %v4642
      %v5275 = vpack.c.b16 %v4651, %v4643
      %v5276 = vpack.c.b16 %v4652, %v4644
      %v5277 = vpack.c.b16 %v4653, %v4645
      %v5278 = vpack.c.b16 %v4662, %v4654
      %v5279 = vpack.c.b16 %v4663, %v4655
      %v5280 = vpack.c.b16 %v4664, %v4656
      %v5281 = vpack.c.b16 %v4665, %v4657
      %v5282 = vpack.c.b16 %v4666, %v4658
      %v5283 = vpack.c.b16 %v4667, %v4659
      %v5284 = vpack.c.b16 %v4668, %v4660
      %v5285 = vpack.c.b16 %v4669, %v4661
      %v5286 = vpack.c.b16 %v4678, %v4670
      %v5287 = vpack.c.b16 %v4679, %v4671
      %v5288 = vpack.c.b16 %v4680, %v4672
      %v5289 = vpack.c.b16 %v4681, %v4673
      %v5290 = vpack.c.b16 %v4682, %v4674
      %v5291 = vpack.c.b16 %v4683, %v4675
      %v5292 = vpack.c.b16 %v4684, %v4676
      %v5293 = vpack.c.b16 %v4685, %v4677
      %v5294 = vpack.c.b16 %v4694, %v4686
      %v5295 = vpack.c.b16 %v4695, %v4687
      %v5296 = vpack.c.b16 %v4696, %v4688
      %v5297 = vpack.c.b16 %v4697, %v4689
      %v5298 = vpack.c.b16 %v4698, %v4690
      %v5299 = vpack.c.b16 %v4699, %v4691
      %v5300 = vpack.c.b16 %v4700, %v4692
      %v5301 = vpack.c.b16 %v4701, %v4693
      %v5302 = vpack.c.b16 %v4710, %v4702
      %v5303 = vpack.c.b16 %v4711, %v4703
      %v5304 = vpack.c.b16 %v4712, %v4704
      %v5305 = vpack.c.b16 %v4713, %v4705
      %v5306 = vpack.c.b16 %v4714, %v4706
      %v5307 = vpack.c.b16 %v4715, %v4707
      %v5308 = vpack.c.b16 %v4716, %v4708
      %v5309 = vpack.c.b16 %v4717, %v4709
      %v5310 = vpack.c.b16 %v4726, %v4718
      %v5311 = vpack.c.b16 %v4727, %v4719
      %v5312 = vpack.c.b16 %v4728, %v4720
      %v5313 = vpack.c.b16 %v4729, %v4721
      %v5314 = vpack.c.b16 %v4730, %v4722
      %v5315 = vpack.c.b16 %v4731, %v4723
      %v5316 = vpack.c.b16 %v4732, %v4724
      %v5317 = vpack.c.b16 %v4733, %v4725
      %v5318 = vpack.c.b16 %v4742, %v4734
      %v5319 = vpack.c.b16 %v4743, %v4735
      %v5320 = vpack.c.b16 %v4744, %v4736
      %v5321 = vpack.c.b16 %v4745, %v4737
      %v5322 = vpack.c.b16 %v4746, %v4738
      %v5323 = vpack.c.b16 %v4747, %v4739
      %v5324 = vpack.c.b16 %v4748, %v4740
      %v5325 = vpack.c.b16 %v4749, %v4741
      %v5326 = vpack.c.b16 %v4758, %v4750
      %v5327 = vpack.c.b16 %v4759, %v4751
      %v5328 = vpack.c.b16 %v4760, %v4752
      %v5329 = vpack.c.b16 %v4761, %v4753
      %v5330 = vpack.c.b16 %v4762, %v4754
      %v5331 = vpack.c.b16 %v4763, %v4755
      %v5332 = vpack.c.b16 %v4764, %v4756
      %v5333 = vpack.c.b16 %v4765, %v4757
      %v5334 = vpack.c.b16 %v4774, %v4766
      %v5335 = vpack.c.b16 %v4775, %v4767
      %v5336 = vpack.c.b16 %v4776, %v4768
      %v5337 = vpack.c.b16 %v4777, %v4769
      %v5338 = vpack.c.b16 %v4778, %v4770
      %v5339 = vpack.c.b16 %v4779, %v4771
      %v5340 = vpack.c.b16 %v4780, %v4772
      %v5341 = vpack.c.b16 %v4781, %v4773
      %v5342 = vpack.c.b16 %v4790, %v4782
      %v5343 = vpack.c.b16 %v4791, %v4783
      %v5344 = vpack.c.b16 %v4792, %v4784
      %v5345 = vpack.c.b16 %v4793, %v4785
      %v5346 = vpack.c.b16 %v4794, %v4786
      %v5347 = vpack.c.b16 %v4795, %v4787
      %v5348 = vpack.c.b16 %v4796, %v4788
      %v5349 = vpack.c.b16 %v4797, %v4789
      %v5350 = vpack.c.b16 %v4806, %v4798
      %v5351 = vpack.c.b16 %v4807, %v4799
      %v5352 = vpack.c.b16 %v4808, %v4800
      %v5353 = vpack.c.b16 %v4809, %v4801
      %v5354 = vpack.c.b16 %v4810, %v4802
      %v5355 = vpack.c.b16 %v4811, %v4803
      %v5356 = vpack.c.b16 %v4812, %v4804
      %v5357 = vpack.c.b16 %v4813, %v4805
      %v5358 = vpack.c.b16 %v4822, %v4814
      %v5359 = vpack.c.b16 %v4823, %v4815
      %v5360 = vpack.c.b16 %v4824, %v4816
      %v5361 = vpack.c.b16 %v4825, %v4817
      %v5362 = vpack.c.b16 %v4826, %v4818
      %v5363 = vpack.c.b16 %v4827, %v4819
      %v5364 = vpack.c.b16 %v4828, %v4820
      %v5365 = vpack.c.b16 %v4829, %v4821
      %v5366 = vpack.c.b16 %v4838, %v4830
      %v5367 = vpack.c.b16 %v4839, %v4831
      %v5368 = vpack.c.b16 %v4840, %v4832
      %v5369 = vpack.c.b16 %v4841, %v4833
      %v5370 = vpack.c.b16 %v4842, %v4834
      %v5371 = vpack.c.b16 %v4843, %v4835
      %v5372 = vpack.c.b16 %v4844, %v4836
      %v5373 = vpack.c.b16 %v4845, %v4837
      %v5374 = vpack.c.b16 %v4854, %v4846
      %v5375 = vpack.c.b16 %v4855, %v4847
      %v5376 = vpack.c.b16 %v4856, %v4848
      %v5377 = vpack.c.b16 %v4857, %v4849
      %v5378 = vpack.c.b16 %v4858, %v4850
      %v5379 = vpack.c.b16 %v4859, %v4851
      %v5380 = vpack.c.b16 %v4860, %v4852
      %v5381 = vpack.c.b16 %v4861, %v4853
      %v5382 = vpack.c.b16 %v4870, %v4862
      %v5383 = vpack.c.b16 %v4871, %v4863
      %v5384 = vpack.c.b16 %v4872, %v4864
      %v5385 = vpack.c.b16 %v4873, %v4865
      %v5386 = vpack.c.b16 %v4874, %v4866
      %v5387 = vpack.c.b16 %v4875, %v4867
      %v5388 = vpack.c.b16 %v4876, %v4868
      %v5389 = vpack.c.b16 %v4877, %v4869
      %5902 = vmatprep.subr.bf16.mxu0 %v4935
      %5903 = vmatpush1.bf16.msra.mxu0 %v4934
      %5904 = vmatprep.subr.bf16.mxu0 %v4927
      %5905 = vmatpush1.bf16.msra.mxu0 %v4926
      %5906 = vmatprep.subr.bf16.mxu0 %v4919
      %5907 = vmatpush1.bf16.msra.mxu0 %v4918
      %5908 = vmatprep.subr.bf16.mxu0 %v4911
      %5909 = vmatpush1.bf16.msra.mxu0 %v4910
      %5910 = vmatprep.subr.bf16.mxu0 %v4903
      %5911 = vmatpush1.bf16.msra.mxu0 %v4902
      %5912 = vmatprep.subr.bf16.mxu0 %v4895
      %5913 = vmatpush1.bf16.msra.mxu0 %v4894
      %5914 = vmatprep.subr.bf16.mxu0 %v4887
      %5915 = vmatpush1.bf16.msra.mxu0 %v4886
      %5916 = vmatprep.subr.bf16.mxu0 %v4879
      %5917 = vmatpush1.bf16.msra.mxu0 %v4878
      %5918 = vmatprep.subr.bf16.mxu0 %v4999
      %5919 = vmatpush2.bf16.msra.mxu0 %v4998
      %5920 = vmatprep.subr.bf16.mxu0 %v4991
      %5921 = vmatpush2.bf16.msra.mxu0 %v4990
      %5922 = vmatprep.subr.bf16.mxu0 %v4983
      %5923 = vmatpush2.bf16.msra.mxu0 %v4982
      %5924 = vmatprep.subr.bf16.mxu0 %v4975
      %5925 = vmatpush2.bf16.msra.mxu0 %v4974
      %5926 = vmatprep.subr.bf16.mxu0 %v4967
      %5927 = vmatpush2.bf16.msra.mxu0 %v4966
      %5928 = vmatprep.subr.bf16.mxu0 %v4959
      %5929 = vmatpush2.bf16.msra.mxu0 %v4958
      %5930 = vmatprep.subr.bf16.mxu0 %v4951
      %5931 = vmatpush2.bf16.msra.mxu0 %v4950
      %5932 = vmatprep.subr.bf16.mxu0 %v4943
      %5933 = vmatpush2.bf16.msra.mxu0 %v4942
      %5934 = vmatprep.mubr.bf16.mxu0 %v2781
      %5935 = vmatmul.mubr.bf16.gmra.mxu0 %v2780
      %v5936 = vpop.f32.mrf.mxu0
      %v5937 = vadd.f32 %v3305, %v5936
      %v5938 = vpop.f32.mrf.mxu0
      %v5939 = vadd.f32 %v3309, %v5938
      %v5940 = vpop.f32.mrf.mxu0
      %v5941 = vpop.f32.mrf.mxu0
      %5942 = vdwg.mxu0
      %5943 = vmatprep.subr.bf16.mxu0 %v5063
      %5944 = vmatpush1.bf16.msra.mxu0 %v5062
      %5945 = vmatprep.subr.bf16.mxu0 %v5055
      %5946 = vmatpush1.bf16.msra.mxu0 %v5054
      %5947 = vmatprep.subr.bf16.mxu0 %v5047
      %5948 = vmatpush1.bf16.msra.mxu0 %v5046
      %5949 = vmatprep.subr.bf16.mxu0 %v5039
      %5950 = vmatpush1.bf16.msra.mxu0 %v5038
      %5951 = vmatprep.subr.bf16.mxu0 %v5031
      %5952 = vmatpush1.bf16.msra.mxu0 %v5030
      %5953 = vmatprep.subr.bf16.mxu0 %v5023
      %5954 = vmatpush1.bf16.msra.mxu0 %v5022
      %5955 = vmatprep.subr.bf16.mxu0 %v5015
      %5956 = vmatpush1.bf16.msra.mxu0 %v5014
      %5957 = vmatprep.subr.bf16.mxu0 %v5007
      %5958 = vmatpush1.bf16.msra.mxu0 %v5006
      %5959 = vmatprep.subr.bf16.mxu0 %v5127
      %5960 = vmatpush2.bf16.msra.mxu0 %v5126
      %5961 = vmatprep.subr.bf16.mxu0 %v5119
      %5962 = vmatpush2.bf16.msra.mxu0 %v5118
      %5963 = vmatprep.subr.bf16.mxu0 %v5111
      %5964 = vmatpush2.bf16.msra.mxu0 %v5110
      %5965 = vmatprep.subr.bf16.mxu0 %v5103
      %5966 = vmatpush2.bf16.msra.mxu0 %v5102
      %5967 = vmatprep.subr.bf16.mxu0 %v5095
      %5968 = vmatpush2.bf16.msra.mxu0 %v5094
      %5969 = vmatprep.subr.bf16.mxu0 %v5087
      %5970 = vmatpush2.bf16.msra.mxu0 %v5086
      %5971 = vmatprep.subr.bf16.mxu0 %v5079
      %5972 = vmatpush2.bf16.msra.mxu0 %v5078
      %5973 = vmatprep.subr.bf16.mxu0 %v5071
      %5974 = vmatpush2.bf16.msra.mxu0 %v5070
      %5975 = vmatprep.mubr.bf16.mxu0 %v2783
      %5976 = vmatmul.mubr.bf16.gmra.mxu0 %v2782
      %v5977 = vpop.f32.mrf.mxu0
      %v5978 = vadd.f32 %v5937, %v5977
      %v5979 = vpop.f32.mrf.mxu0
      %v5980 = vadd.f32 %v5939, %v5979
      %v5981 = vpop.f32.mrf.mxu0
      %v5982 = vpop.f32.mrf.mxu0
      %5983 = vdwg.mxu0
      %5984 = vmatprep.subr.bf16.mxu0 %v5191
      %5985 = vmatpush1.bf16.msra.mxu0 %v5190
      %5986 = vmatprep.subr.bf16.mxu0 %v5183
      %5987 = vmatpush1.bf16.msra.mxu0 %v5182
      %5988 = vmatprep.subr.bf16.mxu0 %v5175
      %5989 = vmatpush1.bf16.msra.mxu0 %v5174
      %5990 = vmatprep.subr.bf16.mxu0 %v5167
      %5991 = vmatpush1.bf16.msra.mxu0 %v5166
      %5992 = vmatprep.subr.bf16.mxu0 %v5159
      %5993 = vmatpush1.bf16.msra.mxu0 %v5158
      %5994 = vmatprep.subr.bf16.mxu0 %v5151
      %5995 = vmatpush1.bf16.msra.mxu0 %v5150
      %5996 = vmatprep.subr.bf16.mxu0 %v5143
      %5997 = vmatpush1.bf16.msra.mxu0 %v5142
      %5998 = vmatprep.subr.bf16.mxu0 %v5135
      %5999 = vmatpush1.bf16.msra.mxu0 %v5134
      %6000 = vmatprep.subr.bf16.mxu0 %v5255
      %6001 = vmatpush2.bf16.msra.mxu0 %v5254
      %6002 = vmatprep.subr.bf16.mxu0 %v5247
      %6003 = vmatpush2.bf16.msra.mxu0 %v5246
      %6004 = vmatprep.subr.bf16.mxu0 %v5239
      %6005 = vmatpush2.bf16.msra.mxu0 %v5238
      %6006 = vmatprep.subr.bf16.mxu0 %v5231
      %6007 = vmatpush2.bf16.msra.mxu0 %v5230
      %6008 = vmatprep.subr.bf16.mxu0 %v5223
      %6009 = vmatpush2.bf16.msra.mxu0 %v5222
      %6010 = vmatprep.subr.bf16.mxu0 %v5215
      %6011 = vmatpush2.bf16.msra.mxu0 %v5214
      %6012 = vmatprep.subr.bf16.mxu0 %v5207
      %6013 = vmatpush2.bf16.msra.mxu0 %v5206
      %6014 = vmatprep.subr.bf16.mxu0 %v5199
      %6015 = vmatpush2.bf16.msra.mxu0 %v5198
      %6016 = vmatprep.mubr.bf16.mxu0 %v2785
      %6017 = vmatmul.mubr.bf16.gmra.mxu0 %v2784
      %v6018 = vpop.f32.mrf.mxu0
      %v6019 = vadd.f32 %v5978, %v6018
      %v6020 = vpop.f32.mrf.mxu0
      %v6021 = vadd.f32 %v5980, %v6020
      %v6022 = vpop.f32.mrf.mxu0
      %v6023 = vpop.f32.mrf.mxu0
      %6024 = vdwg.mxu0
      %6025 = vmatprep.subr.bf16.mxu0 %v5319
      %6026 = vmatpush1.bf16.msra.mxu0 %v5318
      %6027 = vmatprep.subr.bf16.mxu0 %v5311
      %6028 = vmatpush1.bf16.msra.mxu0 %v5310
      %6029 = vmatprep.subr.bf16.mxu0 %v5303
      %6030 = vmatpush1.bf16.msra.mxu0 %v5302
      %6031 = vmatprep.subr.bf16.mxu0 %v5295
      %6032 = vmatpush1.bf16.msra.mxu0 %v5294
      %6033 = vmatprep.subr.bf16.mxu0 %v5287
      %6034 = vmatpush1.bf16.msra.mxu0 %v5286
      %6035 = vmatprep.subr.bf16.mxu0 %v5279
      %6036 = vmatpush1.bf16.msra.mxu0 %v5278
      %6037 = vmatprep.subr.bf16.mxu0 %v5271
      %6038 = vmatpush1.bf16.msra.mxu0 %v5270
      %6039 = vmatprep.subr.bf16.mxu0 %v5263
      %6040 = vmatpush1.bf16.msra.mxu0 %v5262
      %6041 = vmatprep.subr.bf16.mxu0 %v5383
      %6042 = vmatpush2.bf16.msra.mxu0 %v5382
      %6043 = vmatprep.subr.bf16.mxu0 %v5375
      %6044 = vmatpush2.bf16.msra.mxu0 %v5374
      %6045 = vmatprep.subr.bf16.mxu0 %v5367
      %6046 = vmatpush2.bf16.msra.mxu0 %v5366
      %6047 = vmatprep.subr.bf16.mxu0 %v5359
      %6048 = vmatpush2.bf16.msra.mxu0 %v5358
      %6049 = vmatprep.subr.bf16.mxu0 %v5351
      %6050 = vmatpush2.bf16.msra.mxu0 %v5350
      %6051 = vmatprep.subr.bf16.mxu0 %v5343
      %6052 = vmatpush2.bf16.msra.mxu0 %v5342
      %6053 = vmatprep.subr.bf16.mxu0 %v5335
      %6054 = vmatpush2.bf16.msra.mxu0 %v5334
      %6055 = vmatprep.subr.bf16.mxu0 %v5327
      %6056 = vmatpush2.bf16.msra.mxu0 %v5326
      %6057 = vmatprep.mubr.bf16.mxu0 %v2787
      %6058 = vmatmul.mubr.bf16.gmra.mxu0 %v2786
      %v6059 = vpop.f32.mrf.mxu0
      %v6060 = vadd.f32 %v6019, %v6059
      %v6061 = vpop.f32.mrf.mxu0
      %v6062 = vadd.f32 %v6021, %v6061
      %v6063 = vpop.f32.mrf.mxu0
      %v6064 = vpop.f32.mrf.mxu0
      %6065 = vdwg.mxu0
      %6066 = vmatprep.subr.bf16.mxu0 %v4937
      %6067 = vmatpush1.bf16.msra.mxu0 %v4936
      %6068 = vmatprep.subr.bf16.mxu0 %v4929
      %6069 = vmatpush1.bf16.msra.mxu0 %v4928
      %6070 = vmatprep.subr.bf16.mxu0 %v4921
      %6071 = vmatpush1.bf16.msra.mxu0 %v4920
      %6072 = vmatprep.subr.bf16.mxu0 %v4913
      %6073 = vmatpush1.bf16.msra.mxu0 %v4912
      %6074 = vmatprep.subr.bf16.mxu0 %v4905
      %6075 = vmatpush1.bf16.msra.mxu0 %v4904
      %6076 = vmatprep.subr.bf16.mxu0 %v4897
      %6077 = vmatpush1.bf16.msra.mxu0 %v4896
      %6078 = vmatprep.subr.bf16.mxu0 %v4889
      %6079 = vmatpush1.bf16.msra.mxu0 %v4888
      %6080 = vmatprep.subr.bf16.mxu0 %v4881
      %6081 = vmatpush1.bf16.msra.mxu0 %v4880
      %6082 = vmatprep.subr.bf16.mxu0 %v5001
      %6083 = vmatpush2.bf16.msra.mxu0 %v5000
      %6084 = vmatprep.subr.bf16.mxu0 %v4993
      %6085 = vmatpush2.bf16.msra.mxu0 %v4992
      %6086 = vmatprep.subr.bf16.mxu0 %v4985
      %6087 = vmatpush2.bf16.msra.mxu0 %v4984
      %6088 = vmatprep.subr.bf16.mxu0 %v4977
      %6089 = vmatpush2.bf16.msra.mxu0 %v4976
      %6090 = vmatprep.subr.bf16.mxu0 %v4969
      %6091 = vmatpush2.bf16.msra.mxu0 %v4968
      %6092 = vmatprep.subr.bf16.mxu0 %v4961
      %6093 = vmatpush2.bf16.msra.mxu0 %v4960
      %6094 = vmatprep.subr.bf16.mxu0 %v4953
      %6095 = vmatpush2.bf16.msra.mxu0 %v4952
      %6096 = vmatprep.subr.bf16.mxu0 %v4945
      %6097 = vmatpush2.bf16.msra.mxu0 %v4944
      %6098 = vmatprep.mubr.bf16.mxu0 %v2781
      %6099 = vmatmul.mubr.bf16.gmra.mxu0 %v2780
      %v6100 = vpop.f32.mrf.mxu0
      %v6101 = vadd.f32 %v3313, %v6100
      %v6102 = vpop.f32.mrf.mxu0
      %v6103 = vadd.f32 %v3317, %v6102
      %v6104 = vpop.f32.mrf.mxu0
      %v6105 = vpop.f32.mrf.mxu0
      %6106 = vdwg.mxu0
      %6107 = vmatprep.subr.bf16.mxu0 %v5065
      %6108 = vmatpush1.bf16.msra.mxu0 %v5064
      %6109 = vmatprep.subr.bf16.mxu0 %v5057
      %6110 = vmatpush1.bf16.msra.mxu0 %v5056
      %6111 = vmatprep.subr.bf16.mxu0 %v5049
      %6112 = vmatpush1.bf16.msra.mxu0 %v5048
      %6113 = vmatprep.subr.bf16.mxu0 %v5041
      %6114 = vmatpush1.bf16.msra.mxu0 %v5040
      %6115 = vmatprep.subr.bf16.mxu0 %v5033
      %6116 = vmatpush1.bf16.msra.mxu0 %v5032
      %6117 = vmatprep.subr.bf16.mxu0 %v5025
      %6118 = vmatpush1.bf16.msra.mxu0 %v5024
      %6119 = vmatprep.subr.bf16.mxu0 %v5017
      %6120 = vmatpush1.bf16.msra.mxu0 %v5016
      %6121 = vmatprep.subr.bf16.mxu0 %v5009
      %6122 = vmatpush1.bf16.msra.mxu0 %v5008
      %6123 = vmatprep.subr.bf16.mxu0 %v5129
      %6124 = vmatpush2.bf16.msra.mxu0 %v5128
      %6125 = vmatprep.subr.bf16.mxu0 %v5121
      %6126 = vmatpush2.bf16.msra.mxu0 %v5120
      %6127 = vmatprep.subr.bf16.mxu0 %v5113
      %6128 = vmatpush2.bf16.msra.mxu0 %v5112
      %6129 = vmatprep.subr.bf16.mxu0 %v5105
      %6130 = vmatpush2.bf16.msra.mxu0 %v5104
      %6131 = vmatprep.subr.bf16.mxu0 %v5097
      %6132 = vmatpush2.bf16.msra.mxu0 %v5096
      %6133 = vmatprep.subr.bf16.mxu0 %v5089
      %6134 = vmatpush2.bf16.msra.mxu0 %v5088
      %6135 = vmatprep.subr.bf16.mxu0 %v5081
      %6136 = vmatpush2.bf16.msra.mxu0 %v5080
      %6137 = vmatprep.subr.bf16.mxu0 %v5073
      %6138 = vmatpush2.bf16.msra.mxu0 %v5072
      %6139 = vmatprep.mubr.bf16.mxu0 %v2783
      %6140 = vmatmul.mubr.bf16.gmra.mxu0 %v2782
      %v6141 = vpop.f32.mrf.mxu0
      %v6142 = vadd.f32 %v6101, %v6141
      %v6143 = vpop.f32.mrf.mxu0
      %v6144 = vadd.f32 %v6103, %v6143
      %v6145 = vpop.f32.mrf.mxu0
      %v6146 = vpop.f32.mrf.mxu0
      %6147 = vdwg.mxu0
      %6148 = vmatprep.subr.bf16.mxu0 %v5193
      %6149 = vmatpush1.bf16.msra.mxu0 %v5192
      %6150 = vmatprep.subr.bf16.mxu0 %v5185
      %6151 = vmatpush1.bf16.msra.mxu0 %v5184
      %6152 = vmatprep.subr.bf16.mxu0 %v5177
      %6153 = vmatpush1.bf16.msra.mxu0 %v5176
      %6154 = vmatprep.subr.bf16.mxu0 %v5169
      %6155 = vmatpush1.bf16.msra.mxu0 %v5168
      %6156 = vmatprep.subr.bf16.mxu0 %v5161
      %6157 = vmatpush1.bf16.msra.mxu0 %v5160
      %6158 = vmatprep.subr.bf16.mxu0 %v5153
      %6159 = vmatpush1.bf16.msra.mxu0 %v5152
      %6160 = vmatprep.subr.bf16.mxu0 %v5145
      %6161 = vmatpush1.bf16.msra.mxu0 %v5144
      %6162 = vmatprep.subr.bf16.mxu0 %v5137
      %6163 = vmatpush1.bf16.msra.mxu0 %v5136
      %6164 = vmatprep.subr.bf16.mxu0 %v5257
      %6165 = vmatpush2.bf16.msra.mxu0 %v5256
      %6166 = vmatprep.subr.bf16.mxu0 %v5249
      %6167 = vmatpush2.bf16.msra.mxu0 %v5248
      %6168 = vmatprep.subr.bf16.mxu0 %v5241
      %6169 = vmatpush2.bf16.msra.mxu0 %v5240
      %6170 = vmatprep.subr.bf16.mxu0 %v5233
      %6171 = vmatpush2.bf16.msra.mxu0 %v5232
      %6172 = vmatprep.subr.bf16.mxu0 %v5225
      %6173 = vmatpush2.bf16.msra.mxu0 %v5224
      %6174 = vmatprep.subr.bf16.mxu0 %v5217
      %6175 = vmatpush2.bf16.msra.mxu0 %v5216
      %6176 = vmatprep.subr.bf16.mxu0 %v5209
      %6177 = vmatpush2.bf16.msra.mxu0 %v5208
      %6178 = vmatprep.subr.bf16.mxu0 %v5201
      %6179 = vmatpush2.bf16.msra.mxu0 %v5200
      %6180 = vmatprep.mubr.bf16.mxu0 %v2785
      %6181 = vmatmul.mubr.bf16.gmra.mxu0 %v2784
      %v6182 = vpop.f32.mrf.mxu0
      %v6183 = vadd.f32 %v6142, %v6182
      %v6184 = vpop.f32.mrf.mxu0
      %v6185 = vadd.f32 %v6144, %v6184
      %v6186 = vpop.f32.mrf.mxu0
      %v6187 = vpop.f32.mrf.mxu0
      %6188 = vdwg.mxu0
      %6189 = vmatprep.subr.bf16.mxu0 %v5321
      %6190 = vmatpush1.bf16.msra.mxu0 %v5320
      %6191 = vmatprep.subr.bf16.mxu0 %v5313
      %6192 = vmatpush1.bf16.msra.mxu0 %v5312
      %6193 = vmatprep.subr.bf16.mxu0 %v5305
      %6194 = vmatpush1.bf16.msra.mxu0 %v5304
      %6195 = vmatprep.subr.bf16.mxu0 %v5297
      %6196 = vmatpush1.bf16.msra.mxu0 %v5296
      %6197 = vmatprep.subr.bf16.mxu0 %v5289
      %6198 = vmatpush1.bf16.msra.mxu0 %v5288
      %6199 = vmatprep.subr.bf16.mxu0 %v5281
      %6200 = vmatpush1.bf16.msra.mxu0 %v5280
      %6201 = vmatprep.subr.bf16.mxu0 %v5273
      %6202 = vmatpush1.bf16.msra.mxu0 %v5272
      %6203 = vmatprep.subr.bf16.mxu0 %v5265
      %6204 = vmatpush1.bf16.msra.mxu0 %v5264
      %6205 = vmatprep.subr.bf16.mxu0 %v5385
      %6206 = vmatpush2.bf16.msra.mxu0 %v5384
      %6207 = vmatprep.subr.bf16.mxu0 %v5377
      %6208 = vmatpush2.bf16.msra.mxu0 %v5376
      %6209 = vmatprep.subr.bf16.mxu0 %v5369
      %6210 = vmatpush2.bf16.msra.mxu0 %v5368
      %6211 = vmatprep.subr.bf16.mxu0 %v5361
      %6212 = vmatpush2.bf16.msra.mxu0 %v5360
      %6213 = vmatprep.subr.bf16.mxu0 %v5353
      %6214 = vmatpush2.bf16.msra.mxu0 %v5352
      %6215 = vmatprep.subr.bf16.mxu0 %v5345
      %6216 = vmatpush2.bf16.msra.mxu0 %v5344
      %6217 = vmatprep.subr.bf16.mxu0 %v5337
      %6218 = vmatpush2.bf16.msra.mxu0 %v5336
      %6219 = vmatprep.subr.bf16.mxu0 %v5329
      %6220 = vmatpush2.bf16.msra.mxu0 %v5328
      %6221 = vmatprep.mubr.bf16.mxu0 %v2787
      %6222 = vmatmul.mubr.bf16.gmra.mxu0 %v2786
      %v6223 = vpop.f32.mrf.mxu0
      %v6224 = vadd.f32 %v6183, %v6223
      %v6225 = vpop.f32.mrf.mxu0
      %v6226 = vadd.f32 %v6185, %v6225
      %v6227 = vpop.f32.mrf.mxu0
      %v6228 = vpop.f32.mrf.mxu0
      %6229 = vdwg.mxu0
      %6230 = vmatprep.subr.bf16.mxu0 %v4939
      %6231 = vmatpush1.bf16.msra.mxu0 %v4938
      %6232 = vmatprep.subr.bf16.mxu0 %v4931
      %6233 = vmatpush1.bf16.msra.mxu0 %v4930
      %6234 = vmatprep.subr.bf16.mxu0 %v4923
      %6235 = vmatpush1.bf16.msra.mxu0 %v4922
      %6236 = vmatprep.subr.bf16.mxu0 %v4915
      %6237 = vmatpush1.bf16.msra.mxu0 %v4914
      %6238 = vmatprep.subr.bf16.mxu0 %v4907
      %6239 = vmatpush1.bf16.msra.mxu0 %v4906
      %6240 = vmatprep.subr.bf16.mxu0 %v4899
      %6241 = vmatpush1.bf16.msra.mxu0 %v4898
      %6242 = vmatprep.subr.bf16.mxu0 %v4891
      %6243 = vmatpush1.bf16.msra.mxu0 %v4890
      %6244 = vmatprep.subr.bf16.mxu0 %v4883
      %6245 = vmatpush1.bf16.msra.mxu0 %v4882
      %6246 = vmatprep.subr.bf16.mxu0 %v5003
      %6247 = vmatpush2.bf16.msra.mxu0 %v5002
      %6248 = vmatprep.subr.bf16.mxu0 %v4995
      %6249 = vmatpush2.bf16.msra.mxu0 %v4994
      %6250 = vmatprep.subr.bf16.mxu0 %v4987
      %6251 = vmatpush2.bf16.msra.mxu0 %v4986
      %6252 = vmatprep.subr.bf16.mxu0 %v4979
      %6253 = vmatpush2.bf16.msra.mxu0 %v4978
      %6254 = vmatprep.subr.bf16.mxu0 %v4971
      %6255 = vmatpush2.bf16.msra.mxu0 %v4970
      %6256 = vmatprep.subr.bf16.mxu0 %v4963
      %6257 = vmatpush2.bf16.msra.mxu0 %v4962
      %6258 = vmatprep.subr.bf16.mxu0 %v4955
      %6259 = vmatpush2.bf16.msra.mxu0 %v4954
      %6260 = vmatprep.subr.bf16.mxu0 %v4947
      %6261 = vmatpush2.bf16.msra.mxu0 %v4946
      %6262 = vmatprep.mubr.bf16.mxu0 %v2781
      %6263 = vmatmul.mubr.bf16.gmra.mxu0 %v2780
      %v6264 = vpop.f32.mrf.mxu0
      %v6265 = vadd.f32 %v3321, %v6264
      %v6266 = vpop.f32.mrf.mxu0
      %v6267 = vadd.f32 %v3325, %v6266
      %v6268 = vpop.f32.mrf.mxu0
      %v6269 = vpop.f32.mrf.mxu0
      %6270 = vdwg.mxu0
      %6271 = vmatprep.subr.bf16.mxu0 %v5067
      %6272 = vmatpush1.bf16.msra.mxu0 %v5066
      %6273 = vmatprep.subr.bf16.mxu0 %v5059
      %6274 = vmatpush1.bf16.msra.mxu0 %v5058
      %6275 = vmatprep.subr.bf16.mxu0 %v5051
      %6276 = vmatpush1.bf16.msra.mxu0 %v5050
      %6277 = vmatprep.subr.bf16.mxu0 %v5043
      %6278 = vmatpush1.bf16.msra.mxu0 %v5042
      %6279 = vmatprep.subr.bf16.mxu0 %v5035
      %6280 = vmatpush1.bf16.msra.mxu0 %v5034
      %6281 = vmatprep.subr.bf16.mxu0 %v5027
      %6282 = vmatpush1.bf16.msra.mxu0 %v5026
      %6283 = vmatprep.subr.bf16.mxu0 %v5019
      %6284 = vmatpush1.bf16.msra.mxu0 %v5018
      %6285 = vmatprep.subr.bf16.mxu0 %v5011
      %6286 = vmatpush1.bf16.msra.mxu0 %v5010
      %6287 = vmatprep.subr.bf16.mxu0 %v5131
      %6288 = vmatpush2.bf16.msra.mxu0 %v5130
      %6289 = vmatprep.subr.bf16.mxu0 %v5123
      %6290 = vmatpush2.bf16.msra.mxu0 %v5122
      %6291 = vmatprep.subr.bf16.mxu0 %v5115
      %6292 = vmatpush2.bf16.msra.mxu0 %v5114
      %6293 = vmatprep.subr.bf16.mxu0 %v5107
      %6294 = vmatpush2.bf16.msra.mxu0 %v5106
      %6295 = vmatprep.subr.bf16.mxu0 %v5099
      %6296 = vmatpush2.bf16.msra.mxu0 %v5098
      %6297 = vmatprep.subr.bf16.mxu0 %v5091
      %6298 = vmatpush2.bf16.msra.mxu0 %v5090
      %6299 = vmatprep.subr.bf16.mxu0 %v5083
      %6300 = vmatpush2.bf16.msra.mxu0 %v5082
      %6301 = vmatprep.subr.bf16.mxu0 %v5075
      %6302 = vmatpush2.bf16.msra.mxu0 %v5074
      %6303 = vmatprep.mubr.bf16.mxu0 %v2783
      %6304 = vmatmul.mubr.bf16.gmra.mxu0 %v2782
      %v6305 = vpop.f32.mrf.mxu0
      %v6306 = vadd.f32 %v6265, %v6305
      %v6307 = vpop.f32.mrf.mxu0
      %v6308 = vadd.f32 %v6267, %v6307
      %v6309 = vpop.f32.mrf.mxu0
      %v6310 = vpop.f32.mrf.mxu0
      %6311 = vdwg.mxu0
      %6312 = vmatprep.subr.bf16.mxu0 %v5195
      %6313 = vmatpush1.bf16.msra.mxu0 %v5194
      %6314 = vmatprep.subr.bf16.mxu0 %v5187
      %6315 = vmatpush1.bf16.msra.mxu0 %v5186
      %6316 = vmatprep.subr.bf16.mxu0 %v5179
      %6317 = vmatpush1.bf16.msra.mxu0 %v5178
      %6318 = vmatprep.subr.bf16.mxu0 %v5171
      %6319 = vmatpush1.bf16.msra.mxu0 %v5170
      %6320 = vmatprep.subr.bf16.mxu0 %v5163
      %6321 = vmatpush1.bf16.msra.mxu0 %v5162
      %6322 = vmatprep.subr.bf16.mxu0 %v5155
      %6323 = vmatpush1.bf16.msra.mxu0 %v5154
      %6324 = vmatprep.subr.bf16.mxu0 %v5147
      %6325 = vmatpush1.bf16.msra.mxu0 %v5146
      %6326 = vmatprep.subr.bf16.mxu0 %v5139
      %6327 = vmatpush1.bf16.msra.mxu0 %v5138
      %6328 = vmatprep.subr.bf16.mxu0 %v5259
      %6329 = vmatpush2.bf16.msra.mxu0 %v5258
      %6330 = vmatprep.subr.bf16.mxu0 %v5251
      %6331 = vmatpush2.bf16.msra.mxu0 %v5250
      %6332 = vmatprep.subr.bf16.mxu0 %v5243
      %6333 = vmatpush2.bf16.msra.mxu0 %v5242
      %6334 = vmatprep.subr.bf16.mxu0 %v5235
      %6335 = vmatpush2.bf16.msra.mxu0 %v5234
      %6336 = vmatprep.subr.bf16.mxu0 %v5227
      %6337 = vmatpush2.bf16.msra.mxu0 %v5226
      %6338 = vmatprep.subr.bf16.mxu0 %v5219
      %6339 = vmatpush2.bf16.msra.mxu0 %v5218
      %6340 = vmatprep.subr.bf16.mxu0 %v5211
      %6341 = vmatpush2.bf16.msra.mxu0 %v5210
      %6342 = vmatprep.subr.bf16.mxu0 %v5203
      %6343 = vmatpush2.bf16.msra.mxu0 %v5202
      %6344 = vmatprep.mubr.bf16.mxu0 %v2785
      %6345 = vmatmul.mubr.bf16.gmra.mxu0 %v2784
      %v6346 = vpop.f32.mrf.mxu0
      %v6347 = vadd.f32 %v6306, %v6346
      %v6348 = vpop.f32.mrf.mxu0
      %v6349 = vadd.f32 %v6308, %v6348
      %v6350 = vpop.f32.mrf.mxu0
      %v6351 = vpop.f32.mrf.mxu0
      %6352 = vdwg.mxu0
      %6353 = vmatprep.subr.bf16.mxu0 %v5323
      %6354 = vmatpush1.bf16.msra.mxu0 %v5322
      %6355 = vmatprep.subr.bf16.mxu0 %v5315
      %6356 = vmatpush1.bf16.msra.mxu0 %v5314
      %6357 = vmatprep.subr.bf16.mxu0 %v5307
      %6358 = vmatpush1.bf16.msra.mxu0 %v5306
      %6359 = vmatprep.subr.bf16.mxu0 %v5299
      %6360 = vmatpush1.bf16.msra.mxu0 %v5298
      %6361 = vmatprep.subr.bf16.mxu0 %v5291
      %6362 = vmatpush1.bf16.msra.mxu0 %v5290
      %6363 = vmatprep.subr.bf16.mxu0 %v5283
      %6364 = vmatpush1.bf16.msra.mxu0 %v5282
      %6365 = vmatprep.subr.bf16.mxu0 %v5275
      %6366 = vmatpush1.bf16.msra.mxu0 %v5274
      %6367 = vmatprep.subr.bf16.mxu0 %v5267
      %6368 = vmatpush1.bf16.msra.mxu0 %v5266
      %6369 = vmatprep.subr.bf16.mxu0 %v5387
      %6370 = vmatpush2.bf16.msra.mxu0 %v5386
      %6371 = vmatprep.subr.bf16.mxu0 %v5379
      %6372 = vmatpush2.bf16.msra.mxu0 %v5378
      %6373 = vmatprep.subr.bf16.mxu0 %v5371
      %6374 = vmatpush2.bf16.msra.mxu0 %v5370
      %6375 = vmatprep.subr.bf16.mxu0 %v5363
      %6376 = vmatpush2.bf16.msra.mxu0 %v5362
      %6377 = vmatprep.subr.bf16.mxu0 %v5355
      %6378 = vmatpush2.bf16.msra.mxu0 %v5354
      %6379 = vmatprep.subr.bf16.mxu0 %v5347
      %6380 = vmatpush2.bf16.msra.mxu0 %v5346
      %6381 = vmatprep.subr.bf16.mxu0 %v5339
      %6382 = vmatpush2.bf16.msra.mxu0 %v5338
      %6383 = vmatprep.subr.bf16.mxu0 %v5331
      %6384 = vmatpush2.bf16.msra.mxu0 %v5330
      %6385 = vmatprep.mubr.bf16.mxu0 %v2787
      %6386 = vmatmul.mubr.bf16.gmra.mxu0 %v2786
      %v6387 = vpop.f32.mrf.mxu0
      %v6388 = vadd.f32 %v6347, %v6387
      %v6389 = vpop.f32.mrf.mxu0
      %v6390 = vadd.f32 %v6349, %v6389
      %v6391 = vpop.f32.mrf.mxu0
      %v6392 = vpop.f32.mrf.mxu0
      %6393 = vdwg.mxu0
      %6394 = vmatprep.subr.bf16.mxu0 %v4941
      %6395 = vmatpush1.bf16.msra.mxu0 %v4940
      %6396 = vmatprep.subr.bf16.mxu0 %v4933
      %6397 = vmatpush1.bf16.msra.mxu0 %v4932
      %6398 = vmatprep.subr.bf16.mxu0 %v4925
      %6399 = vmatpush1.bf16.msra.mxu0 %v4924
      %6400 = vmatprep.subr.bf16.mxu0 %v4917
      %6401 = vmatpush1.bf16.msra.mxu0 %v4916
      %6402 = vmatprep.subr.bf16.mxu0 %v4909
      %6403 = vmatpush1.bf16.msra.mxu0 %v4908
      %6404 = vmatprep.subr.bf16.mxu0 %v4901
      %6405 = vmatpush1.bf16.msra.mxu0 %v4900
      %6406 = vmatprep.subr.bf16.mxu0 %v4893
      %6407 = vmatpush1.bf16.msra.mxu0 %v4892
      %6408 = vmatprep.subr.bf16.mxu0 %v4885
      %6409 = vmatpush1.bf16.msra.mxu0 %v4884
      %6410 = vmatprep.subr.bf16.mxu0 %v5005
      %6411 = vmatpush2.bf16.msra.mxu0 %v5004
      %6412 = vmatprep.subr.bf16.mxu0 %v4997
      %6413 = vmatpush2.bf16.msra.mxu0 %v4996
      %6414 = vmatprep.subr.bf16.mxu0 %v4989
      %6415 = vmatpush2.bf16.msra.mxu0 %v4988
      %6416 = vmatprep.subr.bf16.mxu0 %v4981
      %6417 = vmatpush2.bf16.msra.mxu0 %v4980
      %6418 = vmatprep.subr.bf16.mxu0 %v4973
      %6419 = vmatpush2.bf16.msra.mxu0 %v4972
      %6420 = vmatprep.subr.bf16.mxu0 %v4965
      %6421 = vmatpush2.bf16.msra.mxu0 %v4964
      %6422 = vmatprep.subr.bf16.mxu0 %v4957
      %6423 = vmatpush2.bf16.msra.mxu0 %v4956
      %6424 = vmatprep.subr.bf16.mxu0 %v4949
      %6425 = vmatpush2.bf16.msra.mxu0 %v4948
      %6426 = vmatprep.mubr.bf16.mxu0 %v2781
      %6427 = vmatmul.mubr.bf16.gmra.mxu0 %v2780
      %v6428 = vpop.f32.mrf.mxu0
      %v6429 = vadd.f32 %v3329, %v6428
      %v6430 = vpop.f32.mrf.mxu0
      %v6431 = vadd.f32 %v3333, %v6430
      %v6432 = vpop.f32.mrf.mxu0
      %v6433 = vpop.f32.mrf.mxu0
      %6434 = vdwg.mxu0
      %6435 = vmatprep.subr.bf16.mxu0 %v5069
      %6436 = vmatpush1.bf16.msra.mxu0 %v5068
      %6437 = vmatprep.subr.bf16.mxu0 %v5061
      %6438 = vmatpush1.bf16.msra.mxu0 %v5060
      %6439 = vmatprep.subr.bf16.mxu0 %v5053
      %6440 = vmatpush1.bf16.msra.mxu0 %v5052
      %6441 = vmatprep.subr.bf16.mxu0 %v5045
      %6442 = vmatpush1.bf16.msra.mxu0 %v5044
      %6443 = vmatprep.subr.bf16.mxu0 %v5037
      %6444 = vmatpush1.bf16.msra.mxu0 %v5036
      %6445 = vmatprep.subr.bf16.mxu0 %v5029
      %6446 = vmatpush1.bf16.msra.mxu0 %v5028
      %6447 = vmatprep.subr.bf16.mxu0 %v5021
      %6448 = vmatpush1.bf16.msra.mxu0 %v5020
      %6449 = vmatprep.subr.bf16.mxu0 %v5013
      %6450 = vmatpush1.bf16.msra.mxu0 %v5012
      %6451 = vmatprep.subr.bf16.mxu0 %v5133
      %6452 = vmatpush2.bf16.msra.mxu0 %v5132
      %6453 = vmatprep.subr.bf16.mxu0 %v5125
      %6454 = vmatpush2.bf16.msra.mxu0 %v5124
      %6455 = vmatprep.subr.bf16.mxu0 %v5117
      %6456 = vmatpush2.bf16.msra.mxu0 %v5116
      %6457 = vmatprep.subr.bf16.mxu0 %v5109
      %6458 = vmatpush2.bf16.msra.mxu0 %v5108
      %6459 = vmatprep.subr.bf16.mxu0 %v5101
      %6460 = vmatpush2.bf16.msra.mxu0 %v5100
      %6461 = vmatprep.subr.bf16.mxu0 %v5093
      %6462 = vmatpush2.bf16.msra.mxu0 %v5092
      %6463 = vmatprep.subr.bf16.mxu0 %v5085
      %6464 = vmatpush2.bf16.msra.mxu0 %v5084
      %6465 = vmatprep.subr.bf16.mxu0 %v5077
      %6466 = vmatpush2.bf16.msra.mxu0 %v5076
      %6467 = vmatprep.mubr.bf16.mxu0 %v2783
      %6468 = vmatmul.mubr.bf16.gmra.mxu0 %v2782
      %v6469 = vpop.f32.mrf.mxu0
      %v6470 = vadd.f32 %v6429, %v6469
      %v6471 = vpop.f32.mrf.mxu0
      %v6472 = vadd.f32 %v6431, %v6471
      %v6473 = vpop.f32.mrf.mxu0
      %v6474 = vpop.f32.mrf.mxu0
      %6475 = vdwg.mxu0
      %6476 = vmatprep.subr.bf16.mxu0 %v5197
      %6477 = vmatpush1.bf16.msra.mxu0 %v5196
      %6478 = vmatprep.subr.bf16.mxu0 %v5189
      %6479 = vmatpush1.bf16.msra.mxu0 %v5188
      %6480 = vmatprep.subr.bf16.mxu0 %v5181
      %6481 = vmatpush1.bf16.msra.mxu0 %v5180
      %6482 = vmatprep.subr.bf16.mxu0 %v5173
      %6483 = vmatpush1.bf16.msra.mxu0 %v5172
      %6484 = vmatprep.subr.bf16.mxu0 %v5165
      %6485 = vmatpush1.bf16.msra.mxu0 %v5164
      %6486 = vmatprep.subr.bf16.mxu0 %v5157
      %6487 = vmatpush1.bf16.msra.mxu0 %v5156
      %6488 = vmatprep.subr.bf16.mxu0 %v5149
      %6489 = vmatpush1.bf16.msra.mxu0 %v5148
      %6490 = vmatprep.subr.bf16.mxu0 %v5141
      %6491 = vmatpush1.bf16.msra.mxu0 %v5140
      %6492 = vmatprep.subr.bf16.mxu0 %v5261
      %6493 = vmatpush2.bf16.msra.mxu0 %v5260
      %6494 = vmatprep.subr.bf16.mxu0 %v5253
      %6495 = vmatpush2.bf16.msra.mxu0 %v5252
      %6496 = vmatprep.subr.bf16.mxu0 %v5245
      %6497 = vmatpush2.bf16.msra.mxu0 %v5244
      %6498 = vmatprep.subr.bf16.mxu0 %v5237
      %6499 = vmatpush2.bf16.msra.mxu0 %v5236
      %6500 = vmatprep.subr.bf16.mxu0 %v5229
      %6501 = vmatpush2.bf16.msra.mxu0 %v5228
      %6502 = vmatprep.subr.bf16.mxu0 %v5221
      %6503 = vmatpush2.bf16.msra.mxu0 %v5220
      %6504 = vmatprep.subr.bf16.mxu0 %v5213
      %6505 = vmatpush2.bf16.msra.mxu0 %v5212
      %6506 = vmatprep.subr.bf16.mxu0 %v5205
      %6507 = vmatpush2.bf16.msra.mxu0 %v5204
      %6508 = vmatprep.mubr.bf16.mxu0 %v2785
      %6509 = vmatmul.mubr.bf16.gmra.mxu0 %v2784
      %v6510 = vpop.f32.mrf.mxu0
      %v6511 = vadd.f32 %v6470, %v6510
      %v6512 = vpop.f32.mrf.mxu0
      %v6513 = vadd.f32 %v6472, %v6512
      %v6514 = vpop.f32.mrf.mxu0
      %v6515 = vpop.f32.mrf.mxu0
      %6516 = vdwg.mxu0
      %6517 = vmatprep.subr.bf16.mxu0 %v5325
      %6518 = vmatpush1.bf16.msra.mxu0 %v5324
      %6519 = vmatprep.subr.bf16.mxu0 %v5317
      %6520 = vmatpush1.bf16.msra.mxu0 %v5316
      %6521 = vmatprep.subr.bf16.mxu0 %v5309
      %6522 = vmatpush1.bf16.msra.mxu0 %v5308
      %6523 = vmatprep.subr.bf16.mxu0 %v5301
      %6524 = vmatpush1.bf16.msra.mxu0 %v5300
      %6525 = vmatprep.subr.bf16.mxu0 %v5293
      %6526 = vmatpush1.bf16.msra.mxu0 %v5292
      %6527 = vmatprep.subr.bf16.mxu0 %v5285
      %6528 = vmatpush1.bf16.msra.mxu0 %v5284
      %6529 = vmatprep.subr.bf16.mxu0 %v5277
      %6530 = vmatpush1.bf16.msra.mxu0 %v5276
      %6531 = vmatprep.subr.bf16.mxu0 %v5269
      %6532 = vmatpush1.bf16.msra.mxu0 %v5268
      %6533 = vmatprep.subr.bf16.mxu0 %v5389
      %6534 = vmatpush2.bf16.msra.mxu0 %v5388
      %6535 = vmatprep.subr.bf16.mxu0 %v5381
      %6536 = vmatpush2.bf16.msra.mxu0 %v5380
      %6537 = vmatprep.subr.bf16.mxu0 %v5373
      %6538 = vmatpush2.bf16.msra.mxu0 %v5372
      %6539 = vmatprep.subr.bf16.mxu0 %v5365
      %6540 = vmatpush2.bf16.msra.mxu0 %v5364
      %6541 = vmatprep.subr.bf16.mxu0 %v5357
      %6542 = vmatpush2.bf16.msra.mxu0 %v5356
      %6543 = vmatprep.subr.bf16.mxu0 %v5349
      %6544 = vmatpush2.bf16.msra.mxu0 %v5348
      %6545 = vmatprep.subr.bf16.mxu0 %v5341
      %6546 = vmatpush2.bf16.msra.mxu0 %v5340
      %6547 = vmatprep.subr.bf16.mxu0 %v5333
      %6548 = vmatpush2.bf16.msra.mxu0 %v5332
      %6549 = vmatprep.mubr.bf16.mxu0 %v2787
      %6550 = vmatmul.mubr.bf16.gmra.mxu0 %v2786
      %v6551 = vpop.f32.mrf.mxu0
      %v6552 = vadd.f32 %v6511, %v6551
      %v6553 = vpop.f32.mrf.mxu0
      %v6554 = vadd.f32 %v6513, %v6553
      %v6555 = vpop.f32.mrf.mxu0
      %v6556 = vpop.f32.mrf.mxu0
      %6557 = vdwg.mxu0
      %v6558 = vmax.f32 %v6060, 0.0
      %v6559 = vmax.f32 %v6062, 0.0
      %v6560 = vmax.f32 %v6224, 0.0
      %v6561 = vmax.f32 %v6226, 0.0
      %v6562 = vmax.f32 %v6388, 0.0
      %v6563 = vmax.f32 %v6390, 0.0
      %v6564 = vmax.f32 %v6552, 0.0
      %v6565 = vmax.f32 %v6554, 0.0
      %v6566 = vpack.c.bf16 %v6558, %v6558
      %v6567 = vpack.c.bf16 %v6559, %v6559
      %v6568 = vpack.c.bf16 %v6560, %v6560
      %v6569 = vpack.c.bf16 %v6561, %v6561
      %v6570 = vpack.c.bf16 %v6562, %v6562
      %v6571 = vpack.c.bf16 %v6563, %v6563
      %v6572 = vpack.c.bf16 %v6564, %v6564
      %v6573 = vpack.c.bf16 %v6565, %v6565
      %v6574 = vld [vmem:[#allocation20] sm:$0xf]
      %v6575 = vld [vmem:[#allocation20 + $0x4] sm:$0xf]
      %v6576 = vld [vmem:[#allocation20 + $0x8] sm:$0xf]
      %v6577 = vld [vmem:[#allocation20 + $0xc] sm:$0xf]
      %v6578 = vld [vmem:[#allocation20 + $0x10] sm:$0xf]
      %v6579 = vld [vmem:[#allocation20 + $0x14] sm:$0xf]
      %v6580 = vld [vmem:[#allocation20 + $0x18] sm:$0xf]
      %v6581 = vld [vmem:[#allocation20 + $0x1c] sm:$0xf]
      %v6582 = vld [vmem:[#allocation20 + $0x20] sm:$0xf]
      %v6583 = vld [vmem:[#allocation20 + $0x24] sm:$0xf]
      %v6584 = vld [vmem:[#allocation20 + $0x28] sm:$0xf]
      %v6585 = vld [vmem:[#allocation20 + $0x2c] sm:$0xf]
      %v6586 = vld [vmem:[#allocation20 + $0x30] sm:$0xf]
      %v6587 = vld [vmem:[#allocation20 + $0x34] sm:$0xf]
      %v6588 = vld [vmem:[#allocation20 + $0x38] sm:$0xf]
      %v6589 = vld [vmem:[#allocation20 + $0x3c] sm:$0xf]
      %v6590 = vld [vmem:[#allocation20 + $0x40] sm:$0xf]
      %v6591 = vld [vmem:[#allocation20 + $0x44] sm:$0xf]
      %v6592 = vld [vmem:[#allocation20 + $0x48] sm:$0xf]
      %v6593 = vld [vmem:[#allocation20 + $0x4c] sm:$0xf]
      %v6594 = vld [vmem:[#allocation20 + $0x50] sm:$0xf]
      %v6595 = vld [vmem:[#allocation20 + $0x54] sm:$0xf]
      %v6596 = vld [vmem:[#allocation20 + $0x58] sm:$0xf]
      %v6597 = vld [vmem:[#allocation20 + $0x5c] sm:$0xf]
      %v6598 = vld [vmem:[#allocation20 + $0x60] sm:$0xf]
      %v6599 = vld [vmem:[#allocation20 + $0x64] sm:$0xf]
      %v6600 = vld [vmem:[#allocation20 + $0x68] sm:$0xf]
      %v6601 = vld [vmem:[#allocation20 + $0x6c] sm:$0xf]
      %v6602 = vld [vmem:[#allocation20 + $0x70] sm:$0xf]
      %v6603 = vld [vmem:[#allocation20 + $0x74] sm:$0xf]
      %v6604 = vld [vmem:[#allocation20 + $0x78] sm:$0xf]
      %v6605 = vld [vmem:[#allocation20 + $0x7c] sm:$0xf]
      %v6606 = vld [vmem:[#allocation20 + $0x80] sm:$0xf]
      %v6607 = vld [vmem:[#allocation20 + $0x84] sm:$0xf]
      %v6608 = vld [vmem:[#allocation20 + $0x88] sm:$0xf]
      %v6609 = vld [vmem:[#allocation20 + $0x8c] sm:$0xf]
      %v6610 = vld [vmem:[#allocation20 + $0x90] sm:$0xf]
      %v6611 = vld [vmem:[#allocation20 + $0x94] sm:$0xf]
      %v6612 = vld [vmem:[#allocation20 + $0x98] sm:$0xf]
      %v6613 = vld [vmem:[#allocation20 + $0x9c] sm:$0xf]
      %v6614 = vld [vmem:[#allocation20 + $0xa0] sm:$0xf]
      %v6615 = vld [vmem:[#allocation20 + $0xa4] sm:$0xf]
      %v6616 = vld [vmem:[#allocation20 + $0xa8] sm:$0xf]
      %v6617 = vld [vmem:[#allocation20 + $0xac] sm:$0xf]
      %v6618 = vld [vmem:[#allocation20 + $0xb0] sm:$0xf]
      %v6619 = vld [vmem:[#allocation20 + $0xb4] sm:$0xf]
      %v6620 = vld [vmem:[#allocation20 + $0xb8] sm:$0xf]
      %v6621 = vld [vmem:[#allocation20 + $0xbc] sm:$0xf]
      %v6622 = vld [vmem:[#allocation20 + $0xc0] sm:$0xf]
      %v6623 = vld [vmem:[#allocation20 + $0xc4] sm:$0xf]
      %v6624 = vld [vmem:[#allocation20 + $0xc8] sm:$0xf]
      %v6625 = vld [vmem:[#allocation20 + $0xcc] sm:$0xf]
      %v6626 = vld [vmem:[#allocation20 + $0xd0] sm:$0xf]
      %v6627 = vld [vmem:[#allocation20 + $0xd4] sm:$0xf]
      %v6628 = vld [vmem:[#allocation20 + $0xd8] sm:$0xf]
      %v6629 = vld [vmem:[#allocation20 + $0xdc] sm:$0xf]
      %v6630 = vld [vmem:[#allocation20 + $0xe0] sm:$0xf]
      %v6631 = vld [vmem:[#allocation20 + $0xe4] sm:$0xf]
      %v6632 = vld [vmem:[#allocation20 + $0xe8] sm:$0xf]
      %v6633 = vld [vmem:[#allocation20 + $0xec] sm:$0xf]
      %v6634 = vld [vmem:[#allocation20 + $0xf0] sm:$0xf]
      %v6635 = vld [vmem:[#allocation20 + $0xf4] sm:$0xf]
      %v6636 = vld [vmem:[#allocation20 + $0xf8] sm:$0xf]
      %v6637 = vld [vmem:[#allocation20 + $0xfc] sm:$0xf]
      %v6638 = vld [vmem:[#allocation20 + $0x100] sm:$0xf]
      %v6639 = vld [vmem:[#allocation20 + $0x104] sm:$0xf]
      %v6640 = vld [vmem:[#allocation20 + $0x108] sm:$0xf]
      %v6641 = vld [vmem:[#allocation20 + $0x10c] sm:$0xf]
      %v6642 = vld [vmem:[#allocation20 + $0x110] sm:$0xf]
      %v6643 = vld [vmem:[#allocation20 + $0x114] sm:$0xf]
      %v6644 = vld [vmem:[#allocation20 + $0x118] sm:$0xf]
      %v6645 = vld [vmem:[#allocation20 + $0x11c] sm:$0xf]
      %v6646 = vld [vmem:[#allocation20 + $0x120] sm:$0xf]
      %v6647 = vld [vmem:[#allocation20 + $0x124] sm:$0xf]
      %v6648 = vld [vmem:[#allocation20 + $0x128] sm:$0xf]
      %v6649 = vld [vmem:[#allocation20 + $0x12c] sm:$0xf]
      %v6650 = vld [vmem:[#allocation20 + $0x130] sm:$0xf]
      %v6651 = vld [vmem:[#allocation20 + $0x134] sm:$0xf]
      %v6652 = vld [vmem:[#allocation20 + $0x138] sm:$0xf]
      %v6653 = vld [vmem:[#allocation20 + $0x13c] sm:$0xf]
      %v6654 = vld [vmem:[#allocation20 + $0x140] sm:$0xf]
      %v6655 = vld [vmem:[#allocation20 + $0x144] sm:$0xf]
      %v6656 = vld [vmem:[#allocation20 + $0x148] sm:$0xf]
      %v6657 = vld [vmem:[#allocation20 + $0x14c] sm:$0xf]
      %v6658 = vld [vmem:[#allocation20 + $0x150] sm:$0xf]
      %v6659 = vld [vmem:[#allocation20 + $0x154] sm:$0xf]
      %v6660 = vld [vmem:[#allocation20 + $0x158] sm:$0xf]
      %v6661 = vld [vmem:[#allocation20 + $0x15c] sm:$0xf]
      %v6662 = vld [vmem:[#allocation20 + $0x160] sm:$0xf]
      %v6663 = vld [vmem:[#allocation20 + $0x164] sm:$0xf]
      %v6664 = vld [vmem:[#allocation20 + $0x168] sm:$0xf]
      %v6665 = vld [vmem:[#allocation20 + $0x16c] sm:$0xf]
      %v6666 = vld [vmem:[#allocation20 + $0x170] sm:$0xf]
      %v6667 = vld [vmem:[#allocation20 + $0x174] sm:$0xf]
      %v6668 = vld [vmem:[#allocation20 + $0x178] sm:$0xf]
      %v6669 = vld [vmem:[#allocation20 + $0x17c] sm:$0xf]
      %v6670 = vld [vmem:[#allocation20 + $0x180] sm:$0xf]
      %v6671 = vld [vmem:[#allocation20 + $0x184] sm:$0xf]
      %v6672 = vld [vmem:[#allocation20 + $0x188] sm:$0xf]
      %v6673 = vld [vmem:[#allocation20 + $0x18c] sm:$0xf]
      %v6674 = vld [vmem:[#allocation20 + $0x190] sm:$0xf]
      %v6675 = vld [vmem:[#allocation20 + $0x194] sm:$0xf]
      %v6676 = vld [vmem:[#allocation20 + $0x198] sm:$0xf]
      %v6677 = vld [vmem:[#allocation20 + $0x19c] sm:$0xf]
      %v6678 = vld [vmem:[#allocation20 + $0x1a0] sm:$0xf]
      %v6679 = vld [vmem:[#allocation20 + $0x1a4] sm:$0xf]
      %v6680 = vld [vmem:[#allocation20 + $0x1a8] sm:$0xf]
      %v6681 = vld [vmem:[#allocation20 + $0x1ac] sm:$0xf]
      %v6682 = vld [vmem:[#allocation20 + $0x1b0] sm:$0xf]
      %v6683 = vld [vmem:[#allocation20 + $0x1b4] sm:$0xf]
      %v6684 = vld [vmem:[#allocation20 + $0x1b8] sm:$0xf]
      %v6685 = vld [vmem:[#allocation20 + $0x1bc] sm:$0xf]
      %v6686 = vld [vmem:[#allocation20 + $0x1c0] sm:$0xf]
      %v6687 = vld [vmem:[#allocation20 + $0x1c4] sm:$0xf]
      %v6688 = vld [vmem:[#allocation20 + $0x1c8] sm:$0xf]
      %v6689 = vld [vmem:[#allocation20 + $0x1cc] sm:$0xf]
      %v6690 = vld [vmem:[#allocation20 + $0x1d0] sm:$0xf]
      %v6691 = vld [vmem:[#allocation20 + $0x1d4] sm:$0xf]
      %v6692 = vld [vmem:[#allocation20 + $0x1d8] sm:$0xf]
      %v6693 = vld [vmem:[#allocation20 + $0x1dc] sm:$0xf]
      %v6694 = vld [vmem:[#allocation20 + $0x1e0] sm:$0xf]
      %v6695 = vld [vmem:[#allocation20 + $0x1e4] sm:$0xf]
      %v6696 = vld [vmem:[#allocation20 + $0x1e8] sm:$0xf]
      %v6697 = vld [vmem:[#allocation20 + $0x1ec] sm:$0xf]
      %v6698 = vld [vmem:[#allocation20 + $0x1f0] sm:$0xf]
      %v6699 = vld [vmem:[#allocation20 + $0x1f4] sm:$0xf]
      %v6700 = vld [vmem:[#allocation20 + $0x1f8] sm:$0xf]
      %v6701 = vld [vmem:[#allocation20 + $0x1fc] sm:$0xf]
      %v6702 = vld [vmem:[#allocation21] sm:$0x1]
      %v6704 = vlaneseq
      %v6705 = vshrl.u32 %v6704, 7
      %v6706 = vsub.s32 0, %v6705
      %v6707 = vrot.slane %v6702, %v6706
      %v6837 = vunpack.c.l.b16 %v6574
      %v6838 = vunpack.c.l.b16 %v6575
      %v6839 = vunpack.c.l.b16 %v6576
      %v6840 = vunpack.c.l.b16 %v6577
      %v6841 = vunpack.c.l.b16 %v6578
      %v6842 = vunpack.c.l.b16 %v6579
      %v6843 = vunpack.c.l.b16 %v6580
      %v6844 = vunpack.c.l.b16 %v6581
      %v6845 = vunpack.c.l.b16 %v6582
      %v6846 = vunpack.c.l.b16 %v6583
      %v6847 = vunpack.c.l.b16 %v6584
      %v6848 = vunpack.c.l.b16 %v6585
      %v6849 = vunpack.c.l.b16 %v6586
      %v6850 = vunpack.c.l.b16 %v6587
      %v6851 = vunpack.c.l.b16 %v6588
      %v6852 = vunpack.c.l.b16 %v6589
      %v6853 = vunpack.c.l.b16 %v6590
      %v6854 = vunpack.c.l.b16 %v6591
      %v6855 = vunpack.c.l.b16 %v6592
      %v6856 = vunpack.c.l.b16 %v6593
      %v6857 = vunpack.c.l.b16 %v6594
      %v6858 = vunpack.c.l.b16 %v6595
      %v6859 = vunpack.c.l.b16 %v6596
      %v6860 = vunpack.c.l.b16 %v6597
      %v6861 = vunpack.c.l.b16 %v6598
      %v6862 = vunpack.c.l.b16 %v6599
      %v6863 = vunpack.c.l.b16 %v6600
      %v6864 = vunpack.c.l.b16 %v6601
      %v6865 = vunpack.c.l.b16 %v6602
      %v6866 = vunpack.c.l.b16 %v6603
      %v6867 = vunpack.c.l.b16 %v6604
      %v6868 = vunpack.c.l.b16 %v6605
      %v6869 = vunpack.c.l.b16 %v6606
      %v6870 = vunpack.c.l.b16 %v6607
      %v6871 = vunpack.c.l.b16 %v6608
      %v6872 = vunpack.c.l.b16 %v6609
      %v6873 = vunpack.c.l.b16 %v6610
      %v6874 = vunpack.c.l.b16 %v6611
      %v6875 = vunpack.c.l.b16 %v6612
      %v6876 = vunpack.c.l.b16 %v6613
      %v6877 = vunpack.c.l.b16 %v6614
      %v6878 = vunpack.c.l.b16 %v6615
      %v6879 = vunpack.c.l.b16 %v6616
      %v6880 = vunpack.c.l.b16 %v6617
      %v6881 = vunpack.c.l.b16 %v6618
      %v6882 = vunpack.c.l.b16 %v6619
      %v6883 = vunpack.c.l.b16 %v6620
      %v6884 = vunpack.c.l.b16 %v6621
      %v6885 = vunpack.c.l.b16 %v6622
      %v6886 = vunpack.c.l.b16 %v6623
      %v6887 = vunpack.c.l.b16 %v6624
      %v6888 = vunpack.c.l.b16 %v6625
      %v6889 = vunpack.c.l.b16 %v6626
      %v6890 = vunpack.c.l.b16 %v6627
      %v6891 = vunpack.c.l.b16 %v6628
      %v6892 = vunpack.c.l.b16 %v6629
      %v6893 = vunpack.c.l.b16 %v6630
      %v6894 = vunpack.c.l.b16 %v6631
      %v6895 = vunpack.c.l.b16 %v6632
      %v6896 = vunpack.c.l.b16 %v6633
      %v6897 = vunpack.c.l.b16 %v6634
      %v6898 = vunpack.c.l.b16 %v6635
      %v6899 = vunpack.c.l.b16 %v6636
      %v6900 = vunpack.c.l.b16 %v6637
      %v6901 = vunpack.c.l.b16 %v6638
      %v6902 = vunpack.c.l.b16 %v6639
      %v6903 = vunpack.c.l.b16 %v6640
      %v6904 = vunpack.c.l.b16 %v6641
      %v6905 = vunpack.c.l.b16 %v6642
      %v6906 = vunpack.c.l.b16 %v6643
      %v6907 = vunpack.c.l.b16 %v6644
      %v6908 = vunpack.c.l.b16 %v6645
      %v6909 = vunpack.c.l.b16 %v6646
      %v6910 = vunpack.c.l.b16 %v6647
      %v6911 = vunpack.c.l.b16 %v6648
      %v6912 = vunpack.c.l.b16 %v6649
      %v6913 = vunpack.c.l.b16 %v6650
      %v6914 = vunpack.c.l.b16 %v6651
      %v6915 = vunpack.c.l.b16 %v6652
      %v6916 = vunpack.c.l.b16 %v6653
      %v6917 = vunpack.c.l.b16 %v6654
      %v6918 = vunpack.c.l.b16 %v6655
      %v6919 = vunpack.c.l.b16 %v6656
      %v6920 = vunpack.c.l.b16 %v6657
      %v6921 = vunpack.c.l.b16 %v6658
      %v6922 = vunpack.c.l.b16 %v6659
      %v6923 = vunpack.c.l.b16 %v6660
      %v6924 = vunpack.c.l.b16 %v6661
      %v6925 = vunpack.c.l.b16 %v6662
      %v6926 = vunpack.c.l.b16 %v6663
      %v6927 = vunpack.c.l.b16 %v6664
      %v6928 = vunpack.c.l.b16 %v6665
      %v6929 = vunpack.c.l.b16 %v6666
      %v6930 = vunpack.c.l.b16 %v6667
      %v6931 = vunpack.c.l.b16 %v6668
      %v6932 = vunpack.c.l.b16 %v6669
      %v6933 = vunpack.c.l.b16 %v6670
      %v6934 = vunpack.c.l.b16 %v6671
      %v6935 = vunpack.c.l.b16 %v6672
      %v6936 = vunpack.c.l.b16 %v6673
      %v6937 = vunpack.c.l.b16 %v6674
      %v6938 = vunpack.c.l.b16 %v6675
      %v6939 = vunpack.c.l.b16 %v6676
      %v6940 = vunpack.c.l.b16 %v6677
      %v6941 = vunpack.c.l.b16 %v6678
      %v6942 = vunpack.c.l.b16 %v6679
      %v6943 = vunpack.c.l.b16 %v6680
      %v6944 = vunpack.c.l.b16 %v6681
      %v6945 = vunpack.c.l.b16 %v6682
      %v6946 = vunpack.c.l.b16 %v6683
      %v6947 = vunpack.c.l.b16 %v6684
      %v6948 = vunpack.c.l.b16 %v6685
      %v6949 = vunpack.c.l.b16 %v6686
      %v6950 = vunpack.c.l.b16 %v6687
      %v6951 = vunpack.c.l.b16 %v6688
      %v6952 = vunpack.c.l.b16 %v6689
      %v6953 = vunpack.c.l.b16 %v6690
      %v6954 = vunpack.c.l.b16 %v6691
      %v6955 = vunpack.c.l.b16 %v6692
      %v6956 = vunpack.c.l.b16 %v6693
      %v6957 = vunpack.c.l.b16 %v6694
      %v6958 = vunpack.c.l.b16 %v6695
      %v6959 = vunpack.c.l.b16 %v6696
      %v6960 = vunpack.c.l.b16 %v6697
      %v6961 = vunpack.c.l.b16 %v6698
      %v6962 = vunpack.c.l.b16 %v6699
      %v6963 = vunpack.c.l.b16 %v6700
      %v6964 = vunpack.c.l.b16 %v6701
      %v6965 = vpack.c.b16 %v6838, %v6837
      %v6966 = vpack.c.b16 %v6840, %v6839
      %v6967 = vpack.c.b16 %v6842, %v6841
      %v6968 = vpack.c.b16 %v6844, %v6843
      %v6969 = vpack.c.b16 %v6846, %v6845
      %v6970 = vpack.c.b16 %v6848, %v6847
      %v6971 = vpack.c.b16 %v6850, %v6849
      %v6972 = vpack.c.b16 %v6852, %v6851
      %v6973 = vpack.c.b16 %v6854, %v6853
      %v6974 = vpack.c.b16 %v6856, %v6855
      %v6975 = vpack.c.b16 %v6858, %v6857
      %v6976 = vpack.c.b16 %v6860, %v6859
      %v6977 = vpack.c.b16 %v6862, %v6861
      %v6978 = vpack.c.b16 %v6864, %v6863
      %v6979 = vpack.c.b16 %v6866, %v6865
      %v6980 = vpack.c.b16 %v6868, %v6867
      %v6981 = vpack.c.b16 %v6870, %v6869
      %v6982 = vpack.c.b16 %v6872, %v6871
      %v6983 = vpack.c.b16 %v6874, %v6873
      %v6984 = vpack.c.b16 %v6876, %v6875
      %v6985 = vpack.c.b16 %v6878, %v6877
      %v6986 = vpack.c.b16 %v6880, %v6879
      %v6987 = vpack.c.b16 %v6882, %v6881
      %v6988 = vpack.c.b16 %v6884, %v6883
      %v6989 = vpack.c.b16 %v6886, %v6885
      %v6990 = vpack.c.b16 %v6888, %v6887
      %v6991 = vpack.c.b16 %v6890, %v6889
      %v6992 = vpack.c.b16 %v6892, %v6891
      %v6993 = vpack.c.b16 %v6894, %v6893
      %v6994 = vpack.c.b16 %v6896, %v6895
      %v6995 = vpack.c.b16 %v6898, %v6897
      %v6996 = vpack.c.b16 %v6900, %v6899
      %v6997 = vpack.c.b16 %v6902, %v6901
      %v6998 = vpack.c.b16 %v6904, %v6903
      %v6999 = vpack.c.b16 %v6906, %v6905
      %v7000 = vpack.c.b16 %v6908, %v6907
      %v7001 = vpack.c.b16 %v6910, %v6909
      %v7002 = vpack.c.b16 %v6912, %v6911
      %v7003 = vpack.c.b16 %v6914, %v6913
      %v7004 = vpack.c.b16 %v6916, %v6915
      %v7005 = vpack.c.b16 %v6918, %v6917
      %v7006 = vpack.c.b16 %v6920, %v6919
      %v7007 = vpack.c.b16 %v6922, %v6921
      %v7008 = vpack.c.b16 %v6924, %v6923
      %v7009 = vpack.c.b16 %v6926, %v6925
      %v7010 = vpack.c.b16 %v6928, %v6927
      %v7011 = vpack.c.b16 %v6930, %v6929
      %v7012 = vpack.c.b16 %v6932, %v6931
      %v7013 = vpack.c.b16 %v6934, %v6933
      %v7014 = vpack.c.b16 %v6936, %v6935
      %v7015 = vpack.c.b16 %v6938, %v6937
      %v7016 = vpack.c.b16 %v6940, %v6939
      %v7017 = vpack.c.b16 %v6942, %v6941
      %v7018 = vpack.c.b16 %v6944, %v6943
      %v7019 = vpack.c.b16 %v6946, %v6945
      %v7020 = vpack.c.b16 %v6948, %v6947
      %v7021 = vpack.c.b16 %v6950, %v6949
      %v7022 = vpack.c.b16 %v6952, %v6951
      %v7023 = vpack.c.b16 %v6954, %v6953
      %v7024 = vpack.c.b16 %v6956, %v6955
      %v7025 = vpack.c.b16 %v6958, %v6957
      %v7026 = vpack.c.b16 %v6960, %v6959
      %v7027 = vpack.c.b16 %v6962, %v6961
      %v7028 = vpack.c.b16 %v6964, %v6963
      %7093 = vmatprep.subr.bf16.mxu0 0
      %7094 = vmatpush1.bf16.msra.mxu0 %v6972
      %7095 = vmatprep.subr.bf16.mxu0 0
      %7096 = vmatpush1.bf16.msra.mxu0 %v6971
      %7097 = vmatprep.subr.bf16.mxu0 0
      %7098 = vmatpush1.bf16.msra.mxu0 %v6970
      %7099 = vmatprep.subr.bf16.mxu0 0
      %7100 = vmatpush1.bf16.msra.mxu0 %v6969
      %7101 = vmatprep.subr.bf16.mxu0 0
      %7102 = vmatpush1.bf16.msra.mxu0 %v6968
      %7103 = vmatprep.subr.bf16.mxu0 0
      %7104 = vmatpush1.bf16.msra.mxu0 %v6967
      %7105 = vmatprep.subr.bf16.mxu0 0
      %7106 = vmatpush1.bf16.msra.mxu0 %v6966
      %7107 = vmatprep.subr.bf16.mxu0 0
      %7108 = vmatpush1.bf16.msra.mxu0 %v6965
      %7109 = vmatprep.subr.bf16.mxu0 0
      %7110 = vmatpush2.bf16.msra.mxu0 %v6980
      %7111 = vmatprep.subr.bf16.mxu0 0
      %7112 = vmatpush2.bf16.msra.mxu0 %v6979
      %7113 = vmatprep.subr.bf16.mxu0 0
      %7114 = vmatpush2.bf16.msra.mxu0 %v6978
      %7115 = vmatprep.subr.bf16.mxu0 0
      %7116 = vmatpush2.bf16.msra.mxu0 %v6977
      %7117 = vmatprep.subr.bf16.mxu0 0
      %7118 = vmatpush2.bf16.msra.mxu0 %v6976
      %7119 = vmatprep.subr.bf16.mxu0 0
      %7120 = vmatpush2.bf16.msra.mxu0 %v6975
      %7121 = vmatprep.subr.bf16.mxu0 0
      %7122 = vmatpush2.bf16.msra.mxu0 %v6974
      %7123 = vmatprep.subr.bf16.mxu0 0
      %7124 = vmatpush2.bf16.msra.mxu0 %v6973
      %7125 = vmatprep.mubr.bf16.mxu0 %v6567
      %7126 = vmatmul.mubr.bf16.gmra.mxu0 %v6566
      %v7127 = vpop.f32.mrf.mxu0
      %v7128 = vadd.f32 %v6707, %v7127
      %v7129 = vpop.f32.mrf.mxu0
      %v7130 = vpop.f32.mrf.mxu0
      %v7131 = vpop.f32.mrf.mxu0
      %7132 = vdwg.mxu0
      %7133 = vmatprep.subr.bf16.mxu0 0
      %7134 = vmatpush1.bf16.msra.mxu0 %v6988
      %7135 = vmatprep.subr.bf16.mxu0 0
      %7136 = vmatpush1.bf16.msra.mxu0 %v6987
      %7137 = vmatprep.subr.bf16.mxu0 0
      %7138 = vmatpush1.bf16.msra.mxu0 %v6986
      %7139 = vmatprep.subr.bf16.mxu0 0
      %7140 = vmatpush1.bf16.msra.mxu0 %v6985
      %7141 = vmatprep.subr.bf16.mxu0 0
      %7142 = vmatpush1.bf16.msra.mxu0 %v6984
      %7143 = vmatprep.subr.bf16.mxu0 0
      %7144 = vmatpush1.bf16.msra.mxu0 %v6983
      %7145 = vmatprep.subr.bf16.mxu0 0
      %7146 = vmatpush1.bf16.msra.mxu0 %v6982
      %7147 = vmatprep.subr.bf16.mxu0 0
      %7148 = vmatpush1.bf16.msra.mxu0 %v6981
      %7149 = vmatprep.subr.bf16.mxu0 0
      %7150 = vmatpush2.bf16.msra.mxu0 %v6996
      %7151 = vmatprep.subr.bf16.mxu0 0
      %7152 = vmatpush2.bf16.msra.mxu0 %v6995
      %7153 = vmatprep.subr.bf16.mxu0 0
      %7154 = vmatpush2.bf16.msra.mxu0 %v6994
      %7155 = vmatprep.subr.bf16.mxu0 0
      %7156 = vmatpush2.bf16.msra.mxu0 %v6993
      %7157 = vmatprep.subr.bf16.mxu0 0
      %7158 = vmatpush2.bf16.msra.mxu0 %v6992
      %7159 = vmatprep.subr.bf16.mxu0 0
      %7160 = vmatpush2.bf16.msra.mxu0 %v6991
      %7161 = vmatprep.subr.bf16.mxu0 0
      %7162 = vmatpush2.bf16.msra.mxu0 %v6990
      %7163 = vmatprep.subr.bf16.mxu0 0
      %7164 = vmatpush2.bf16.msra.mxu0 %v6989
      %7165 = vmatprep.mubr.bf16.mxu0 %v6569
      %7166 = vmatmul.mubr.bf16.gmra.mxu0 %v6568
      %v7167 = vpop.f32.mrf.mxu0
      %v7168 = vadd.f32 %v7128, %v7167
      %v7169 = vpop.f32.mrf.mxu0
      %v7170 = vpop.f32.mrf.mxu0
      %v7171 = vpop.f32.mrf.mxu0
      %7172 = vdwg.mxu0
      %7173 = vmatprep.subr.bf16.mxu0 0
      %7174 = vmatpush1.bf16.msra.mxu0 %v7004
      %7175 = vmatprep.subr.bf16.mxu0 0
      %7176 = vmatpush1.bf16.msra.mxu0 %v7003
      %7177 = vmatprep.subr.bf16.mxu0 0
      %7178 = vmatpush1.bf16.msra.mxu0 %v7002
      %7179 = vmatprep.subr.bf16.mxu0 0
      %7180 = vmatpush1.bf16.msra.mxu0 %v7001
      %7181 = vmatprep.subr.bf16.mxu0 0
      %7182 = vmatpush1.bf16.msra.mxu0 %v7000
      %7183 = vmatprep.subr.bf16.mxu0 0
      %7184 = vmatpush1.bf16.msra.mxu0 %v6999
      %7185 = vmatprep.subr.bf16.mxu0 0
      %7186 = vmatpush1.bf16.msra.mxu0 %v6998
      %7187 = vmatprep.subr.bf16.mxu0 0
      %7188 = vmatpush1.bf16.msra.mxu0 %v6997
      %7189 = vmatprep.subr.bf16.mxu0 0
      %7190 = vmatpush2.bf16.msra.mxu0 %v7012
      %7191 = vmatprep.subr.bf16.mxu0 0
      %7192 = vmatpush2.bf16.msra.mxu0 %v7011
      %7193 = vmatprep.subr.bf16.mxu0 0
      %7194 = vmatpush2.bf16.msra.mxu0 %v7010
      %7195 = vmatprep.subr.bf16.mxu0 0
      %7196 = vmatpush2.bf16.msra.mxu0 %v7009
      %7197 = vmatprep.subr.bf16.mxu0 0
      %7198 = vmatpush2.bf16.msra.mxu0 %v7008
      %7199 = vmatprep.subr.bf16.mxu0 0
      %7200 = vmatpush2.bf16.msra.mxu0 %v7007
      %7201 = vmatprep.subr.bf16.mxu0 0
      %7202 = vmatpush2.bf16.msra.mxu0 %v7006
      %7203 = vmatprep.subr.bf16.mxu0 0
      %7204 = vmatpush2.bf16.msra.mxu0 %v7005
      %7205 = vmatprep.mubr.bf16.mxu0 %v6571
      %7206 = vmatmul.mubr.bf16.gmra.mxu0 %v6570
      %v7207 = vpop.f32.mrf.mxu0
      %v7208 = vadd.f32 %v7168, %v7207
      %v7209 = vpop.f32.mrf.mxu0
      %v7210 = vpop.f32.mrf.mxu0
      %v7211 = vpop.f32.mrf.mxu0
      %7212 = vdwg.mxu0
      %7213 = vmatprep.subr.bf16.mxu0 0
      %7214 = vmatpush1.bf16.msra.mxu0 %v7020
      %7215 = vmatprep.subr.bf16.mxu0 0
      %7216 = vmatpush1.bf16.msra.mxu0 %v7019
      %7217 = vmatprep.subr.bf16.mxu0 0
      %7218 = vmatpush1.bf16.msra.mxu0 %v7018
      %7219 = vmatprep.subr.bf16.mxu0 0
      %7220 = vmatpush1.bf16.msra.mxu0 %v7017
      %7221 = vmatprep.subr.bf16.mxu0 0
      %7222 = vmatpush1.bf16.msra.mxu0 %v7016
      %7223 = vmatprep.subr.bf16.mxu0 0
      %7224 = vmatpush1.bf16.msra.mxu0 %v7015
      %7225 = vmatprep.subr.bf16.mxu0 0
      %7226 = vmatpush1.bf16.msra.mxu0 %v7014
      %7227 = vmatprep.subr.bf16.mxu0 0
      %7228 = vmatpush1.bf16.msra.mxu0 %v7013
      %7229 = vmatprep.subr.bf16.mxu0 0
      %7230 = vmatpush2.bf16.msra.mxu0 %v7028
      %7231 = vmatprep.subr.bf16.mxu0 0
      %7232 = vmatpush2.bf16.msra.mxu0 %v7027
      %7233 = vmatprep.subr.bf16.mxu0 0
      %7234 = vmatpush2.bf16.msra.mxu0 %v7026
      %7235 = vmatprep.subr.bf16.mxu0 0
      %7236 = vmatpush2.bf16.msra.mxu0 %v7025
      %7237 = vmatprep.subr.bf16.mxu0 0
      %7238 = vmatpush2.bf16.msra.mxu0 %v7024
      %7239 = vmatprep.subr.bf16.mxu0 0
      %7240 = vmatpush2.bf16.msra.mxu0 %v7023
      %7241 = vmatprep.subr.bf16.mxu0 0
      %7242 = vmatpush2.bf16.msra.mxu0 %v7022
      %7243 = vmatprep.subr.bf16.mxu0 0
      %7244 = vmatpush2.bf16.msra.mxu0 %v7021
      %7245 = vmatprep.mubr.bf16.mxu0 %v6573
      %7246 = vmatmul.mubr.bf16.gmra.mxu0 %v6572
      %v7247 = vpop.f32.mrf.mxu0
      %v7248 = vadd.f32 %v7208, %v7247
      %v7249 = vpop.f32.mrf.mxu0
      %v7250 = vpop.f32.mrf.mxu0
      %v7251 = vpop.f32.mrf.mxu0
      %7252 = vdwg.mxu0
      %v7253 = vmax.f32 %v7248, 0.0
      %7254 = vst [vmem:[#allocation23] sm:$0x3] %v7253
    $region109: #{tpu_custom_call.1} parent=1 // pred_fallthru
      _
    // Predicated region
    $region110: #{tpu_custom_call.1} parent=1 // pred_check
      _
    $region111: #{tpu_custom_call.1} parent=1 // pred_check_branch
      %7256 = sbr.rel (0) target = $region113
    $region112: #{tpu_custom_call.1} parent=1 // pred_region
      %s7258 = ssub.s32 32, 32
      %7259 = vsyncadd [#allocation5], %s7258
      %s7261 = sshll.u32 [#allocation23], 4
      %s7262 = int_to_ptr.vmem [resolvable:$true] %s7261
      %7264 = dma.vmem_to_hbm [thread:$0]  %s7262, 32, %s13, [#allocation5]
    $region113: #{tpu_custom_call.1} parent=1 // pred_fallthru
      _
    // Predicated region
    $region114: #{tpu_custom_call.1} parent=1 // pred_check
      _
    $region115: #{tpu_custom_call.1} parent=1 // pred_check_branch
      %7266 = sbr.rel (0) target = $region117
    $region116: #{tpu_custom_call.1} parent=1 // pred_region
      %7267 = dma.done [#allocation5], 32
    $region117: #{tpu_custom_call.1} parent=1 // pred_fallthru
      _
    %7268 = vsyncpa [#allocation4], 1
    %7269 = vsyncpa [#allocation7], 1
    %7270 = vsyncpa [#allocation10], 1
    %7271 = vsyncpa [#allocation13], 1
    %7272 = vsyncpa [#allocation16], 1
    %7273 = vsyncpa [#allocation19], 1
    %7274 = vsyncpa [#allocation22], 1
    %7275 = vsyncpa [#allocation5], 1

</llo_original>
